<compile_context>
chip_gen: v7x
topology: tpu7x:2x2x1
jax: 0.10.0
libtpu: 0.0.40
codegen_flags: <defaults>
</compile_context>

<pallas_src>
import functools

import jax
import jax.numpy as jnp
import numpy as np
from jax.experimental import pallas as pl
from jax.experimental.pallas import tpu as pltpu

F32 = jnp.float32
BF16 = jnp.bfloat16
LN_EPS = 1e-5   # torch.nn.LayerNorm default
BN_EPS = 1e-5   # torch.nn.BatchNorm1d default


# ----------------------------- packing helpers -------------------------------

def _concat_cols(w):
    """(N, Di, Do) stacked weights -> (Di, N*Do) lane-concatenated weight."""
    n, di, do = w.shape
    return jnp.transpose(w, (1, 0, 2)).reshape(di, n * do)


def _concat_rows(v):
    """(N, 1, Do) stacked row vectors -> (1, N*Do)."""
    n, _, do = v.shape
    return v.reshape(1, n * do)


def _block_diag(w):
    """(N, Di, Do) stacked weights -> (N*Di, N*Do) block-diagonal weight."""
    n, di, do = w.shape
    eye = jnp.eye(n, dtype=w.dtype)
    return (w[:, :, None, :] * eye[:, None, :, None]).reshape(n * di, n * do)


class _Packer:
    """Packs many small 2-D arrays into one (rows, width) slab with static offsets."""

    def __init__(self, dtype, row_align):
        self.dtype = dtype
        self.row_align = row_align
        self._blocks = []
        self.offsets = {}          # name -> (row0, rows, cols)   (Python ints)
        self._rows = 0
        self._width = 0
        self.mac_elems = 0

    def add(self, name, arr):
        arr = jnp.asarray(arr, self.dtype)
        r, c = arr.shape
        rpad = -(-r // self.row_align) * self.row_align
        self.offsets[name] = (self._rows, r, c)
        self._blocks.append((arr, rpad))
        self._rows += rpad
        self._width = max(self._width, c)
        self.mac_elems += r * c

    def finalize(self, lane_align=128, sublane_align=8):
        width = -(-self._width // lane_align) * lane_align
        parts = [jnp.pad(a, ((0, rp - a.shape[0]), (0, width - a.shape[1])))
                 for a, rp in self._blocks]
        slab = jnp.concatenate(parts, axis=0)
        extra = (-slab.shape[0]) % sublane_align
        if extra:
            slab = jnp.pad(slab, ((0, extra), (0, 0)))
        return slab, self.offsets


def _group_mean_np(n_total, group):
    """Constant matrix that averages contiguous lane groups (for grouped LayerNorm)."""
    idx = np.arange(n_total) // group
    return (idx[:, None] == idx[None, :]).astype(np.float32) / group


def _gm_key(n_total, group):
    return f"gm_{n_total}_{group}"


# -------------------------------- fused kernel --------------------------------

def _fused_kernel(x_ref, dom_ref, w_ref, v_ref, c_ref, o_ref, *,
                  w_off, v_off, c_off, h1, h2, e_dims,
                  expert_num, domain_num, task_num):
    dn, t_num, e_num = domain_num, task_num, expert_num
    td = dn * t_num
    n_layers = len(e_dims) - 1

    def _rd(ref, off, name):
        r0, r, c = off[name]          # static Python ints -> zero-cost ref views
        return ref[r0:r0 + r, 0:c]

    W = lambda n: _rd(w_ref, w_off, n)          # bf16 weight blocks
    V = lambda n: _rd(v_ref, v_off, n)          # f32 (1, w) row vectors
    C = lambda n: _rd(c_ref, c_off, n)          # f32 constant matrices

    def ln_relu(y, gamma, beta, gm):
        # grouped LayerNorm: stats via lane-dense f32 matmuls (MXU), then ReLU
        mu = jnp.dot(y, gm, preferred_element_type=F32)
        yc = y - mu
        var = jnp.dot(yc * yc, gm, preferred_element_type=F32)
        return jnp.maximum(yc * jax.lax.rsqrt(var + LN_EPS) * gamma + beta, 0.0)

    x = x_ref[...].astype(BF16)                  # (bt, Din)
    dom = dom_ref[...]                           # (bt, 1) f32 domain ids

    # ---- fused input layer: [skip_conn | STAR (all domains)] in one matmul ----
    z0 = jnp.dot(x, W("w_in"), preferred_element_type=F32) + V("b_in")
    skip = ln_relu(z0[:, :h2], V("g_skip"), V("bt_skip"), C(_gm_key(h2, h2)))
    star_all = z0[:, h2:h2 + dn * h1]
    star_sel = jnp.where(V("star_dom") == dom, star_all, 0.0)   # per-domain select
    emb = jnp.dot(star_sel, C("star_fold"), preferred_element_type=F32)   # (bt, h1)

    # ---- star_mlp + skip connection ----
    z1 = jnp.dot(emb.astype(BF16), W("w_smlp"), preferred_element_type=F32) + V("b_smlp")
    emb = ln_relu(z1, V("g_smlp"), V("bt_smlp"), C(_gm_key(h2, h2))) + skip

    # ---- fused layer-0 of everything consuming `emb`:
    #      [expert_0..E-1 | dt_expert_0..TD-1 | gates] in one lane-dense matmul ----
    d1 = e_dims[1]
    off_dt = e_num * d1
    off_gate = off_dt + td * d1
    z2 = jnp.dot(emb.astype(BF16), W("w_emb0"), preferred_element_type=F32) + V("b_emb0")
    eh = ln_relu(z2[:, :off_dt], V("g_exp0"), V("bt_exp0"), C(_gm_key(e_num * d1, d1)))
    dh = ln_relu(z2[:, off_dt:off_gate], V("g_dt0"), V("bt_dt0"), C(_gm_key(td * d1, d1)))
    s_all = z2[:, off_gate:off_gate + td * e_num]                # gate logits (bt, td*E)

    # ---- deeper expert / dt_expert layers (block-diagonal, lane-packed) ----
    for li in range(1, n_layers):
        dw = e_dims[li + 1]
        eh = ln_relu(jnp.dot(eh.astype(BF16), W(f"w_exp{li}"),
                             preferred_element_type=F32) + V(f"b_exp{li}"),
                     V(f"g_exp{li}"), V(f"bt_exp{li}"), C(_gm_key(e_num * dw, dw)))
        dh = ln_relu(jnp.dot(dh.astype(BF16), W(f"w_dt{li}"),
                             preferred_element_type=F32) + V(f"b_dt{li}"),
                     V(f"g_dt{li}"), V(f"bt_dt{li}"), C(_gm_key(td * dw, dw)))

    # ---- vectorised per-(task,domain) softmax gates + MoE combine ----
    # (no max-subtraction needed: gate logits are small, f32 exp is safe here)
    p = jnp.exp(s_all)
    denom = jnp.dot(p, C("softmax_sum"), preferred_element_type=F32)
    g_all = p * pl.reciprocal(denom, approx=True)                # (bt, td*E)
    fea = dh                                                     # (bt, td*do)
    for e in range(e_num):
        g_e = jnp.dot(g_all, C(f"expand_{e}"), preferred_element_type=F32)
        x_e = jnp.dot(eh, C(f"tile_{e}"), preferred_element_type=F32)
        fea = fea + g_e * x_e

    # ---- towers: block-diag Linear -> eval-mode BatchNorm (folded) -> ReLU
    #      -> per-tower Linear(.,1) folded into the column-sum matrix ----
    th = jnp.dot(fea.astype(BF16), W("w_tw1"), preferred_element_type=F32) + V("b_tw1")
    th = jnp.maximum(th * V("bn_scale") + V("bn_shift"), 0.0)
    logits = jnp.dot(th, C("gsum_w2"), preferred_element_type=F32) + V("b_tw2")
    probs = jax.nn.sigmoid(logits)                               # (bt, td)

    # ---- domain routing: result[:, t] = probs[:, t*dn + domain_id]; ONE store ----
    sel = jnp.where(V("out_dom") == dom, probs, 0.0)
    o_ref[...] = jnp.dot(sel, C("task_fold"), preferred_element_type=F32)


# -------------------------------- forward pass --------------------------------

def mtmd_forward(x, params, cfg):
    dn = cfg["domain_num"]
    t_num = cfg["task_num"]
    e_num = cfg["expert_num"]
    td = dn * t_num

    # --- embedding lookup + squeeze_dim=True concat (plain-JAX glue) ---
    domain_id = x[-1, :]
    input_emb = jnp.concatenate(
        [tbl[x[i]] for i, tbl in enumerate(params["emb_tables"])], axis=-1
    ).astype(F32)                                                # (B, input_dim)
    b = input_emb.shape[0]
    dom2d = domain_id.reshape(b, 1).astype(F32)                  # small ints exact in f32

    din = params["shared_w"].shape[0]
    h1 = params["shared_w"].shape[1]
    h2 = params["skip_conn"][0][0].shape[-1]
    e_dims = [params["expert"][0][0].shape[1]] + [lay[0].shape[2] for lay in params["expert"]]
    do = e_dims[-1]
    assert e_dims[0] == h2, "expert/gate input width must equal STAR output width"
    assert input_emb.shape[1] == din

    tw1, tb1, tbg, tbb, tw2, tb2 = params["tower"]

    # ---------------- weight slab (bf16 MXU operands) ----------------
    wp = _Packer(BF16, row_align=16)
    skip_w = params["skip_conn"][0][0][0]                                     # (din, h2)
    star_w_all = _concat_cols(params["slot_w"] * params["shared_w"][None])    # (din, dn*h1)
    wp.add("w_in", jnp.concatenate([skip_w, star_w_all], axis=1))
    wp.add("w_smlp", params["star_mlp"][0][0][0])                             # (h1, h2)
    wp.add("w_emb0", jnp.concatenate(
        [_concat_cols(params["expert"][0][0]),
         _concat_cols(params["dt_expert"][0][0]),
         _concat_cols(params["gate_w"])], axis=1))                            # (h2, E*d1+td*d1+td*E)
    for li in range(1, len(e_dims) - 1):
        wp.add(f"w_exp{li}", _block_diag(params["expert"][li][0]))
        wp.add(f"w_dt{li}", _block_diag(params["dt_expert"][li][0]))
    wp.add("w_tw1", _block_diag(tw1))
    w_slab, w_off = wp.finalize()

    # ------------- row-vector slab (f32 biases / LN / folded BN) -------------
    vp = _Packer(F32, row_align=1)
    star_b_all = (params["slot_b"] + params["shared_b"][None]).reshape(1, -1)
    _, skip_b, skip_g, skip_bt = params["skip_conn"][0]
    vp.add("b_in", jnp.concatenate([skip_b.reshape(1, -1), star_b_all], axis=1))
    vp.add("g_skip", skip_g.reshape(1, -1))
    vp.add("bt_skip", skip_bt.reshape(1, -1))
    _, smlp_b, smlp_g, smlp_bt = params["star_mlp"][0]
    vp.add("b_smlp", smlp_b.reshape(1, -1))
    vp.add("g_smlp", smlp_g.reshape(1, -1))
    vp.add("bt_smlp", smlp_bt.reshape(1, -1))
    vp.add("b_emb0", jnp.concatenate(
        [_concat_rows(params["expert"][0][1]),
         _concat_rows(params["dt_expert"][0][1]),
         _concat_rows(params["gate_b"])], axis=1))
    vp.add("g_exp0", _concat_rows(params["expert"][0][2]))
    vp.add("bt_exp0", _concat_rows(params["expert"][0][3]))
    vp.add("g_dt0", _concat_rows(params["dt_expert"][0][2]))
    vp.add("bt_dt0", _concat_rows(params["dt_expert"][0][3]))
    for li in range(1, len(e_dims) - 1):
        for tag, src in (("exp", params["expert"]), ("dt", params["dt_expert"])):
            _, bb, gg, bt_ = src[li]
            vp.add(f"b_{tag}{li}", _concat_rows(bb))
            vp.add(f"g_{tag}{li}", _concat_rows(gg))
            vp.add(f"bt_{tag}{li}", _concat_rows(bt_))
    vp.add("b_tw1", _concat_rows(tb1))
    # eval-mode BatchNorm folded into per-lane scale/shift (running stats)
    bn_scale = tbg / jnp.sqrt(params["tower_bn_var"] + BN_EPS)
    bn_shift = tbb - params["tower_bn_mean"] * bn_scale
    vp.add("bn_scale", _concat_rows(bn_scale))
    vp.add("bn_shift", _concat_rows(bn_shift))
    vp.add("b_tw2", tb2.reshape(1, -1))
    # precomputed "domain index of each lane" rows (avoid in-kernel iota / int mod)
    vp.add("star_dom", np.repeat(np.arange(dn), h1).astype(np.float32).reshape(1, -1))
    vp.add("out_dom", (np.arange(td) % dn).astype(np.float32).reshape(1, -1))
    v_slab, v_off = vp.finalize()

    # ------------- constant-matrix slab (f32, hoisted out of the kernel) -------------
    cp = _Packer(F32, row_align=8)
    sf = np.zeros((dn * h1, h1), np.float32)
    for d in range(dn):
        sf[d * h1:(d + 1) * h1, :] = np.eye(h1, dtype=np.float32)
    cp.add("star_fold", sf)
    gm_sizes = {(h2, h2)}
    for w in e_dims[1:]:
        gm_sizes.add((e_num * w, w))
        gm_sizes.add((td * w, w))
    for n_tot, grp in sorted(gm_sizes):
        cp.add(_gm_key(n_tot, grp), _group_mean_np(n_tot, grp))
    cp.add("softmax_sum", np.kron(np.eye(td, dtype=np.float32),
                                  np.ones((e_num, e_num), np.float32)))
    for e in range(e_num):
        em = np.zeros((td * e_num, td * do), np.float32)
        tm = np.zeros((e_num * do, td * do), np.float32)
        for i in range(td):
            em[i * e_num + e, i * do:(i + 1) * do] = 1.0
            tm[e * do:(e + 1) * do, i * do:(i + 1) * do] = np.eye(do, dtype=np.float32)
        cp.add(f"expand_{e}", em)
        cp.add(f"tile_{e}", tm)
    col_mask = (np.arange(td * do)[:, None] // do
                == np.arange(td)[None, :]).astype(np.float32)
    cp.add("gsum_w2", tw2.reshape(td * do, 1) * jnp.asarray(col_mask))   # fold tower W2
    cp.add("task_fold", (np.arange(td)[:, None] // dn
                         == np.arange(t_num)[None, :]).astype(np.float32))
    c_slab, c_off = cp.finalize()

    # ---------------------------- grid / pallas_call ----------------------------
    # Per-row working set is only a few KB, so TB=512 stays far below v5e's 16 MiB
    # scoped default and v7x's 64 MiB physical VMEM; raise for production batches.
    tb = min(b, 512)
    grid = (pl.cdiv(b, tb),)

    kernel = functools.partial(
        _fused_kernel, w_off=w_off, v_off=v_off, c_off=c_off,
        h1=h1, h2=h2, e_dims=tuple(e_dims),
        expert_num=e_num, domain_num=dn, task_num=t_num)

    def _nbytes(a):
        return a.size * a.dtype.itemsize

    cost = pl.CostEstimate(
        flops=int(2 * b * (wp.mac_elems + cp.mac_elems)),
        transcendentals=int(b * (td * e_num + td)),
        bytes_accessed=int(_nbytes(input_emb) + _nbytes(dom2d) + _nbytes(w_slab)
                           + _nbytes(v_slab) + _nbytes(c_slab) + b * t_num * 4))

    def _const_spec(arr):
        return pl.BlockSpec(arr.shape, lambda i: (0, 0))   # VMEM-resident across steps

    return pl.pallas_call(
        kernel,
        out_shape=jax.ShapeDtypeStruct((b, t_num), F32),
        grid=grid,
        in_specs=[pl.BlockSpec((tb, din), lambda i: (i, 0)),
                  pl.BlockSpec((tb, 1), lambda i: (i, 0)),
                  _const_spec(w_slab), _const_spec(v_slab), _const_spec(c_slab)],
        out_specs=pl.BlockSpec((tb, t_num), lambda i: (i, 0)),
        compiler_params=pltpu.CompilerParams(
            dimension_semantics=("parallel",),
            vmem_limit_bytes=32 * 1024 * 1024),
        cost_estimate=cost,
    )(input_emb, dom2d, w_slab, v_slab, c_slab)


# -------------------------------- parameter init --------------------------------

def _xavier(key, shape):
    fan_in, fan_out = shape[-2], shape[-1]
    bound = (6.0 / (fan_in + fan_out)) ** 0.5
    return jax.random.uniform(key, shape, F32, -bound, bound)


def _mlp_layers(key, n_stack, dims):
    layers = []
    for i in range(len(dims) - 1):
        key, k = jax.random.split(key)
        w = _xavier(k, (n_stack, dims[i], dims[i + 1]))
        b = jnp.zeros((n_stack, 1, dims[i + 1]), F32)
        g = jnp.ones((n_stack, 1, dims[i + 1]), F32)
        bt = jnp.zeros((n_stack, 1, dims[i + 1]), F32)
        layers.append((w, b, g, bt))
    return layers


def init_params(key, cfg):
    nf, ed, vocab = cfg["num_fields"], cfg["embed_dim"], cfg["vocab"]
    d_num, t_num, e_num = cfg["domain_num"], cfg["task_num"], cfg["expert_num"]
    td = d_num * t_num
    input_dim = nf * ed
    fcn_dim = [input_dim] + cfg["fcn_dims"]
    star_dim = fcn_dim[:3]
    rest_dim = fcn_dim[3:]          # expert/gate input width must equal star_dim[2]

    keys = list(jax.random.split(key, 16))
    params = {}
    params["emb_tables"] = [
        0.1 * jax.random.normal(k, (vocab, ed), F32)
        for k in jax.random.split(keys[0], nf)
    ]
    params["shared_w"] = _xavier(keys[1], (star_dim[0], star_dim[1]))
    params["shared_b"] = jnp.zeros((1, star_dim[1]), F32)
    params["slot_w"] = _xavier(keys[2], (d_num, star_dim[0], star_dim[1]))
    params["slot_b"] = jnp.zeros((d_num, 1, star_dim[1]), F32)
    params["skip_conn"] = _mlp_layers(keys[3], 1, [star_dim[0], star_dim[2]])
    params["star_mlp"] = _mlp_layers(keys[4], 1, [star_dim[1], star_dim[2]])
    params["expert"] = _mlp_layers(keys[5], e_num, rest_dim)
    params["dt_expert"] = _mlp_layers(keys[6], td, rest_dim)
    params["gate_w"] = _xavier(keys[7], (td, rest_dim[0], e_num))
    params["gate_b"] = jnp.zeros((td, 1, e_num), F32)
    dl = rest_dim[-1]
    params["tower"] = (
        _xavier(keys[8], (td, dl, dl)),        # W1
        jnp.zeros((td, 1, dl), F32),           # b1
        jnp.ones((td, 1, dl), F32),            # BN gamma
        jnp.zeros((td, 1, dl), F32),           # BN beta
        _xavier(keys[9], (td, dl, 1)),         # W2
        jnp.zeros((td, 1, 1), F32),            # b2
    )
    # eval-mode BatchNorm running statistics (fresh torch init: mean 0, var 1)
    params["tower_bn_mean"] = jnp.zeros((td, 1, dl), F32)
    params["tower_bn_var"] = jnp.ones((td, 1, dl), F32)
    return params


# ------------------------------------- main -------------------------------------

if __name__ == "__main__":
    cfg = dict(
        domain_num=3, task_num=2, expert_num=4,
        num_fields=4, embed_dim=8, vocab=10, batch=16,
        # STAR gets the first 3 dims (with input_dim prepended); the remaining
        # [32, 32, 32] makes each expert / dt_expert a 2-layer MLP_N.
        fcn_dims=[32, 32, 32, 32, 32],
    )
    key = jax.random.PRNGKey(0)
    pkey, xkey, dkey = jax.random.split(key, 3)
    params = init_params(pkey, cfg)

    feat_ids = jax.random.randint(
        xkey, (cfg["num_fields"], cfg["batch"]), 0, cfg["vocab"], dtype=jnp.int32)
    dom_ids = jax.random.randint(
        dkey, (1, cfg["batch"]), 0, cfg["domain_num"], dtype=jnp.int32)
    x = jnp.concatenate([feat_ids, dom_ids], axis=0)     # (num_fields + 1, batch)

    fwd = jax.jit(functools.partial(mtmd_forward, cfg=cfg))
    result = fwd(x, params)
    jax.block_until_ready(result)
    assert result.shape == (cfg["batch"], cfg["task_num"]), result.shape
    assert bool(jnp.all(jnp.isfinite(result)))
    print("KERNEL_OK")
</pallas_src>

<mosaic_0001>
module attributes {stable_mosaic.version = 11 : i64} {
  func.func @_fused_kernel(%arg0: i32, %arg1: memref<16x32xf32, #tpu.memory_space<vmem>>, %arg2: memref<16x1xf32, #tpu.memory_space<vmem>>, %arg3: memref<608x384xbf16, #tpu.memory_space<vmem>>, %arg4: memref<24x384xf32, #tpu.memory_space<vmem>>, %arg5: memref<1280x256xf32, #tpu.memory_space<vmem>>, %arg6: memref<16x2xf32, #tpu.memory_space<vmem>>) attributes {dimension_semantics = [#tpu.dimension_semantics<parallel>], iteration_bounds = array<i64: 1>, scalar_prefetch = 0 : i64, scratch_operands = 0 : i64, tpu.core_type = #tpu.core_type<tc>, window_params = [{transform_indices = @transform_0, window_bounds = array<i64: 16, 32>}, {transform_indices = @transform_1, window_bounds = array<i64: 16, 1>}, {pipeline_mode = #tpu.pipeline_mode<synchronous>, transform_indices = @transform_2, window_bounds = array<i64: 608, 384>}, {pipeline_mode = #tpu.pipeline_mode<synchronous>, transform_indices = @transform_3, window_bounds = array<i64: 24, 384>}, {pipeline_mode = #tpu.pipeline_mode<synchronous>, transform_indices = @transform_4, window_bounds = array<i64: 1280, 256>}, {transform_indices = @transform_5, window_bounds = array<i64: 16, 2>}]} {
    %c0 = arith.constant 0 : index
    %c0_0 = arith.constant 0 : index
    %0 = vector.load %arg1[%c0, %c0_0] : memref<16x32xf32, #tpu.memory_space<vmem>>, vector<16x32xf32>
    %1 = arith.truncf %0 : vector<16x32xf32> to vector<16x32xbf16>
    %c0_1 = arith.constant 0 : index
    %c0_2 = arith.constant 0 : index
    %2 = vector.load %arg2[%c0_1, %c0_2] : memref<16x1xf32, #tpu.memory_space<vmem>>, vector<16x1xf32>
    %c0_3 = arith.constant 0 : index
    %c0_4 = arith.constant 0 : index
    %3 = vector.load %arg3[%c0_3, %c0_4] : memref<608x384xbf16, #tpu.memory_space<vmem>>, vector<32x128xbf16>
    %cst = arith.constant dense<0.000000e+00> : vector<16x128xf32>
    %4 = tpu.matmul %1, %3, %cst {dimension_numbers = #tpu.dot_dimension_numbers<[1], [0], [0], [1], [0, 0, 1, 1], [], []>} : vector<16x32xbf16>, vector<32x128xbf16>, vector<16x128xf32> -> vector<16x128xf32>
    %c0_5 = arith.constant 0 : index
    %c0_6 = arith.constant 0 : index
    %5 = vector.load %arg4[%c0_5, %c0_6] : memref<24x384xf32, #tpu.memory_space<vmem>>, vector<1x128xf32>
    %6 = vector.broadcast %5 : vector<1x128xf32> to vector<16x128xf32>
    %7 = arith.addf %4, %6 : vector<16x128xf32>
    %8 = vector.extract_strided_slice %7 {offsets = [0, 0], sizes = [16, 32], strides = [1, 1]} : vector<16x128xf32> to vector<16x32xf32>
    %c1 = arith.constant 1 : index
    %c0_7 = arith.constant 0 : index
    %9 = vector.load %arg4[%c1, %c0_7] : memref<24x384xf32, #tpu.memory_space<vmem>>, vector<1x32xf32>
    %c2 = arith.constant 2 : index
    %c0_8 = arith.constant 0 : index
    %10 = vector.load %arg4[%c2, %c0_8] : memref<24x384xf32, #tpu.memory_space<vmem>>, vector<1x32xf32>
    %c96 = arith.constant 96 : index
    %c0_9 = arith.constant 0 : index
    %11 = vector.load %arg5[%c96, %c0_9] : memref<1280x256xf32, #tpu.memory_space<vmem>>, vector<32x32xf32>
    %cst_10 = arith.constant dense<0.000000e+00> : vector<16x32xf32>
    %12 = tpu.matmul %8, %11, %cst_10 {dimension_numbers = #tpu.dot_dimension_numbers<[1], [0], [0], [1], [0, 0, 1, 1], [], []>} : vector<16x32xf32>, vector<32x32xf32>, vector<16x32xf32> -> vector<16x32xf32>
    %13 = arith.subf %8, %12 : vector<16x32xf32>
    %14 = arith.mulf %13, %13 : vector<16x32xf32>
    %cst_11 = arith.constant dense<0.000000e+00> : vector<16x32xf32>
    %15 = tpu.matmul %14, %11, %cst_11 {dimension_numbers = #tpu.dot_dimension_numbers<[1], [0], [0], [1], [0, 0, 1, 1], [], []>} : vector<16x32xf32>, vector<32x32xf32>, vector<16x32xf32> -> vector<16x32xf32>
    %cst_12 = arith.constant 9.99999974E-6 : f32
    %16 = vector.broadcast %cst_12 : f32 to vector<16x32xf32>
    %17 = arith.addf %15, %16 : vector<16x32xf32>
    %18 = math.rsqrt %17 : vector<16x32xf32>
    %19 = arith.mulf %13, %18 : vector<16x32xf32>
    %20 = vector.broadcast %9 : vector<1x32xf32> to vector<16x32xf32>
    %21 = arith.mulf %19, %20 : vector<16x32xf32>
    %22 = vector.broadcast %10 : vector<1x32xf32> to vector<16x32xf32>
    %23 = arith.addf %21, %22 : vector<16x32xf32>
    %cst_13 = arith.constant 0.000000e+00 : f32
    %24 = vector.broadcast %cst_13 : f32 to vector<16x32xf32>
    %25 = arith.maximumf %23, %24 : vector<16x32xf32>
    %26 = vector.extract_strided_slice %7 {offsets = [0, 32], sizes = [16, 96], strides = [1, 1]} : vector<16x128xf32> to vector<16x96xf32>
    %c21 = arith.constant 21 : index
    %c0_14 = arith.constant 0 : index
    %27 = vector.load %arg4[%c21, %c0_14] : memref<24x384xf32, #tpu.memory_space<vmem>>, vector<1x96xf32>
    %28 = vector.broadcast %27 : vector<1x96xf32> to vector<16x96xf32>
    %29 = vector.broadcast %2 : vector<16x1xf32> to vector<16x96xf32>
    %30 = arith.cmpf oeq, %28, %29 : vector<16x96xf32>
    %cst_15 = arith.constant 0.000000e+00 : f32
    %31 = vector.broadcast %cst_15 : f32 to vector<16x96xf32>
    %32 = arith.select %30, %26, %31 : vector<16x96xi1>, vector<16x96xf32>
    %c0_16 = arith.constant 0 : index
    %c0_17 = arith.constant 0 : index
    %33 = vector.load %arg5[%c0_16, %c0_17] : memref<1280x256xf32, #tpu.memory_space<vmem>>, vector<96x32xf32>
    %cst_18 = arith.constant dense<0.000000e+00> : vector<16x32xf32>
    %34 = tpu.matmul %32, %33, %cst_18 {dimension_numbers = #tpu.dot_dimension_numbers<[1], [0], [0], [1], [0, 0, 1, 1], [], []>} : vector<16x96xf32>, vector<96x32xf32>, vector<16x32xf32> -> vector<16x32xf32>
    %35 = arith.truncf %34 : vector<16x32xf32> to vector<16x32xbf16>
    %c32 = arith.constant 32 : index
    %c0_19 = arith.constant 0 : index
    %36 = vector.load %arg3[%c32, %c0_19] : memref<608x384xbf16, #tpu.memory_space<vmem>>, vector<32x32xbf16>
    %cst_20 = arith.constant dense<0.000000e+00> : vector<16x32xf32>
    %37 = tpu.matmul %35, %36, %cst_20 {dimension_numbers = #tpu.dot_dimension_numbers<[1], [0], [0], [1], [0, 0, 1, 1], [], []>} : vector<16x32xbf16>, vector<32x32xbf16>, vector<16x32xf32> -> vector<16x32xf32>
    %c3 = arith.constant 3 : index
    %c0_21 = arith.constant 0 : index
    %38 = vector.load %arg4[%c3, %c0_21] : memref<24x384xf32, #tpu.memory_space<vmem>>, vector<1x32xf32>
    %39 = vector.broadcast %38 : vector<1x32xf32> to vector<16x32xf32>
    %40 = arith.addf %37, %39 : vector<16x32xf32>
    %c4 = arith.constant 4 : index
    %c0_22 = arith.constant 0 : index
    %41 = vector.load %arg4[%c4, %c0_22] : memref<24x384xf32, #tpu.memory_space<vmem>>, vector<1x32xf32>
    %c5 = arith.constant 5 : index
    %c0_23 = arith.constant 0 : index
    %42 = vector.load %arg4[%c5, %c0_23] : memref<24x384xf32, #tpu.memory_space<vmem>>, vector<1x32xf32>
    %c96_24 = arith.constant 96 : index
    %c0_25 = arith.constant 0 : index
    %43 = vector.load %arg5[%c96_24, %c0_25] : memref<1280x256xf32, #tpu.memory_space<vmem>>, vector<32x32xf32>
    %cst_26 = arith.constant dense<0.000000e+00> : vector<16x32xf32>
    %44 = tpu.matmul %40, %43, %cst_26 {dimension_numbers = #tpu.dot_dimension_numbers<[1], [0], [0], [1], [0, 0, 1, 1], [], []>} : vector<16x32xf32>, vector<32x32xf32>, vector<16x32xf32> -> vector<16x32xf32>
    %45 = arith.subf %40, %44 : vector<16x32xf32>
    %46 = arith.mulf %45, %45 : vector<16x32xf32>
    %cst_27 = arith.constant dense<0.000000e+00> : vector<16x32xf32>
    %47 = tpu.matmul %46, %43, %cst_27 {dimension_numbers = #tpu.dot_dimension_numbers<[1], [0], [0], [1], [0, 0, 1, 1], [], []>} : vector<16x32xf32>, vector<32x32xf32>, vector<16x32xf32> -> vector<16x32xf32>
    %cst_28 = arith.constant 9.99999974E-6 : f32
    %48 = vector.broadcast %cst_28 : f32 to vector<16x32xf32>
    %49 = arith.addf %47, %48 : vector<16x32xf32>
    %50 = math.rsqrt %49 : vector<16x32xf32>
    %51 = arith.mulf %45, %50 : vector<16x32xf32>
    %52 = vector.broadcast %41 : vector<1x32xf32> to vector<16x32xf32>
    %53 = arith.mulf %51, %52 : vector<16x32xf32>
    %54 = vector.broadcast %42 : vector<1x32xf32> to vector<16x32xf32>
    %55 = arith.addf %53, %54 : vector<16x32xf32>
    %cst_29 = arith.constant 0.000000e+00 : f32
    %56 = vector.broadcast %cst_29 : f32 to vector<16x32xf32>
    %57 = arith.maximumf %55, %56 : vector<16x32xf32>
    %58 = arith.addf %57, %25 : vector<16x32xf32>
    %59 = arith.truncf %58 : vector<16x32xf32> to vector<16x32xbf16>
    %c64 = arith.constant 64 : index
    %c0_30 = arith.constant 0 : index
    %60 = vector.load %arg3[%c64, %c0_30] : memref<608x384xbf16, #tpu.memory_space<vmem>>, vector<32x344xbf16>
    %cst_31 = arith.constant dense<0.000000e+00> : vector<16x344xf32>
    %61 = tpu.matmul %59, %60, %cst_31 {dimension_numbers = #tpu.dot_dimension_numbers<[1], [0], [0], [1], [0, 0, 1, 1], [], []>} : vector<16x32xbf16>, vector<32x344xbf16>, vector<16x344xf32> -> vector<16x344xf32>
    %c6 = arith.constant 6 : index
    %c0_32 = arith.constant 0 : index
    %62 = vector.load %arg4[%c6, %c0_32] : memref<24x384xf32, #tpu.memory_space<vmem>>, vector<1x344xf32>
    %63 = vector.broadcast %62 : vector<1x344xf32> to vector<16x344xf32>
    %64 = arith.addf %61, %63 : vector<16x344xf32>
    %65 = vector.extract_strided_slice %64 {offsets = [0, 0], sizes = [16, 128], strides = [1, 1]} : vector<16x344xf32> to vector<16x128xf32>
    %c7 = arith.constant 7 : index
    %c0_33 = arith.constant 0 : index
    %66 = vector.load %arg4[%c7, %c0_33] : memref<24x384xf32, #tpu.memory_space<vmem>>, vector<1x128xf32>
    %c8 = arith.constant 8 : index
    %c0_34 = arith.constant 0 : index
    %67 = vector.load %arg4[%c8, %c0_34] : memref<24x384xf32, #tpu.memory_space<vmem>>, vector<1x128xf32>
    %c128 = arith.constant 128 : index
    %c0_35 = arith.constant 0 : index
    %68 = vector.load %arg5[%c128, %c0_35] : memref<1280x256xf32, #tpu.memory_space<vmem>>, vector<128x128xf32>
    %cst_36 = arith.constant dense<0.000000e+00> : vector<16x128xf32>
    %69 = tpu.matmul %65, %68, %cst_36 {dimension_numbers = #tpu.dot_dimension_numbers<[1], [0], [0], [1], [0, 0, 1, 1], [], []>} : vector<16x128xf32>, vector<128x128xf32>, vector<16x128xf32> -> vector<16x128xf32>
    %70 = arith.subf %65, %69 : vector<16x128xf32>
    %71 = arith.mulf %70, %70 : vector<16x128xf32>
    %cst_37 = arith.constant dense<0.000000e+00> : vector<16x128xf32>
    %72 = tpu.matmul %71, %68, %cst_37 {dimension_numbers = #tpu.dot_dimension_numbers<[1], [0], [0], [1], [0, 0, 1, 1], [], []>} : vector<16x128xf32>, vector<128x128xf32>, vector<16x128xf32> -> vector<16x128xf32>
    %cst_38 = arith.constant 9.99999974E-6 : f32
    %73 = vector.broadcast %cst_38 : f32 to vector<16x128xf32>
    %74 = arith.addf %72, %73 : vector<16x128xf32>
    %75 = math.rsqrt %74 : vector<16x128xf32>
    %76 = arith.mulf %70, %75 : vector<16x128xf32>
    %77 = vector.broadcast %66 : vector<1x128xf32> to vector<16x128xf32>
    %78 = arith.mulf %76, %77 : vector<16x128xf32>
    %79 = vector.broadcast %67 : vector<1x128xf32> to vector<16x128xf32>
    %80 = arith.addf %78, %79 : vector<16x128xf32>
    %cst_39 = arith.constant 0.000000e+00 : f32
    %81 = vector.broadcast %cst_39 : f32 to vector<16x128xf32>
    %82 = arith.maximumf %80, %81 : vector<16x128xf32>
    %83 = vector.extract_strided_slice %64 {offsets = [0, 128], sizes = [16, 192], strides = [1, 1]} : vector<16x344xf32> to vector<16x192xf32>
    %c9 = arith.constant 9 : index
    %c0_40 = arith.constant 0 : index
    %84 = vector.load %arg4[%c9, %c0_40] : memref<24x384xf32, #tpu.memory_space<vmem>>, vector<1x192xf32>
    %c10 = arith.constant 10 : index
    %c0_41 = arith.constant 0 : index
    %85 = vector.load %arg4[%c10, %c0_41] : memref<24x384xf32, #tpu.memory_space<vmem>>, vector<1x192xf32>
    %c256 = arith.constant 256 : index
    %c0_42 = arith.constant 0 : index
    %86 = vector.load %arg5[%c256, %c0_42] : memref<1280x256xf32, #tpu.memory_space<vmem>>, vector<192x192xf32>
    %cst_43 = arith.constant dense<0.000000e+00> : vector<16x192xf32>
    %87 = tpu.matmul %83, %86, %cst_43 {dimension_numbers = #tpu.dot_dimension_numbers<[1], [0], [0], [1], [0, 0, 1, 1], [], []>} : vector<16x192xf32>, vector<192x192xf32>, vector<16x192xf32> -> vector<16x192xf32>
    %88 = arith.subf %83, %87 : vector<16x192xf32>
    %89 = arith.mulf %88, %88 : vector<16x192xf32>
    %cst_44 = arith.constant dense<0.000000e+00> : vector<16x192xf32>
    %90 = tpu.matmul %89, %86, %cst_44 {dimension_numbers = #tpu.dot_dimension_numbers<[1], [0], [0], [1], [0, 0, 1, 1], [], []>} : vector<16x192xf32>, vector<192x192xf32>, vector<16x192xf32> -> vector<16x192xf32>
    %cst_45 = arith.constant 9.99999974E-6 : f32
    %91 = vector.broadcast %cst_45 : f32 to vector<16x192xf32>
    %92 = arith.addf %90, %91 : vector<16x192xf32>
    %93 = math.rsqrt %92 : vector<16x192xf32>
    %94 = arith.mulf %88, %93 : vector<16x192xf32>
    %95 = vector.broadcast %84 : vector<1x192xf32> to vector<16x192xf32>
    %96 = arith.mulf %94, %95 : vector<16x192xf32>
    %97 = vector.broadcast %85 : vector<1x192xf32> to vector<16x192xf32>
    %98 = arith.addf %96, %97 : vector<16x192xf32>
    %cst_46 = arith.constant 0.000000e+00 : f32
    %99 = vector.broadcast %cst_46 : f32 to vector<16x192xf32>
    %100 = arith.maximumf %98, %99 : vector<16x192xf32>
    %101 = vector.extract_strided_slice %64 {offsets = [0, 320], sizes = [16, 24], strides = [1, 1]} : vector<16x344xf32> to vector<16x24xf32>
    %102 = arith.truncf %82 : vector<16x128xf32> to vector<16x128xbf16>
    %c96_47 = arith.constant 96 : index
    %c0_48 = arith.constant 0 : index
    %103 = vector.load %arg3[%c96_47, %c0_48] : memref<608x384xbf16, #tpu.memory_space<vmem>>, vector<128x128xbf16>
    %cst_49 = arith.constant dense<0.000000e+00> : vector<16x128xf32>
    %104 = tpu.matmul %102, %103, %cst_49 {dimension_numbers = #tpu.dot_dimension_numbers<[1], [0], [0], [1], [0, 0, 1, 1], [], []>} : vector<16x128xbf16>, vector<128x128xbf16>, vector<16x128xf32> -> vector<16x128xf32>
    %c11 = arith.constant 11 : index
    %c0_50 = arith.constant 0 : index
    %105 = vector.load %arg4[%c11, %c0_50] : memref<24x384xf32, #tpu.memory_space<vmem>>, vector<1x128xf32>
    %106 = vector.broadcast %105 : vector<1x128xf32> to vector<16x128xf32>
    %107 = arith.addf %104, %106 : vector<16x128xf32>
    %c12 = arith.constant 12 : index
    %c0_51 = arith.constant 0 : index
    %108 = vector.load %arg4[%c12, %c0_51] : memref<24x384xf32, #tpu.memory_space<vmem>>, vector<1x128xf32>
    %c13 = arith.constant 13 : index
    %c0_52 = arith.constant 0 : index
    %109 = vector.load %arg4[%c13, %c0_52] : memref<24x384xf32, #tpu.memory_space<vmem>>, vector<1x128xf32>
    %c128_53 = arith.constant 128 : index
    %c0_54 = arith.constant 0 : index
    %110 = vector.load %arg5[%c128_53, %c0_54] : memref<1280x256xf32, #tpu.memory_space<vmem>>, vector<128x128xf32>
    %cst_55 = arith.constant dense<0.000000e+00> : vector<16x128xf32>
    %111 = tpu.matmul %107, %110, %cst_55 {dimension_numbers = #tpu.dot_dimension_numbers<[1], [0], [0], [1], [0, 0, 1, 1], [], []>} : vector<16x128xf32>, vector<128x128xf32>, vector<16x128xf32> -> vector<16x128xf32>
    %112 = arith.subf %107, %111 : vector<16x128xf32>
    %113 = arith.mulf %112, %112 : vector<16x128xf32>
    %cst_56 = arith.constant dense<0.000000e+00> : vector<16x128xf32>
    %114 = tpu.matmul %113, %110, %cst_56 {dimension_numbers = #tpu.dot_dimension_numbers<[1], [0], [0], [1], [0, 0, 1, 1], [], []>} : vector<16x128xf32>, vector<128x128xf32>, vector<16x128xf32> -> vector<16x128xf32>
    %cst_57 = arith.constant 9.99999974E-6 : f32
    %115 = vector.broadcast %cst_57 : f32 to vector<16x128xf32>
    %116 = arith.addf %114, %115 : vector<16x128xf32>
    %117 = math.rsqrt %116 : vector<16x128xf32>
    %118 = arith.mulf %112, %117 : vector<16x128xf32>
    %119 = vector.broadcast %108 : vector<1x128xf32> to vector<16x128xf32>
    %120 = arith.mulf %118, %119 : vector<16x128xf32>
    %121 = vector.broadcast %109 : vector<1x128xf32> to vector<16x128xf32>
    %122 = arith.addf %120, %121 : vector<16x128xf32>
    %cst_58 = arith.constant 0.000000e+00 : f32
    %123 = vector.broadcast %cst_58 : f32 to vector<16x128xf32>
    %124 = arith.maximumf %122, %123 : vector<16x128xf32>
    %125 = arith.truncf %100 : vector<16x192xf32> to vector<16x192xbf16>
    %c224 = arith.constant 224 : index
    %c0_59 = arith.constant 0 : index
    %126 = vector.load %arg3[%c224, %c0_59] : memref<608x384xbf16, #tpu.memory_space<vmem>>, vector<192x192xbf16>
    %cst_60 = arith.constant dense<0.000000e+00> : vector<16x192xf32>
    %127 = tpu.matmul %125, %126, %cst_60 {dimension_numbers = #tpu.dot_dimension_numbers<[1], [0], [0], [1], [0, 0, 1, 1], [], []>} : vector<16x192xbf16>, vector<192x192xbf16>, vector<16x192xf32> -> vector<16x192xf32>
    %c14 = arith.constant 14 : index
    %c0_61 = arith.constant 0 : index
    %128 = vector.load %arg4[%c14, %c0_61] : memref<24x384xf32, #tpu.memory_space<vmem>>, vector<1x192xf32>
    %129 = vector.broadcast %128 : vector<1x192xf32> to vector<16x192xf32>
    %130 = arith.addf %127, %129 : vector<16x192xf32>
    %c15 = arith.constant 15 : index
    %c0_62 = arith.constant 0 : index
    %131 = vector.load %arg4[%c15, %c0_62] : memref<24x384xf32, #tpu.memory_space<vmem>>, vector<1x192xf32>
    %c16 = arith.constant 16 : index
    %c0_63 = arith.constant 0 : index
    %132 = vector.load %arg4[%c16, %c0_63] : memref<24x384xf32, #tpu.memory_space<vmem>>, vector<1x192xf32>
    %c256_64 = arith.constant 256 : index
    %c0_65 = arith.constant 0 : index
    %133 = vector.load %arg5[%c256_64, %c0_65] : memref<1280x256xf32, #tpu.memory_space<vmem>>, vector<192x192xf32>
    %cst_66 = arith.constant dense<0.000000e+00> : vector<16x192xf32>
    %134 = tpu.matmul %130, %133, %cst_66 {dimension_numbers = #tpu.dot_dimension_numbers<[1], [0], [0], [1], [0, 0, 1, 1], [], []>} : vector<16x192xf32>, vector<192x192xf32>, vector<16x192xf32> -> vector<16x192xf32>
    %135 = arith.subf %130, %134 : vector<16x192xf32>
    %136 = arith.mulf %135, %135 : vector<16x192xf32>
    %cst_67 = arith.constant dense<0.000000e+00> : vector<16x192xf32>
    %137 = tpu.matmul %136, %133, %cst_67 {dimension_numbers = #tpu.dot_dimension_numbers<[1], [0], [0], [1], [0, 0, 1, 1], [], []>} : vector<16x192xf32>, vector<192x192xf32>, vector<16x192xf32> -> vector<16x192xf32>
    %cst_68 = arith.constant 9.99999974E-6 : f32
    %138 = vector.broadcast %cst_68 : f32 to vector<16x192xf32>
    %139 = arith.addf %137, %138 : vector<16x192xf32>
    %140 = math.rsqrt %139 : vector<16x192xf32>
    %141 = arith.mulf %135, %140 : vector<16x192xf32>
    %142 = vector.broadcast %131 : vector<1x192xf32> to vector<16x192xf32>
    %143 = arith.mulf %141, %142 : vector<16x192xf32>
    %144 = vector.broadcast %132 : vector<1x192xf32> to vector<16x192xf32>
    %145 = arith.addf %143, %144 : vector<16x192xf32>
    %cst_69 = arith.constant 0.000000e+00 : f32
    %146 = vector.broadcast %cst_69 : f32 to vector<16x192xf32>
    %147 = arith.maximumf %145, %146 : vector<16x192xf32>
    %148 = math.exp %101 : vector<16x24xf32>
    %c448 = arith.constant 448 : index
    %c0_70 = arith.constant 0 : index
    %149 = vector.load %arg5[%c448, %c0_70] : memref<1280x256xf32, #tpu.memory_space<vmem>>, vector<24x24xf32>
    %cst_71 = arith.constant dense<0.000000e+00> : vector<16x24xf32>
    %150 = tpu.matmul %148, %149, %cst_71 {dimension_numbers = #tpu.dot_dimension_numbers<[1], [0], [0], [1], [0, 0, 1, 1], [], []>} : vector<16x24xf32>, vector<24x24xf32>, vector<16x24xf32> -> vector<16x24xf32>
    %151 = tpu.reciprocal %150 {approx = true} : vector<16x24xf32> -> vector<16x24xf32>
    %152 = arith.mulf %148, %151 : vector<16x24xf32>
    %c472 = arith.constant 472 : index
    %c0_72 = arith.constant 0 : index
    %153 = vector.load %arg5[%c472, %c0_72] : memref<1280x256xf32, #tpu.memory_space<vmem>>, vector<24x192xf32>
    %cst_73 = arith.constant dense<0.000000e+00> : vector<16x192xf32>
    %154 = tpu.matmul %152, %153, %cst_73 {dimension_numbers = #tpu.dot_dimension_numbers<[1], [0], [0], [1], [0, 0, 1, 1], [], []>} : vector<16x24xf32>, vector<24x192xf32>, vector<16x192xf32> -> vector<16x192xf32>
    %c496 = arith.constant 496 : index
    %c0_74 = arith.constant 0 : index
    %155 = vector.load %arg5[%c496, %c0_74] : memref<1280x256xf32, #tpu.memory_space<vmem>>, vector<128x192xf32>
    %cst_75 = arith.constant dense<0.000000e+00> : vector<16x192xf32>
    %156 = tpu.matmul %124, %155, %cst_75 {dimension_numbers = #tpu.dot_dimension_numbers<[1], [0], [0], [1], [0, 0, 1, 1], [], []>} : vector<16x128xf32>, vector<128x192xf32>, vector<16x192xf32> -> vector<16x192xf32>
    %157 = arith.mulf %154, %156 : vector<16x192xf32>
    %158 = arith.addf %147, %157 : vector<16x192xf32>
    %c624 = arith.constant 624 : index
    %c0_76 = arith.constant 0 : index
    %159 = vector.load %arg5[%c624, %c0_76] : memref<1280x256xf32, #tpu.memory_space<vmem>>, vector<24x192xf32>
    %cst_77 = arith.constant dense<0.000000e+00> : vector<16x192xf32>
    %160 = tpu.matmul %152, %159, %cst_77 {dimension_numbers = #tpu.dot_dimension_numbers<[1], [0], [0], [1], [0, 0, 1, 1], [], []>} : vector<16x24xf32>, vector<24x192xf32>, vector<16x192xf32> -> vector<16x192xf32>
    %c648 = arith.constant 648 : index
    %c0_78 = arith.constant 0 : index
    %161 = vector.load %arg5[%c648, %c0_78] : memref<1280x256xf32, #tpu.memory_space<vmem>>, vector<128x192xf32>
    %cst_79 = arith.constant dense<0.000000e+00> : vector<16x192xf32>
    %162 = tpu.matmul %124, %161, %cst_79 {dimension_numbers = #tpu.dot_dimension_numbers<[1], [0], [0], [1], [0, 0, 1, 1], [], []>} : vector<16x128xf32>, vector<128x192xf32>, vector<16x192xf32> -> vector<16x192xf32>
    %163 = arith.mulf %160, %162 : vector<16x192xf32>
    %164 = arith.addf %158, %163 : vector<16x192xf32>
    %c776 = arith.constant 776 : index
    %c0_80 = arith.constant 0 : index
    %165 = vector.load %arg5[%c776, %c0_80] : memref<1280x256xf32, #tpu.memory_space<vmem>>, vector<24x192xf32>
    %cst_81 = arith.constant dense<0.000000e+00> : vector<16x192xf32>
    %166 = tpu.matmul %152, %165, %cst_81 {dimension_numbers = #tpu.dot_dimension_numbers<[1], [0], [0], [1], [0, 0, 1, 1], [], []>} : vector<16x24xf32>, vector<24x192xf32>, vector<16x192xf32> -> vector<16x192xf32>
    %c800 = arith.constant 800 : index
    %c0_82 = arith.constant 0 : index
    %167 = vector.load %arg5[%c800, %c0_82] : memref<1280x256xf32, #tpu.memory_space<vmem>>, vector<128x192xf32>
    %cst_83 = arith.constant dense<0.000000e+00> : vector<16x192xf32>
    %168 = tpu.matmul %124, %167, %cst_83 {dimension_numbers = #tpu.dot_dimension_numbers<[1], [0], [0], [1], [0, 0, 1, 1], [], []>} : vector<16x128xf32>, vector<128x192xf32>, vector<16x192xf32> -> vector<16x192xf32>
    %169 = arith.mulf %166, %168 : vector<16x192xf32>
    %170 = arith.addf %164, %169 : vector<16x192xf32>
    %c928 = arith.constant 928 : index
    %c0_84 = arith.constant 0 : index
    %171 = vector.load %arg5[%c928, %c0_84] : memref<1280x256xf32, #tpu.memory_space<vmem>>, vector<24x192xf32>
    %cst_85 = arith.constant dense<0.000000e+00> : vector<16x192xf32>
    %172 = tpu.matmul %152, %171, %cst_85 {dimension_numbers = #tpu.dot_dimension_numbers<[1], [0], [0], [1], [0, 0, 1, 1], [], []>} : vector<16x24xf32>, vector<24x192xf32>, vector<16x192xf32> -> vector<16x192xf32>
    %c952 = arith.constant 952 : index
    %c0_86 = arith.constant 0 : index
    %173 = vector.load %arg5[%c952, %c0_86] : memref<1280x256xf32, #tpu.memory_space<vmem>>, vector<128x192xf32>
    %cst_87 = arith.constant dense<0.000000e+00> : vector<16x192xf32>
    %174 = tpu.matmul %124, %173, %cst_87 {dimension_numbers = #tpu.dot_dimension_numbers<[1], [0], [0], [1], [0, 0, 1, 1], [], []>} : vector<16x128xf32>, vector<128x192xf32>, vector<16x192xf32> -> vector<16x192xf32>
    %175 = arith.mulf %172, %174 : vector<16x192xf32>
    %176 = arith.addf %170, %175 : vector<16x192xf32>
    %177 = arith.truncf %176 : vector<16x192xf32> to vector<16x192xbf16>
    %c416 = arith.constant 416 : index
    %c0_88 = arith.constant 0 : index
    %178 = vector.load %arg3[%c416, %c0_88] : memref<608x384xbf16, #tpu.memory_space<vmem>>, vector<192x192xbf16>
    %cst_89 = arith.constant dense<0.000000e+00> : vector<16x192xf32>
    %179 = tpu.matmul %177, %178, %cst_89 {dimension_numbers = #tpu.dot_dimension_numbers<[1], [0], [0], [1], [0, 0, 1, 1], [], []>} : vector<16x192xbf16>, vector<192x192xbf16>, vector<16x192xf32> -> vector<16x192xf32>
    %c17 = arith.constant 17 : index
    %c0_90 = arith.constant 0 : index
    %180 = vector.load %arg4[%c17, %c0_90] : memref<24x384xf32, #tpu.memory_space<vmem>>, vector<1x192xf32>
    %181 = vector.broadcast %180 : vector<1x192xf32> to vector<16x192xf32>
    %182 = arith.addf %179, %181 : vector<16x192xf32>
    %c18 = arith.constant 18 : index
    %c0_91 = arith.constant 0 : index
    %183 = vector.load %arg4[%c18, %c0_91] : memref<24x384xf32, #tpu.memory_space<vmem>>, vector<1x192xf32>
    %184 = vector.broadcast %183 : vector<1x192xf32> to vector<16x192xf32>
    %185 = arith.mulf %182, %184 : vector<16x192xf32>
    %c19 = arith.constant 19 : index
    %c0_92 = arith.constant 0 : index
    %186 = vector.load %arg4[%c19, %c0_92] : memref<24x384xf32, #tpu.memory_space<vmem>>, vector<1x192xf32>
    %187 = vector.broadcast %186 : vector<1x192xf32> to vector<16x192xf32>
    %188 = arith.addf %185, %187 : vector<16x192xf32>
    %cst_93 = arith.constant 0.000000e+00 : f32
    %189 = vector.broadcast %cst_93 : f32 to vector<16x192xf32>
    %190 = arith.maximumf %188, %189 : vector<16x192xf32>
    %c1080 = arith.constant 1080 : index
    %c0_94 = arith.constant 0 : index
    %191 = vector.load %arg5[%c1080, %c0_94] : memref<1280x256xf32, #tpu.memory_space<vmem>>, vector<192x6xf32>
    %cst_95 = arith.constant dense<0.000000e+00> : vector<16x6xf32>
    %192 = tpu.matmul %190, %191, %cst_95 {dimension_numbers = #tpu.dot_dimension_numbers<[1], [0], [0], [1], [0, 0, 1, 1], [], []>} : vector<16x192xf32>, vector<192x6xf32>, vector<16x6xf32> -> vector<16x6xf32>
    %c20 = arith.constant 20 : index
    %c0_96 = arith.constant 0 : index
    %193 = vector.load %arg4[%c20, %c0_96] : memref<24x384xf32, #tpu.memory_space<vmem>>, vector<1x6xf32>
    %194 = vector.broadcast %193 : vector<1x6xf32> to vector<16x6xf32>
    %195 = arith.addf %192, %194 : vector<16x6xf32>
    %196 = arith.negf %195 : vector<16x6xf32>
    %197 = math.exp %196 : vector<16x6xf32>
    %cst_97 = arith.constant 1.000000e+00 : f32
    %198 = vector.broadcast %cst_97 : f32 to vector<16x6xf32>
    %199 = arith.addf %198, %197 : vector<16x6xf32>
    %200 = arith.divf %198, %199 : vector<16x6xf32>
    %c22 = arith.constant 22 : index
    %c0_98 = arith.constant 0 : index
    %201 = vector.load %arg4[%c22, %c0_98] : memref<24x384xf32, #tpu.memory_space<vmem>>, vector<1x6xf32>
    %202 = vector.broadcast %201 : vector<1x6xf32> to vector<16x6xf32>
    %203 = vector.broadcast %2 : vector<16x1xf32> to vector<16x6xf32>
    %204 = arith.cmpf oeq, %202, %203 : vector<16x6xf32>
    %cst_99 = arith.constant 0.000000e+00 : f32
    %205 = vector.broadcast %cst_99 : f32 to vector<16x6xf32>
    %206 = arith.select %204, %200, %205 : vector<16x6xi1>, vector<16x6xf32>
    %c1272 = arith.constant 1272 : index
    %c0_100 = arith.constant 0 : index
    %207 = vector.load %arg5[%c1272, %c0_100] : memref<1280x256xf32, #tpu.memory_space<vmem>>, vector<6x2xf32>
    %cst_101 = arith.constant dense<0.000000e+00> : vector<16x2xf32>
    %208 = tpu.matmul %206, %207, %cst_101 {dimension_numbers = #tpu.dot_dimension_numbers<[1], [0], [0], [1], [0, 0, 1, 1], [], []>} : vector<16x6xf32>, vector<6x2xf32>, vector<16x2xf32> -> vector<16x2xf32>
    %c0_102 = arith.constant 0 : index
    %c0_103 = arith.constant 0 : index
    %209 = vector.load %arg6[%c0_102, %c0_103] : memref<16x2xf32, #tpu.memory_space<vmem>>, vector<16x2xf32>
    tpu.vector_store %arg6[%c0_102, %c0_103], %208 {strides = array<i32>} : memref<16x2xf32, #tpu.memory_space<vmem>>, vector<16x2xf32>,
    return
  }
  func.func @transform_0(%arg0: i32) -> (i32, i32) {
    %c0_i32 = arith.constant 0 : i32
    %c0_i32_0 = arith.constant 0 : i32
    return %arg0, %c0_i32 : i32, i32
  }
  func.func @transform_1(%arg0: i32) -> (i32, i32) {
    %c0_i32 = arith.constant 0 : i32
    %c0_i32_0 = arith.constant 0 : i32
    return %arg0, %c0_i32 : i32, i32
  }
  func.func @transform_2(%arg0: i32) -> (i32, i32) {
    %c0_i32 = arith.constant 0 : i32
    %c0_i32_0 = arith.constant 0 : i32
    %c0_i32_1 = arith.constant 0 : i32
    return %c0_i32, %c0_i32_0 : i32, i32
  }
  func.func @transform_3(%arg0: i32) -> (i32, i32) {
    %c0_i32 = arith.constant 0 : i32
    %c0_i32_0 = arith.constant 0 : i32
    %c0_i32_1 = arith.constant 0 : i32
    return %c0_i32, %c0_i32_0 : i32, i32
  }
  func.func @transform_4(%arg0: i32) -> (i32, i32) {
    %c0_i32 = arith.constant 0 : i32
    %c0_i32_0 = arith.constant 0 : i32
    %c0_i32_1 = arith.constant 0 : i32
    return %c0_i32, %c0_i32_0 : i32, i32
  }
  func.func @transform_5(%arg0: i32) -> (i32, i32) {
    %c0_i32 = arith.constant 0 : i32
    %c0_i32_0 = arith.constant 0 : i32
    return %arg0, %c0_i32 : i32, i32
  }
}

</mosaic_0001>

<llo_original>
// kernel: mul.57
$region0: #{mul.57}
  %s0 = inlined_call_operand.vmem [shape: f32[6,32], index: 0, kind: input, shape index: {}]
  %s1 = inlined_call_operand.vmem [shape: f32[192], index: 1, kind: output, shape index: {}]
  $region1: #{mul.57} parent=0
    #allocation0 [shape = 'u8[4096]{0}', space=vmem, size = 0x1000, scoped, tag = 'scoped mem for output reshape']
    %s2 = smov 3
    %v3 = vld [vmem:[%s0] ss:$4 sm:%s2]
    %vm4 = vcmask 261120
    %5 = vst.msk [vmem:[#allocation0] sm:$0x3] %vm4, %v3
    %s6 = scalar_lea.vmem %s0, 3
    %v7 = vld [vmem:[%s6] sm:$0x1]
    %8 = vrot.lane.b32.xlu0 %v7, 96
    %v9 = vpop.permute.xlu0 %8
    %vm10 = vcmask 1048320
    %11 = vst.msk [vmem:[#allocation0] sm:$0x1] %vm10, %v9
    %s12 = scalar_lea.vmem %s0, 2
    %v13 = vld [vmem:[%s12] sm:$0x1]
    %14 = vrot.lane.b32.xlu0 %v13, 64
    %v15 = vpop.permute.xlu0 %14
    %vm16 = vcmask 785920
    %17 = vst.msk [vmem:[#allocation0] sm:$0x1] %vm16, %v15
    %s18 = scalar_lea.vmem %s0, 1
    %s19 = smov 3
    %v20 = vld [vmem:[%s18] ss:$4 sm:%s19]
    %21 = vrot.lane.b32.xlu0 %v20, 32
    %v22 = vpop.permute.xlu0 %21
    %vm23 = vcmask 523520
    %24 = vst.msk [vmem:[#allocation0] sm:$0x3] %vm23, %v22
    %s26 = sshllo.u32 0, 2
    %v28 = vld [vmem:[#allocation0] sm:%s26]
    %s29 = sshllo.u32 0, 2
    %30 = vst [vmem:[%s1] sm:%s29] %v28

// kernel: mtmd_forward.1
$region0: #{mtmd_forward.1}
  #allocation0 [shape = 'u32[]', space=smem, size = 0x4, offset = 0x4, fixed_abs, tag = 'smem constant byte address 0x4 - core index']
  #allocation1 [shape = 'u32[144,128]{1,0:T(1,128)}', space=vmem, size = 0x12000, scoped, tag = 'internal scratch']
  %s0 = inlined_call_operand.vmem [shape: f32[16,32], index: 0, kind: input, shape index: {}]
  %s1 = inlined_call_operand.vmem [shape: f32[16,1], index: 1, kind: input, shape index: {}]
  %s2 = inlined_call_operand.vmem [shape: bf16[608,384], index: 2, kind: input, shape index: {}]
  %s3 = inlined_call_operand.vmem [shape: f32[24,384], index: 3, kind: input, shape index: {}]
  %s4 = inlined_call_operand.vmem [shape: f32[1280,256], index: 4, kind: input, shape index: {}]
  %s5 = inlined_call_operand.vmem [shape: f32[16,2], index: 5, kind: output, shape index: {}]
  %s6 = sld [smem:[#allocation0]]
  $region30: #{mtmd_forward.1} parent=0
    _
  %s8 = ssub.s32 1, %s6
  %s9 = scalar_select 0, %s8, %s6
  // Predicated region
  $region2: #{mtmd_forward.1} parent=0 // pred_check
    _
  $region3: #{mtmd_forward.1} parent=0 // pred_check_branch
    %11 = sbr.rel (0) target = $region5
  $region4: #{mtmd_forward.1} parent=0 // pred_region
    _
  $region5: #{mtmd_forward.1} parent=0 // pred_fallthru
    _
  // Predicated region
  $region6: #{mtmd_forward.1} parent=0 // pred_check
    _
  $region7: #{mtmd_forward.1} parent=0 // pred_check_branch
    %13 = sbr.rel (0) target = $region9
  $region8: #{mtmd_forward.1} parent=0 // pred_region
    _
  $region9: #{mtmd_forward.1} parent=0 // pred_fallthru
    _
  // Predicated region
  $region10: #{mtmd_forward.1} parent=0 // pred_check
    _
  $region11: #{mtmd_forward.1} parent=0 // pred_check_branch
    %15 = sbr.rel (0) target = $region13
  $region12: #{mtmd_forward.1} parent=0 // pred_region
    _
  $region13: #{mtmd_forward.1} parent=0 // pred_fallthru
    _
  // Predicated region
  $region14: #{mtmd_forward.1} parent=0 // pred_check
    _
  $region15: #{mtmd_forward.1} parent=0 // pred_check_branch
    %17 = sbr.rel (0) target = $region17
  $region16: #{mtmd_forward.1} parent=0 // pred_region
    _
  $region17: #{mtmd_forward.1} parent=0 // pred_fallthru
    _
  // Predicated region
  $region18: #{mtmd_forward.1} parent=0 // pred_check
    _
  $region19: #{mtmd_forward.1} parent=0 // pred_check_branch
    %19 = sbr.rel (0) target = $region21
  $region20: #{mtmd_forward.1} parent=0 // pred_region
    _
  $region21: #{mtmd_forward.1} parent=0 // pred_fallthru
    _
  %v21 = vld [vmem:[%s0] sm:$0xff]
  %v22 = vld [vmem:[%s0 + $0x8] sm:$0xff]
  %v23 = vpack.c.bf16 %v22, %v21
  %v24 = vld [vmem:[%s1] sm:$0xff]
  %v25 = vld [vmem:[%s1 + $0x8] sm:$0xff]
  %v26 = vld [vmem:[%s2] sm:$0xf]
  %v27 = vld [vmem:[%s2 + $0xc] sm:$0xf]
  %v28 = vld [vmem:[%s2 + $0x18] sm:$0xf]
  %v29 = vld [vmem:[%s2 + $0x24] sm:$0xf]
  %v30 = vld [vmem:[%s3] ss:$0 sm:$0xff]
  %v35 = vunpack.c.l.b16 %v26
  %v36 = vunpack.c.l.b16 %v27
  %v37 = vunpack.c.l.b16 %v28
  %v38 = vunpack.c.l.b16 %v29
  %v39 = vpack.c.b16 %v36, %v35
  %v40 = vpack.c.b16 %v38, %v37
  %vm43 = vcmask 261120
  %v45 = vsel %vm43, %v23, 0
  %47 = vmatprep.subr.bf16.mxu0 0
  %48 = vmatpush1.bf16.msra.mxu0 %v39
  %49 = vmatprep.subr.bf16.mxu0 0
  %50 = vmatpush1.bf16.msra.mxu0 %v40
  %51 = vmatprep.subr.bf16.mxu0 0
  %52 = vmatpush1.bf16.msra.mxu0 0
  %53 = vmatprep.subr.bf16.mxu0 0
  %54 = vmatpush1.bf16.msra.mxu0 0
  %55 = vmatprep.subr.bf16.mxu0 0
  %56 = vmatpush1.bf16.msra.mxu0 0
  %57 = vmatprep.subr.bf16.mxu0 0
  %58 = vmatpush1.bf16.msra.mxu0 0
  %59 = vmatprep.subr.bf16.mxu0 0
  %60 = vmatpush1.bf16.msra.mxu0 0
  %61 = vmatprep.subr.bf16.mxu0 0
  %62 = vmatpush1.bf16.msra.mxu0 0
  %63 = vmatprep.subr.bf16.mxu0 0
  %64 = vmatpush1.bf16.msra.mxu0 0
  %65 = vmatprep.subr.bf16.mxu0 0
  %66 = vmatpush1.bf16.msra.mxu0 0
  %67 = vmatprep.subr.bf16.mxu0 0
  %68 = vmatpush1.bf16.msra.mxu0 0
  %69 = vmatprep.subr.bf16.mxu0 0
  %70 = vmatpush1.bf16.msra.mxu0 0
  %71 = vmatprep.subr.bf16.mxu0 0
  %72 = vmatpush1.bf16.msra.mxu0 0
  %73 = vmatprep.subr.bf16.mxu0 0
  %74 = vmatpush1.bf16.msra.mxu0 0
  %75 = vmatprep.subr.bf16.mxu0 0
  %76 = vmatpush1.bf16.msra.mxu0 0
  %77 = vmatprep.subr.bf16.mxu0 0
  %78 = vmatpush1.bf16.msra.mxu0 0
  %79 = vmatprep.mubr.bf16.mxu0 0
  %80 = vmatmul.mubr.bf16.gmra.mrb[0].mxu0 %v45
  %v81 = vpop.f32.mrb[0].mxu0
  %v82 = vadd.f32 %v30, %v81
  %v83 = vpop.f32.mrb[0].mxu0
  %v84 = vpop.f32.mrb[0].mxu0
  %v85 = vadd.f32 %v30, %v84
  %v86 = vpop.f32.mrb[0].mxu0
  %87 = vdwg.mxu0
  %v88 = vld [vmem:[%s3 + $0x1] ss:$0 sm:$0xff]
  %v89 = vld [vmem:[%s3 + $0x2] ss:$0 sm:$0xff]
  %v90 = vld [vmem:[%s4 + $0xc0] sm:$0xff]
  %v91 = vld [vmem:[%s4 + $0xd0] sm:$0xff]
  %v92 = vld [vmem:[%s4 + $0xe0] sm:$0xff]
  %v93 = vld [vmem:[%s4 + $0xf0] sm:$0xff]
  %v95 = vsel %vm43, %v82, 0
  %v98 = vsel %vm43, %v85, 0
  %100 = vmatprep.subr.mxu0 0.0
  %101 = vmatpush1.msra.mxu0 %v90
  %102 = vmatprep.subr.mxu0 0.0
  %103 = vmatpush1.msra.mxu0 %v91
  %104 = vmatprep.subr.mxu0 0.0
  %105 = vmatpush1.msra.mxu0 %v92
  %106 = vmatprep.subr.mxu0 0.0
  %107 = vmatpush1.msra.mxu0 %v93
  %108 = vmatprep.subr.mxu0 0.0
  %109 = vmatpush1.msra.mxu0 0.0
  %110 = vmatprep.subr.mxu0 0.0
  %111 = vmatpush1.msra.mxu0 0.0
  %112 = vmatprep.subr.mxu0 0.0
  %113 = vmatpush1.msra.mxu0 0.0
  %114 = vmatprep.subr.mxu0 0.0
  %115 = vmatpush1.msra.mxu0 0.0
  %116 = vmatprep.subr.mxu0 0.0
  %117 = vmatpush1.msra.mxu0 0.0
  %118 = vmatprep.subr.mxu0 0.0
  %119 = vmatpush1.msra.mxu0 0.0
  %120 = vmatprep.subr.mxu0 0.0
  %121 = vmatpush1.msra.mxu0 0.0
  %122 = vmatprep.subr.mxu0 0.0
  %123 = vmatpush1.msra.mxu0 0.0
  %124 = vmatprep.subr.mxu0 0.0
  %125 = vmatpush1.msra.mxu0 0.0
  %126 = vmatprep.subr.mxu0 0.0
  %127 = vmatpush1.msra.mxu0 0.0
  %128 = vmatprep.subr.mxu0 0.0
  %129 = vmatpush1.msra.mxu0 0.0
  %130 = vmatprep.subr.mxu0 0.0
  %131 = vmatpush1.msra.mxu0 0.0
  %132 = vmatprep.subr.mxu0 0.0
  %133 = vmatpush1.msra.mxu0 0.0
  %134 = vmatprep.subr.mxu0 0.0
  %135 = vmatpush1.msra.mxu0 0.0
  %136 = vmatprep.subr.mxu0 0.0
  %137 = vmatpush1.msra.mxu0 0.0
  %138 = vmatprep.subr.mxu0 0.0
  %139 = vmatpush1.msra.mxu0 0.0
  %140 = vmatprep.subr.mxu0 0.0
  %141 = vmatpush1.msra.mxu0 0.0
  %142 = vmatprep.subr.mxu0 0.0
  %143 = vmatpush1.msra.mxu0 0.0
  %144 = vmatprep.subr.mxu0 0.0
  %145 = vmatpush1.msra.mxu0 0.0
  %146 = vmatprep.subr.mxu0 0.0
  %147 = vmatpush1.msra.mxu0 0.0
  %148 = vmatprep.subr.mxu0 0.0
  %149 = vmatpush1.msra.mxu0 0.0
  %150 = vmatprep.subr.mxu0 0.0
  %151 = vmatpush1.msra.mxu0 0.0
  %152 = vmatprep.subr.mxu0 0.0
  %153 = vmatpush1.msra.mxu0 0.0
  %154 = vmatprep.subr.mxu0 0.0
  %155 = vmatpush1.msra.mxu0 0.0
  %156 = vmatprep.subr.mxu0 0.0
  %157 = vmatpush1.msra.mxu0 0.0
  %158 = vmatprep.subr.mxu0 0.0
  %159 = vmatpush1.msra.mxu0 0.0
  %160 = vmatprep.subr.mxu0 0.0
  %161 = vmatpush1.msra.mxu0 0.0
  %162 = vmatprep.subr.mxu0 0.0
  %163 = vmatpush1.msra.mxu0 0.0
  %164 = vmatprep.mubr.f32.mxu0 0.0
  %165 = vmatmul.mubr.f32.gmra.mrb[0].mxu0 %v95
  %v166 = vpop.f32.mrb[0].mxu0
  %v167 = vadd.f32 0.0, %v166
  %v168 = vpop.f32.mrb[0].mxu0
  %169 = vmatprep.mubr.f32.mxu0 0.0
  %170 = vmatmul.mubr.f32.gmra.mrb[0].mxu0 %v98
  %v171 = vpop.f32.mrb[0].mxu0
  %v172 = vadd.f32 0.0, %v171
  %v173 = vpop.f32.mrb[0].mxu0
  %174 = vdwg.mxu0
  %v175 = vsub.f32 %v82, %v167
  %v176 = vsub.f32 %v85, %v172
  %v177 = vmul.f32 %v175, %v175
  %v178 = vmul.f32 %v176, %v176
  %v180 = vsel %vm43, %v177, 0
  %v183 = vsel %vm43, %v178, 0
  %185 = vmatprep.subr.mxu0 0.0
  %186 = vmatpush1.msra.mxu0 %v90
  %187 = vmatprep.subr.mxu0 0.0
  %188 = vmatpush1.msra.mxu0 %v91
  %189 = vmatprep.subr.mxu0 0.0
  %190 = vmatpush1.msra.mxu0 %v92
  %191 = vmatprep.subr.mxu0 0.0
  %192 = vmatpush1.msra.mxu0 %v93
  %193 = vmatprep.subr.mxu0 0.0
  %194 = vmatpush1.msra.mxu0 0.0
  %195 = vmatprep.subr.mxu0 0.0
  %196 = vmatpush1.msra.mxu0 0.0
  %197 = vmatprep.subr.mxu0 0.0
  %198 = vmatpush1.msra.mxu0 0.0
  %199 = vmatprep.subr.mxu0 0.0
  %200 = vmatpush1.msra.mxu0 0.0
  %201 = vmatprep.subr.mxu0 0.0
  %202 = vmatpush1.msra.mxu0 0.0
  %203 = vmatprep.subr.mxu0 0.0
  %204 = vmatpush1.msra.mxu0 0.0
  %205 = vmatprep.subr.mxu0 0.0
  %206 = vmatpush1.msra.mxu0 0.0
  %207 = vmatprep.subr.mxu0 0.0
  %208 = vmatpush1.msra.mxu0 0.0
  %209 = vmatprep.subr.mxu0 0.0
  %210 = vmatpush1.msra.mxu0 0.0
  %211 = vmatprep.subr.mxu0 0.0
  %212 = vmatpush1.msra.mxu0 0.0
  %213 = vmatprep.subr.mxu0 0.0
  %214 = vmatpush1.msra.mxu0 0.0
  %215 = vmatprep.subr.mxu0 0.0
  %216 = vmatpush1.msra.mxu0 0.0
  %217 = vmatprep.subr.mxu0 0.0
  %218 = vmatpush1.msra.mxu0 0.0
  %219 = vmatprep.subr.mxu0 0.0
  %220 = vmatpush1.msra.mxu0 0.0
  %221 = vmatprep.subr.mxu0 0.0
  %222 = vmatpush1.msra.mxu0 0.0
  %223 = vmatprep.subr.mxu0 0.0
  %224 = vmatpush1.msra.mxu0 0.0
  %225 = vmatprep.subr.mxu0 0.0
  %226 = vmatpush1.msra.mxu0 0.0
  %227 = vmatprep.subr.mxu0 0.0
  %228 = vmatpush1.msra.mxu0 0.0
  %229 = vmatprep.subr.mxu0 0.0
  %230 = vmatpush1.msra.mxu0 0.0
  %231 = vmatprep.subr.mxu0 0.0
  %232 = vmatpush1.msra.mxu0 0.0
  %233 = vmatprep.subr.mxu0 0.0
  %234 = vmatpush1.msra.mxu0 0.0
  %235 = vmatprep.subr.mxu0 0.0
  %236 = vmatpush1.msra.mxu0 0.0
  %237 = vmatprep.subr.mxu0 0.0
  %238 = vmatpush1.msra.mxu0 0.0
  %239 = vmatprep.subr.mxu0 0.0
  %240 = vmatpush1.msra.mxu0 0.0
  %241 = vmatprep.subr.mxu0 0.0
  %242 = vmatpush1.msra.mxu0 0.0
  %243 = vmatprep.subr.mxu0 0.0
  %244 = vmatpush1.msra.mxu0 0.0
  %245 = vmatprep.subr.mxu0 0.0
  %246 = vmatpush1.msra.mxu0 0.0
  %247 = vmatprep.subr.mxu0 0.0
  %248 = vmatpush1.msra.mxu0 0.0
  %249 = vmatprep.mubr.f32.mxu0 0.0
  %250 = vmatmul.mubr.f32.gmra.mrb[0].mxu0 %v180
  %v251 = vpop.f32.mrb[0].mxu0
  %v252 = vadd.f32 1e-05, %v251
  %v253 = vpop.f32.mrb[0].mxu0
  %254 = vmatprep.mubr.f32.mxu0 0.0
  %255 = vmatmul.mubr.f32.gmra.mrb[0].mxu0 %v183
  %v256 = vpop.f32.mrb[0].mxu0
  %v257 = vadd.f32 1e-05, %v256
  %v258 = vpop.f32.mrb[0].mxu0
  %259 = vdwg.mxu0
  %v260 = vrsqrt.pop %v252
  %v261 = vrsqrt.pop %v257
  %v262 = vmul.f32 %v175, %v260
  %v263 = vmul.f32 %v176, %v261
  %v264 = vmul.f32 %v262, %v88
  %v265 = vmul.f32 %v263, %v88
  %v266 = vadd.f32 %v264, %v89
  %v267 = vadd.f32 %v265, %v89
  %v268 = vmax.f32 %v266, 0.0
  %v269 = vmax.f32 %v267, 0.0
  %v270 = vld [vmem:[%s3 + $0x35] ss:$0 sm:$0xff]
  %272 = vset.pattern.permute.xlu0 0
  %273 = vperm.xlu0 %272, %v24
  %v274 = vpop.permute.xlu0 %273
  %277 = vset.pattern.permute.xlu0 0
  %278 = vperm.xlu0 %277, %v25
  %v279 = vpop.permute.xlu0 %278
  %vm281 = vcmp.eq.f32.partialorder %v270, %v274
  %vm282 = vcmp.eq.f32.partialorder %v270, %v279
  %283 = vrot.lane.b32.xlu0 %v82, 96
  %v284 = vpop.permute.xlu0 %283
  %285 = vrot.lane.b32.xlu0 %v85, 96
  %v286 = vpop.permute.xlu0 %285
  %v289 = vsel %vm281, %v284, 0.0
  %v290 = vsel %vm282, %v286, 0.0
  %v291 = vld [vmem:[%s4] sm:$0xff]
  %v292 = vld [vmem:[%s4 + $0x10] sm:$0xff]
  %v293 = vld [vmem:[%s4 + $0x20] sm:$0xff]
  %v294 = vld [vmem:[%s4 + $0x30] sm:$0xff]
  %v295 = vld [vmem:[%s4 + $0x40] sm:$0xff]
  %v296 = vld [vmem:[%s4 + $0x50] sm:$0xff]
  %v297 = vld [vmem:[%s4 + $0x60] sm:$0xff]
  %v298 = vld [vmem:[%s4 + $0x70] sm:$0xff]
  %v299 = vld [vmem:[%s4 + $0x80] sm:$0xff]
  %v300 = vld [vmem:[%s4 + $0x90] sm:$0xff]
  %v301 = vld [vmem:[%s4 + $0xa0] sm:$0xff]
  %v302 = vld [vmem:[%s4 + $0xb0] sm:$0xff]
  %vm303 = vcmask 785408
  %v305 = vsel %vm303, %v289, 0
  %v308 = vsel %vm303, %v290, 0
  %310 = vmatprep.subr.mxu0 0.0
  %311 = vmatpush1.msra.mxu0 %v291
  %312 = vmatprep.subr.mxu0 0.0
  %313 = vmatpush1.msra.mxu0 %v292
  %314 = vmatprep.subr.mxu0 0.0
  %315 = vmatpush1.msra.mxu0 %v293
  %316 = vmatprep.subr.mxu0 0.0
  %317 = vmatpush1.msra.mxu0 %v294
  %318 = vmatprep.subr.mxu0 0.0
  %319 = vmatpush1.msra.mxu0 %v295
  %320 = vmatprep.subr.mxu0 0.0
  %321 = vmatpush1.msra.mxu0 %v296
  %322 = vmatprep.subr.mxu0 0.0
  %323 = vmatpush1.msra.mxu0 %v297
  %324 = vmatprep.subr.mxu0 0.0
  %325 = vmatpush1.msra.mxu0 %v298
  %326 = vmatprep.subr.mxu0 0.0
  %327 = vmatpush1.msra.mxu0 %v299
  %328 = vmatprep.subr.mxu0 0.0
  %329 = vmatpush1.msra.mxu0 %v300
  %330 = vmatprep.subr.mxu0 0.0
  %331 = vmatpush1.msra.mxu0 %v301
  %332 = vmatprep.subr.mxu0 0.0
  %333 = vmatpush1.msra.mxu0 %v302
  %334 = vmatprep.subr.mxu0 0.0
  %335 = vmatpush1.msra.mxu0 0.0
  %336 = vmatprep.subr.mxu0 0.0
  %337 = vmatpush1.msra.mxu0 0.0
  %338 = vmatprep.subr.mxu0 0.0
  %339 = vmatpush1.msra.mxu0 0.0
  %340 = vmatprep.subr.mxu0 0.0
  %341 = vmatpush1.msra.mxu0 0.0
  %342 = vmatprep.subr.mxu0 0.0
  %343 = vmatpush1.msra.mxu0 0.0
  %344 = vmatprep.subr.mxu0 0.0
  %345 = vmatpush1.msra.mxu0 0.0
  %346 = vmatprep.subr.mxu0 0.0
  %347 = vmatpush1.msra.mxu0 0.0
  %348 = vmatprep.subr.mxu0 0.0
  %349 = vmatpush1.msra.mxu0 0.0
  %350 = vmatprep.subr.mxu0 0.0
  %351 = vmatpush1.msra.mxu0 0.0
  %352 = vmatprep.subr.mxu0 0.0
  %353 = vmatpush1.msra.mxu0 0.0
  %354 = vmatprep.subr.mxu0 0.0
  %355 = vmatpush1.msra.mxu0 0.0
  %356 = vmatprep.subr.mxu0 0.0
  %357 = vmatpush1.msra.mxu0 0.0
  %358 = vmatprep.subr.mxu0 0.0
  %359 = vmatpush1.msra.mxu0 0.0
  %360 = vmatprep.subr.mxu0 0.0
  %361 = vmatpush1.msra.mxu0 0.0
  %362 = vmatprep.subr.mxu0 0.0
  %363 = vmatpush1.msra.mxu0 0.0
  %364 = vmatprep.subr.mxu0 0.0
  %365 = vmatpush1.msra.mxu0 0.0
  %366 = vmatprep.subr.mxu0 0.0
  %367 = vmatpush1.msra.mxu0 0.0
  %368 = vmatprep.subr.mxu0 0.0
  %369 = vmatpush1.msra.mxu0 0.0
  %370 = vmatprep.subr.mxu0 0.0
  %371 = vmatpush1.msra.mxu0 0.0
  %372 = vmatprep.subr.mxu0 0.0
  %373 = vmatpush1.msra.mxu0 0.0
  %374 = vmatprep.mubr.f32.mxu0 0.0
  %375 = vmatmul.mubr.f32.gmra.mrb[0].mxu0 %v305
  %v376 = vpop.f32.mrb[0].mxu0
  %v377 = vadd.f32 0.0, %v376
  %v378 = vpop.f32.mrb[0].mxu0
  %379 = vmatprep.mubr.f32.mxu0 0.0
  %380 = vmatmul.mubr.f32.gmra.mrb[0].mxu0 %v308
  %v381 = vpop.f32.mrb[0].mxu0
  %v382 = vadd.f32 0.0, %v381
  %v383 = vpop.f32.mrb[0].mxu0
  %384 = vdwg.mxu0
  %v385 = vpack.c.bf16 %v382, %v377
  %v386 = vld [vmem:[%s2 + $0x30] sm:$0xf]
  %v387 = vld [vmem:[%s2 + $0x3c] sm:$0xf]
  %v388 = vld [vmem:[%s2 + $0x48] sm:$0xf]
  %v389 = vld [vmem:[%s2 + $0x54] sm:$0xf]
  %v390 = vld [vmem:[%s3 + $0x3] ss:$0 sm:$0xff]
  %v395 = vunpack.c.l.b16 %v386
  %v396 = vunpack.c.l.b16 %v387
  %v397 = vunpack.c.l.b16 %v388
  %v398 = vunpack.c.l.b16 %v389
  %v399 = vpack.c.b16 %v396, %v395
  %v400 = vpack.c.b16 %v398, %v397
  %v404 = vsel %vm43, %v385, 0
  %406 = vmatprep.subr.bf16.mxu0 0
  %407 = vmatpush1.bf16.msra.mxu0 %v399
  %408 = vmatprep.subr.bf16.mxu0 0
  %409 = vmatpush1.bf16.msra.mxu0 %v400
  %410 = vmatprep.subr.bf16.mxu0 0
  %411 = vmatpush1.bf16.msra.mxu0 0
  %412 = vmatprep.subr.bf16.mxu0 0
  %413 = vmatpush1.bf16.msra.mxu0 0
  %414 = vmatprep.subr.bf16.mxu0 0
  %415 = vmatpush1.bf16.msra.mxu0 0
  %416 = vmatprep.subr.bf16.mxu0 0
  %417 = vmatpush1.bf16.msra.mxu0 0
  %418 = vmatprep.subr.bf16.mxu0 0
  %419 = vmatpush1.bf16.msra.mxu0 0
  %420 = vmatprep.subr.bf16.mxu0 0
  %421 = vmatpush1.bf16.msra.mxu0 0
  %422 = vmatprep.subr.bf16.mxu0 0
  %423 = vmatpush1.bf16.msra.mxu0 0
  %424 = vmatprep.subr.bf16.mxu0 0
  %425 = vmatpush1.bf16.msra.mxu0 0
  %426 = vmatprep.subr.bf16.mxu0 0
  %427 = vmatpush1.bf16.msra.mxu0 0
  %428 = vmatprep.subr.bf16.mxu0 0
  %429 = vmatpush1.bf16.msra.mxu0 0
  %430 = vmatprep.subr.bf16.mxu0 0
  %431 = vmatpush1.bf16.msra.mxu0 0
  %432 = vmatprep.subr.bf16.mxu0 0
  %433 = vmatpush1.bf16.msra.mxu0 0
  %434 = vmatprep.subr.bf16.mxu0 0
  %435 = vmatpush1.bf16.msra.mxu0 0
  %436 = vmatprep.subr.bf16.mxu0 0
  %437 = vmatpush1.bf16.msra.mxu0 0
  %438 = vmatprep.mubr.bf16.mxu0 0
  %439 = vmatmul.mubr.bf16.gmra.mrb[0].mxu0 %v404
  %v440 = vpop.f32.mrb[0].mxu0
  %v441 = vadd.f32 %v390, %v440
  %v442 = vpop.f32.mrb[0].mxu0
  %v443 = vpop.f32.mrb[0].mxu0
  %v444 = vadd.f32 %v390, %v443
  %v445 = vpop.f32.mrb[0].mxu0
  %446 = vdwg.mxu0
  %v447 = vld [vmem:[%s3 + $0x4] ss:$0 sm:$0xff]
  %v448 = vld [vmem:[%s3 + $0x5] ss:$0 sm:$0xff]
  %v450 = vsel %vm43, %v441, 0
  %v453 = vsel %vm43, %v444, 0
  %455 = vmatprep.subr.mxu0 0.0
  %456 = vmatpush1.msra.mxu0 %v90
  %457 = vmatprep.subr.mxu0 0.0
  %458 = vmatpush1.msra.mxu0 %v91
  %459 = vmatprep.subr.mxu0 0.0
  %460 = vmatpush1.msra.mxu0 %v92
  %461 = vmatprep.subr.mxu0 0.0
  %462 = vmatpush1.msra.mxu0 %v93
  %463 = vmatprep.subr.mxu0 0.0
  %464 = vmatpush1.msra.mxu0 0.0
  %465 = vmatprep.subr.mxu0 0.0
  %466 = vmatpush1.msra.mxu0 0.0
  %467 = vmatprep.subr.mxu0 0.0
  %468 = vmatpush1.msra.mxu0 0.0
  %469 = vmatprep.subr.mxu0 0.0
  %470 = vmatpush1.msra.mxu0 0.0
  %471 = vmatprep.subr.mxu0 0.0
  %472 = vmatpush1.msra.mxu0 0.0
  %473 = vmatprep.subr.mxu0 0.0
  %474 = vmatpush1.msra.mxu0 0.0
  %475 = vmatprep.subr.mxu0 0.0
  %476 = vmatpush1.msra.mxu0 0.0
  %477 = vmatprep.subr.mxu0 0.0
  %478 = vmatpush1.msra.mxu0 0.0
  %479 = vmatprep.subr.mxu0 0.0
  %480 = vmatpush1.msra.mxu0 0.0
  %481 = vmatprep.subr.mxu0 0.0
  %482 = vmatpush1.msra.mxu0 0.0
  %483 = vmatprep.subr.mxu0 0.0
  %484 = vmatpush1.msra.mxu0 0.0
  %485 = vmatprep.subr.mxu0 0.0
  %486 = vmatpush1.msra.mxu0 0.0
  %487 = vmatprep.subr.mxu0 0.0
  %488 = vmatpush1.msra.mxu0 0.0
  %489 = vmatprep.subr.mxu0 0.0
  %490 = vmatpush1.msra.mxu0 0.0
  %491 = vmatprep.subr.mxu0 0.0
  %492 = vmatpush1.msra.mxu0 0.0
  %493 = vmatprep.subr.mxu0 0.0
  %494 = vmatpush1.msra.mxu0 0.0
  %495 = vmatprep.subr.mxu0 0.0
  %496 = vmatpush1.msra.mxu0 0.0
  %497 = vmatprep.subr.mxu0 0.0
  %498 = vmatpush1.msra.mxu0 0.0
  %499 = vmatprep.subr.mxu0 0.0
  %500 = vmatpush1.msra.mxu0 0.0
  %501 = vmatprep.subr.mxu0 0.0
  %502 = vmatpush1.msra.mxu0 0.0
  %503 = vmatprep.subr.mxu0 0.0
  %504 = vmatpush1.msra.mxu0 0.0
  %505 = vmatprep.subr.mxu0 0.0
  %506 = vmatpush1.msra.mxu0 0.0
  %507 = vmatprep.subr.mxu0 0.0
  %508 = vmatpush1.msra.mxu0 0.0
  %509 = vmatprep.subr.mxu0 0.0
  %510 = vmatpush1.msra.mxu0 0.0
  %511 = vmatprep.subr.mxu0 0.0
  %512 = vmatpush1.msra.mxu0 0.0
  %513 = vmatprep.subr.mxu0 0.0
  %514 = vmatpush1.msra.mxu0 0.0
  %515 = vmatprep.subr.mxu0 0.0
  %516 = vmatpush1.msra.mxu0 0.0
  %517 = vmatprep.subr.mxu0 0.0
  %518 = vmatpush1.msra.mxu0 0.0
  %519 = vmatprep.mubr.f32.mxu0 0.0
  %520 = vmatmul.mubr.f32.gmra.mrb[0].mxu0 %v450
  %v521 = vpop.f32.mrb[0].mxu0
  %v522 = vadd.f32 0.0, %v521
  %v523 = vpop.f32.mrb[0].mxu0
  %524 = vmatprep.mubr.f32.mxu0 0.0
  %525 = vmatmul.mubr.f32.gmra.mrb[0].mxu0 %v453
  %v526 = vpop.f32.mrb[0].mxu0
  %v527 = vadd.f32 0.0, %v526
  %v528 = vpop.f32.mrb[0].mxu0
  %529 = vdwg.mxu0
  %v530 = vsub.f32 %v441, %v522
  %v531 = vsub.f32 %v444, %v527
  %v532 = vmul.f32 %v530, %v530
  %v533 = vmul.f32 %v531, %v531
  %v535 = vsel %vm43, %v532, 0
  %v538 = vsel %vm43, %v533, 0
  %540 = vmatprep.subr.mxu0 0.0
  %541 = vmatpush1.msra.mxu0 %v90
  %542 = vmatprep.subr.mxu0 0.0
  %543 = vmatpush1.msra.mxu0 %v91
  %544 = vmatprep.subr.mxu0 0.0
  %545 = vmatpush1.msra.mxu0 %v92
  %546 = vmatprep.subr.mxu0 0.0
  %547 = vmatpush1.msra.mxu0 %v93
  %548 = vmatprep.subr.mxu0 0.0
  %549 = vmatpush1.msra.mxu0 0.0
  %550 = vmatprep.subr.mxu0 0.0
  %551 = vmatpush1.msra.mxu0 0.0
  %552 = vmatprep.subr.mxu0 0.0
  %553 = vmatpush1.msra.mxu0 0.0
  %554 = vmatprep.subr.mxu0 0.0
  %555 = vmatpush1.msra.mxu0 0.0
  %556 = vmatprep.subr.mxu0 0.0
  %557 = vmatpush1.msra.mxu0 0.0
  %558 = vmatprep.subr.mxu0 0.0
  %559 = vmatpush1.msra.mxu0 0.0
  %560 = vmatprep.subr.mxu0 0.0
  %561 = vmatpush1.msra.mxu0 0.0
  %562 = vmatprep.subr.mxu0 0.0
  %563 = vmatpush1.msra.mxu0 0.0
  %564 = vmatprep.subr.mxu0 0.0
  %565 = vmatpush1.msra.mxu0 0.0
  %566 = vmatprep.subr.mxu0 0.0
  %567 = vmatpush1.msra.mxu0 0.0
  %568 = vmatprep.subr.mxu0 0.0
  %569 = vmatpush1.msra.mxu0 0.0
  %570 = vmatprep.subr.mxu0 0.0
  %571 = vmatpush1.msra.mxu0 0.0
  %572 = vmatprep.subr.mxu0 0.0
  %573 = vmatpush1.msra.mxu0 0.0
  %574 = vmatprep.subr.mxu0 0.0
  %575 = vmatpush1.msra.mxu0 0.0
  %576 = vmatprep.subr.mxu0 0.0
  %577 = vmatpush1.msra.mxu0 0.0
  %578 = vmatprep.subr.mxu0 0.0
  %579 = vmatpush1.msra.mxu0 0.0
  %580 = vmatprep.subr.mxu0 0.0
  %581 = vmatpush1.msra.mxu0 0.0
  %582 = vmatprep.subr.mxu0 0.0
  %583 = vmatpush1.msra.mxu0 0.0
  %584 = vmatprep.subr.mxu0 0.0
  %585 = vmatpush1.msra.mxu0 0.0
  %586 = vmatprep.subr.mxu0 0.0
  %587 = vmatpush1.msra.mxu0 0.0
  %588 = vmatprep.subr.mxu0 0.0
  %589 = vmatpush1.msra.mxu0 0.0
  %590 = vmatprep.subr.mxu0 0.0
  %591 = vmatpush1.msra.mxu0 0.0
  %592 = vmatprep.subr.mxu0 0.0
  %593 = vmatpush1.msra.mxu0 0.0
  %594 = vmatprep.subr.mxu0 0.0
  %595 = vmatpush1.msra.mxu0 0.0
  %596 = vmatprep.subr.mxu0 0.0
  %597 = vmatpush1.msra.mxu0 0.0
  %598 = vmatprep.subr.mxu0 0.0
  %599 = vmatpush1.msra.mxu0 0.0
  %600 = vmatprep.subr.mxu0 0.0
  %601 = vmatpush1.msra.mxu0 0.0
  %602 = vmatprep.subr.mxu0 0.0
  %603 = vmatpush1.msra.mxu0 0.0
  %604 = vmatprep.mubr.f32.mxu0 0.0
  %605 = vmatmul.mubr.f32.gmra.mrb[0].mxu0 %v535
  %v606 = vpop.f32.mrb[0].mxu0
  %v607 = vadd.f32 1e-05, %v606
  %v608 = vpop.f32.mrb[0].mxu0
  %609 = vmatprep.mubr.f32.mxu0 0.0
  %610 = vmatmul.mubr.f32.gmra.mrb[0].mxu0 %v538
  %v611 = vpop.f32.mrb[0].mxu0
  %v612 = vadd.f32 1e-05, %v611
  %v613 = vpop.f32.mrb[0].mxu0
  %614 = vdwg.mxu0
  %v615 = vrsqrt.pop %v607
  %v616 = vrsqrt.pop %v612
  %v617 = vmul.f32 %v530, %v615
  %v618 = vmul.f32 %v531, %v616
  %v619 = vmul.f32 %v617, %v447
  %v620 = vmul.f32 %v618, %v447
  %v621 = vadd.f32 %v619, %v448
  %v622 = vadd.f32 %v620, %v448
  %v623 = vmax.f32 %v621, 0.0
  %v624 = vmax.f32 %v622, 0.0
  %v625 = vadd.f32 %v623, %v268
  %v626 = vadd.f32 %v624, %v269
  %v627 = vpack.c.bf16 %v626, %v625
  %v628 = vld [vmem:[%s2 + $0x60] sm:$0xff]
  %v629 = vld [vmem:[%s2 + $0x68] sm:$0xf]
  %v630 = vld [vmem:[%s2 + $0x6c] sm:$0xff]
  %v631 = vld [vmem:[%s2 + $0x74] sm:$0xf]
  %v632 = vld [vmem:[%s2 + $0x78] sm:$0xff]
  %v633 = vld [vmem:[%s2 + $0x80] sm:$0xf]
  %v634 = vld [vmem:[%s2 + $0x84] sm:$0xff]
  %v635 = vld [vmem:[%s2 + $0x8c] sm:$0xf]
  %s636 = scalar_lea.vmem %s3, 6
  %v637 = vld [vmem:[%s636] ss:$8 sm:$0x7]
  %v639 = vlaneseq
  %v640 = vshrl.u32 %v639, 7
  %v641 = vsub.s32 0, %v640
  %v642 = vrot.slane %v637, %v641
  %v643 = vlaneseq
  %v644 = vshrl.u32 %v643, 7
  %v645 = vsub.s32 1, %v644
  %v646 = vrot.slane %v637, %v645
  %v647 = vlaneseq
  %v648 = vshrl.u32 %v647, 7
  %v649 = vsub.s32 2, %v648
  %v650 = vrot.slane %v637, %v649
  %v662 = vunpack.c.l.b16 %v628
  %v663 = vunpack.c.h.b16 %v628
  %v664 = vunpack.c.l.b16 %v629
  %v665 = vunpack.c.l.b16 %v630
  %v666 = vunpack.c.h.b16 %v630
  %v667 = vunpack.c.l.b16 %v631
  %v668 = vunpack.c.l.b16 %v632
  %v669 = vunpack.c.h.b16 %v632
  %v670 = vunpack.c.l.b16 %v633
  %v671 = vunpack.c.l.b16 %v634
  %v672 = vunpack.c.h.b16 %v634
  %v673 = vunpack.c.l.b16 %v635
  %v674 = vpack.c.b16 %v665, %v662
  %v675 = vpack.c.b16 %v666, %v663
  %v676 = vpack.c.b16 %v667, %v664
  %v677 = vpack.c.b16 %v671, %v668
  %v678 = vpack.c.b16 %v672, %v669
  %v679 = vpack.c.b16 %v673, %v670
  %v687 = vsel %vm43, %v627, 0
  %689 = vmatprep.subr.bf16.mxu0 %v675
  %690 = vmatpush1.bf16.msra.mxu0 %v674
  %691 = vmatprep.subr.bf16.mxu0 %v678
  %692 = vmatpush1.bf16.msra.mxu0 %v677
  %693 = vmatprep.subr.bf16.mxu0 0
  %694 = vmatpush1.bf16.msra.mxu0 0
  %695 = vmatprep.subr.bf16.mxu0 0
  %696 = vmatpush1.bf16.msra.mxu0 0
  %697 = vmatprep.subr.bf16.mxu0 0
  %698 = vmatpush1.bf16.msra.mxu0 0
  %699 = vmatprep.subr.bf16.mxu0 0
  %700 = vmatpush1.bf16.msra.mxu0 0
  %701 = vmatprep.subr.bf16.mxu0 0
  %702 = vmatpush1.bf16.msra.mxu0 0
  %703 = vmatprep.subr.bf16.mxu0 0
  %704 = vmatpush1.bf16.msra.mxu0 0
  %705 = vmatprep.subr.bf16.mxu0 0
  %706 = vmatpush1.bf16.msra.mxu0 0
  %707 = vmatprep.subr.bf16.mxu0 0
  %708 = vmatpush1.bf16.msra.mxu0 0
  %709 = vmatprep.subr.bf16.mxu0 0
  %710 = vmatpush1.bf16.msra.mxu0 0
  %711 = vmatprep.subr.bf16.mxu0 0
  %712 = vmatpush1.bf16.msra.mxu0 0
  %713 = vmatprep.subr.bf16.mxu0 0
  %714 = vmatpush1.bf16.msra.mxu0 0
  %715 = vmatprep.subr.bf16.mxu0 0
  %716 = vmatpush1.bf16.msra.mxu0 0
  %717 = vmatprep.subr.bf16.mxu0 0
  %718 = vmatpush1.bf16.msra.mxu0 0
  %719 = vmatprep.subr.bf16.mxu0 0
  %720 = vmatpush1.bf16.msra.mxu0 0
  %721 = vmatprep.mubr.bf16.mxu0 0
  %722 = vmatmul.mubr.bf16.gmra.mrb[0].mxu0 %v687
  %v723 = vpop.f32.mrb[0].mxu0
  %v724 = vadd.f32 %v642, %v723
  %v725 = vpop.f32.mrb[0].mxu0
  %v726 = vadd.f32 %v646, %v725
  %v727 = vpop.f32.mrb[0].mxu0
  %v728 = vadd.f32 %v642, %v727
  %v729 = vpop.f32.mrb[0].mxu0
  %v730 = vadd.f32 %v646, %v729
  %731 = vdwg.mxu0
  %732 = vmatprep.subr.bf16.mxu0 0
  %733 = vmatpush1.bf16.msra.mxu0 %v676
  %734 = vmatprep.subr.bf16.mxu0 0
  %735 = vmatpush1.bf16.msra.mxu0 %v679
  %736 = vmatprep.subr.bf16.mxu0 0
  %737 = vmatpush1.bf16.msra.mxu0 0
  %738 = vmatprep.subr.bf16.mxu0 0
  %739 = vmatpush1.bf16.msra.mxu0 0
  %740 = vmatprep.subr.bf16.mxu0 0
  %741 = vmatpush1.bf16.msra.mxu0 0
  %742 = vmatprep.subr.bf16.mxu0 0
  %743 = vmatpush1.bf16.msra.mxu0 0
  %744 = vmatprep.subr.bf16.mxu0 0
  %745 = vmatpush1.bf16.msra.mxu0 0
  %746 = vmatprep.subr.bf16.mxu0 0
  %747 = vmatpush1.bf16.msra.mxu0 0
  %748 = vmatprep.subr.bf16.mxu0 0
  %749 = vmatpush1.bf16.msra.mxu0 0
  %750 = vmatprep.subr.bf16.mxu0 0
  %751 = vmatpush1.bf16.msra.mxu0 0
  %752 = vmatprep.subr.bf16.mxu0 0
  %753 = vmatpush1.bf16.msra.mxu0 0
  %754 = vmatprep.subr.bf16.mxu0 0
  %755 = vmatpush1.bf16.msra.mxu0 0
  %756 = vmatprep.subr.bf16.mxu0 0
  %757 = vmatpush1.bf16.msra.mxu0 0
  %758 = vmatprep.subr.bf16.mxu0 0
  %759 = vmatpush1.bf16.msra.mxu0 0
  %760 = vmatprep.subr.bf16.mxu0 0
  %761 = vmatpush1.bf16.msra.mxu0 0
  %762 = vmatprep.subr.bf16.mxu0 0
  %763 = vmatpush1.bf16.msra.mxu0 0
  %764 = vmatprep.mubr.bf16.mxu0 0
  %765 = vmatmul.mubr.bf16.gmra.mrb[0].mxu0 %v687
  %v766 = vpop.f32.mrb[0].mxu0
  %v767 = vadd.f32 %v650, %v766
  %v768 = vpop.f32.mrb[0].mxu0
  %v769 = vpop.f32.mrb[0].mxu0
  %v770 = vadd.f32 %v650, %v769
  %v771 = vpop.f32.mrb[0].mxu0
  %772 = vdwg.mxu0
  %v773 = vld [vmem:[%s3 + $0x7] ss:$0 sm:$0xff]
  %v774 = vld [vmem:[%s3 + $0x18] ss:$0 sm:$0xff]
  %v775 = vld [vmem:[%s4 + $0x100] sm:$0xff]
  %v776 = vld [vmem:[%s4 + $0x110] sm:$0xff]
  %v777 = vld [vmem:[%s4 + $0x120] sm:$0xff]
  %v778 = vld [vmem:[%s4 + $0x130] sm:$0xff]
  %v779 = vld [vmem:[%s4 + $0x140] sm:$0xff]
  %v780 = vld [vmem:[%s4 + $0x150] sm:$0xff]
  %v781 = vld [vmem:[%s4 + $0x160] sm:$0xff]
  %v782 = vld [vmem:[%s4 + $0x170] sm:$0xff]
  %v783 = vld [vmem:[%s4 + $0x180] sm:$0xff]
  %v784 = vld [vmem:[%s4 + $0x190] sm:$0xff]
  %v785 = vld [vmem:[%s4 + $0x1a0] sm:$0xff]
  %v786 = vld [vmem:[%s4 + $0x1b0] sm:$0xff]
  %v787 = vld [vmem:[%s4 + $0x1c0] sm:$0xff]
  %v788 = vld [vmem:[%s4 + $0x1d0] sm:$0xff]
  %v789 = vld [vmem:[%s4 + $0x1e0] sm:$0xff]
  %v790 = vld [vmem:[%s4 + $0x1f0] sm:$0xff]
  %791 = vmatprep.subr.mxu0 0.0
  %792 = vmatpush1.msra.mxu0 %v775
  %793 = vmatprep.subr.mxu0 0.0
  %794 = vmatpush1.msra.mxu0 %v776
  %795 = vmatprep.subr.mxu0 0.0
  %796 = vmatpush1.msra.mxu0 %v777
  %797 = vmatprep.subr.mxu0 0.0
  %798 = vmatpush1.msra.mxu0 %v778
  %799 = vmatprep.subr.mxu0 0.0
  %800 = vmatpush1.msra.mxu0 %v779
  %801 = vmatprep.subr.mxu0 0.0
  %802 = vmatpush1.msra.mxu0 %v780
  %803 = vmatprep.subr.mxu0 0.0
  %804 = vmatpush1.msra.mxu0 %v781
  %805 = vmatprep.subr.mxu0 0.0
  %806 = vmatpush1.msra.mxu0 %v782
  %807 = vmatprep.subr.mxu0 0.0
  %808 = vmatpush1.msra.mxu0 %v783
  %809 = vmatprep.subr.mxu0 0.0
  %810 = vmatpush1.msra.mxu0 %v784
  %811 = vmatprep.subr.mxu0 0.0
  %812 = vmatpush1.msra.mxu0 %v785
  %813 = vmatprep.subr.mxu0 0.0
  %814 = vmatpush1.msra.mxu0 %v786
  %815 = vmatprep.subr.mxu0 0.0
  %816 = vmatpush1.msra.mxu0 %v787
  %817 = vmatprep.subr.mxu0 0.0
  %818 = vmatpush1.msra.mxu0 %v788
  %819 = vmatprep.subr.mxu0 0.0
  %820 = vmatpush1.msra.mxu0 %v789
  %821 = vmatprep.subr.mxu0 0.0
  %822 = vmatpush1.msra.mxu0 %v790
  %823 = vmatprep.subr.mxu0 0.0
  %824 = vmatpush1.msra.mxu0 0.0
  %825 = vmatprep.subr.mxu0 0.0
  %826 = vmatpush1.msra.mxu0 0.0
  %827 = vmatprep.subr.mxu0 0.0
  %828 = vmatpush1.msra.mxu0 0.0
  %829 = vmatprep.subr.mxu0 0.0
  %830 = vmatpush1.msra.mxu0 0.0
  %831 = vmatprep.subr.mxu0 0.0
  %832 = vmatpush1.msra.mxu0 0.0
  %833 = vmatprep.subr.mxu0 0.0
  %834 = vmatpush1.msra.mxu0 0.0
  %835 = vmatprep.subr.mxu0 0.0
  %836 = vmatpush1.msra.mxu0 0.0
  %837 = vmatprep.subr.mxu0 0.0
  %838 = vmatpush1.msra.mxu0 0.0
  %839 = vmatprep.subr.mxu0 0.0
  %840 = vmatpush1.msra.mxu0 0.0
  %841 = vmatprep.subr.mxu0 0.0
  %842 = vmatpush1.msra.mxu0 0.0
  %843 = vmatprep.subr.mxu0 0.0
  %844 = vmatpush1.msra.mxu0 0.0
  %845 = vmatprep.subr.mxu0 0.0
  %846 = vmatpush1.msra.mxu0 0.0
  %847 = vmatprep.subr.mxu0 0.0
  %848 = vmatpush1.msra.mxu0 0.0
  %849 = vmatprep.subr.mxu0 0.0
  %850 = vmatpush1.msra.mxu0 0.0
  %851 = vmatprep.subr.mxu0 0.0
  %852 = vmatpush1.msra.mxu0 0.0
  %853 = vmatprep.subr.mxu0 0.0
  %854 = vmatpush1.msra.mxu0 0.0
  %855 = vmatprep.mubr.f32.mxu0 0.0
  %856 = vmatmul.mubr.f32.gmra.mrb[0].mxu0 %v724
  %v857 = vpop.f32.mrb[0].mxu0
  %v858 = vadd.f32 0.0, %v857
  %v859 = vpop.f32.mrb[0].mxu0
  %860 = vmatprep.mubr.f32.mxu0 0.0
  %861 = vmatmul.mubr.f32.gmra.mrb[0].mxu0 %v728
  %v862 = vpop.f32.mrb[0].mxu0
  %v863 = vadd.f32 0.0, %v862
  %v864 = vpop.f32.mrb[0].mxu0
  %865 = vdwg.mxu0
  %v866 = vsub.f32 %v724, %v858
  %v867 = vsub.f32 %v728, %v863
  %v868 = vmul.f32 %v866, %v866
  %v869 = vmul.f32 %v867, %v867
  %870 = vmatprep.subr.mxu0 0.0
  %871 = vmatpush1.msra.mxu0 %v775
  %872 = vmatprep.subr.mxu0 0.0
  %873 = vmatpush1.msra.mxu0 %v776
  %874 = vmatprep.subr.mxu0 0.0
  %875 = vmatpush1.msra.mxu0 %v777
  %876 = vmatprep.subr.mxu0 0.0
  %877 = vmatpush1.msra.mxu0 %v778
  %878 = vmatprep.subr.mxu0 0.0
  %879 = vmatpush1.msra.mxu0 %v779
  %880 = vmatprep.subr.mxu0 0.0
  %881 = vmatpush1.msra.mxu0 %v780
  %882 = vmatprep.subr.mxu0 0.0
  %883 = vmatpush1.msra.mxu0 %v781
  %884 = vmatprep.subr.mxu0 0.0
  %885 = vmatpush1.msra.mxu0 %v782
  %886 = vmatprep.subr.mxu0 0.0
  %887 = vmatpush1.msra.mxu0 %v783
  %888 = vmatprep.subr.mxu0 0.0
  %889 = vmatpush1.msra.mxu0 %v784
  %890 = vmatprep.subr.mxu0 0.0
  %891 = vmatpush1.msra.mxu0 %v785
  %892 = vmatprep.subr.mxu0 0.0
  %893 = vmatpush1.msra.mxu0 %v786
  %894 = vmatprep.subr.mxu0 0.0
  %895 = vmatpush1.msra.mxu0 %v787
  %896 = vmatprep.subr.mxu0 0.0
  %897 = vmatpush1.msra.mxu0 %v788
  %898 = vmatprep.subr.mxu0 0.0
  %899 = vmatpush1.msra.mxu0 %v789
  %900 = vmatprep.subr.mxu0 0.0
  %901 = vmatpush1.msra.mxu0 %v790
  %902 = vmatprep.subr.mxu0 0.0
  %903 = vmatpush1.msra.mxu0 0.0
  %904 = vmatprep.subr.mxu0 0.0
  %905 = vmatpush1.msra.mxu0 0.0
  %906 = vmatprep.subr.mxu0 0.0
  %907 = vmatpush1.msra.mxu0 0.0
  %908 = vmatprep.subr.mxu0 0.0
  %909 = vmatpush1.msra.mxu0 0.0
  %910 = vmatprep.subr.mxu0 0.0
  %911 = vmatpush1.msra.mxu0 0.0
  %912 = vmatprep.subr.mxu0 0.0
  %913 = vmatpush1.msra.mxu0 0.0
  %914 = vmatprep.subr.mxu0 0.0
  %915 = vmatpush1.msra.mxu0 0.0
  %916 = vmatprep.subr.mxu0 0.0
  %917 = vmatpush1.msra.mxu0 0.0
  %918 = vmatprep.subr.mxu0 0.0
  %919 = vmatpush1.msra.mxu0 0.0
  %920 = vmatprep.subr.mxu0 0.0
  %921 = vmatpush1.msra.mxu0 0.0
  %922 = vmatprep.subr.mxu0 0.0
  %923 = vmatpush1.msra.mxu0 0.0
  %924 = vmatprep.subr.mxu0 0.0
  %925 = vmatpush1.msra.mxu0 0.0
  %926 = vmatprep.subr.mxu0 0.0
  %927 = vmatpush1.msra.mxu0 0.0
  %928 = vmatprep.subr.mxu0 0.0
  %929 = vmatpush1.msra.mxu0 0.0
  %930 = vmatprep.subr.mxu0 0.0
  %931 = vmatpush1.msra.mxu0 0.0
  %932 = vmatprep.subr.mxu0 0.0
  %933 = vmatpush1.msra.mxu0 0.0
  %934 = vmatprep.mubr.f32.mxu0 0.0
  %935 = vmatmul.mubr.f32.gmra.mrb[0].mxu0 %v868
  %v936 = vpop.f32.mrb[0].mxu0
  %v937 = vadd.f32 1e-05, %v936
  %v938 = vpop.f32.mrb[0].mxu0
  %939 = vmatprep.mubr.f32.mxu0 0.0
  %940 = vmatmul.mubr.f32.gmra.mrb[0].mxu0 %v869
  %v941 = vpop.f32.mrb[0].mxu0
  %v942 = vadd.f32 1e-05, %v941
  %v943 = vpop.f32.mrb[0].mxu0
  %944 = vdwg.mxu0
  %v945 = vrsqrt.pop %v937
  %v946 = vrsqrt.pop %v942
  %v947 = vmul.f32 %v866, %v945
  %v948 = vmul.f32 %v867, %v946
  %v949 = vmul.f32 %v947, %v773
  %v950 = vmul.f32 %v948, %v773
  %v951 = vadd.f32 %v949, %v774
  %v952 = vadd.f32 %v950, %v774
  %v953 = vmax.f32 %v951, 0.0
  %v954 = vmax.f32 %v952, 0.0
  %s955 = scalar_lea.vmem %s3, 25
  %v956 = vld [vmem:[%s955] ss:$8 sm:$0x3]
  %s957 = scalar_lea.vmem %s3, 26
  %v958 = vld [vmem:[%s957] ss:$8 sm:$0x3]
  %v959 = vld [vmem:[%s4 + $0x200] sm:$0xff]
  %v960 = vld [vmem:[%s4 + $0x208] sm:$0xff]
  %v961 = vld [vmem:[%s4 + $0x210] sm:$0xff]
  %v962 = vld [vmem:[%s4 + $0x218] sm:$0xff]
  %v963 = vld [vmem:[%s4 + $0x220] sm:$0xff]
  %v964 = vld [vmem:[%s4 + $0x228] sm:$0xff]
  %v965 = vld [vmem:[%s4 + $0x230] sm:$0xff]
  %v966 = vld [vmem:[%s4 + $0x238] sm:$0xff]
  %v967 = vld [vmem:[%s4 + $0x240] sm:$0xff]
  %v968 = vld [vmem:[%s4 + $0x248] sm:$0xff]
  %v969 = vld [vmem:[%s4 + $0x250] sm:$0xff]
  %v970 = vld [vmem:[%s4 + $0x258] sm:$0xff]
  %v971 = vld [vmem:[%s4 + $0x260] sm:$0xff]
  %v972 = vld [vmem:[%s4 + $0x268] sm:$0xff]
  %v973 = vld [vmem:[%s4 + $0x270] sm:$0xff]
  %v974 = vld [vmem:[%s4 + $0x278] sm:$0xff]
  %v975 = vld [vmem:[%s4 + $0x280] sm:$0xff]
  %v976 = vld [vmem:[%s4 + $0x288] sm:$0xff]
  %v977 = vld [vmem:[%s4 + $0x290] sm:$0xff]
  %v978 = vld [vmem:[%s4 + $0x298] sm:$0xff]
  %v979 = vld [vmem:[%s4 + $0x2a0] sm:$0xff]
  %v980 = vld [vmem:[%s4 + $0x2a8] sm:$0xff]
  %v981 = vld [vmem:[%s4 + $0x2b0] sm:$0xff]
  %v982 = vld [vmem:[%s4 + $0x2b8] sm:$0xff]
  %v983 = vld [vmem:[%s4 + $0x2c0] sm:$0xff]
  %v984 = vld [vmem:[%s4 + $0x2c8] sm:$0xff]
  %v985 = vld [vmem:[%s4 + $0x2d0] sm:$0xff]
  %v986 = vld [vmem:[%s4 + $0x2d8] sm:$0xff]
  %v987 = vld [vmem:[%s4 + $0x2e0] sm:$0xff]
  %v988 = vld [vmem:[%s4 + $0x2e8] sm:$0xff]
  %v989 = vld [vmem:[%s4 + $0x2f0] sm:$0xff]
  %v990 = vld [vmem:[%s4 + $0x2f8] sm:$0xff]
  %v991 = vld [vmem:[%s4 + $0x300] sm:$0xff]
  %v992 = vld [vmem:[%s4 + $0x308] sm:$0xff]
  %v993 = vld [vmem:[%s4 + $0x310] sm:$0xff]
  %v994 = vld [vmem:[%s4 + $0x318] sm:$0xff]
  %v995 = vld [vmem:[%s4 + $0x320] sm:$0xff]
  %v996 = vld [vmem:[%s4 + $0x328] sm:$0xff]
  %v997 = vld [vmem:[%s4 + $0x330] sm:$0xff]
  %v998 = vld [vmem:[%s4 + $0x338] sm:$0xff]
  %v999 = vld [vmem:[%s4 + $0x340] sm:$0xff]
  %v1000 = vld [vmem:[%s4 + $0x348] sm:$0xff]
  %v1001 = vld [vmem:[%s4 + $0x350] sm:$0xff]
  %v1002 = vld [vmem:[%s4 + $0x358] sm:$0xff]
  %v1003 = vld [vmem:[%s4 + $0x360] sm:$0xff]
  %v1004 = vld [vmem:[%s4 + $0x368] sm:$0xff]
  %v1005 = vld [vmem:[%s4 + $0x370] sm:$0xff]
  %v1006 = vld [vmem:[%s4 + $0x378] sm:$0xff]
  %vm1007 = vcmask 523264
  %v1009 = vsel %vm1007, %v767, 0
  %v1012 = vsel %vm1007, %v770, 0
  %1014 = vmatprep.subr.mxu0 %v960
  %1015 = vmatpush1.msra.mxu0 %v959
  %1016 = vmatprep.subr.mxu0 %v962
  %1017 = vmatpush1.msra.mxu0 %v961
  %1018 = vmatprep.subr.mxu0 %v964
  %1019 = vmatpush1.msra.mxu0 %v963
  %1020 = vmatprep.subr.mxu0 %v966
  %1021 = vmatpush1.msra.mxu0 %v965
  %1022 = vmatprep.subr.mxu0 %v968
  %1023 = vmatpush1.msra.mxu0 %v967
  %1024 = vmatprep.subr.mxu0 %v970
  %1025 = vmatpush1.msra.mxu0 %v969
  %1026 = vmatprep.subr.mxu0 %v972
  %1027 = vmatpush1.msra.mxu0 %v971
  %1028 = vmatprep.subr.mxu0 %v974
  %1029 = vmatpush1.msra.mxu0 %v973
  %1030 = vmatprep.subr.mxu0 %v976
  %1031 = vmatpush1.msra.mxu0 %v975
  %1032 = vmatprep.subr.mxu0 %v978
  %1033 = vmatpush1.msra.mxu0 %v977
  %1034 = vmatprep.subr.mxu0 %v980
  %1035 = vmatpush1.msra.mxu0 %v979
  %1036 = vmatprep.subr.mxu0 %v982
  %1037 = vmatpush1.msra.mxu0 %v981
  %1038 = vmatprep.subr.mxu0 %v984
  %1039 = vmatpush1.msra.mxu0 %v983
  %1040 = vmatprep.subr.mxu0 %v986
  %1041 = vmatpush1.msra.mxu0 %v985
  %1042 = vmatprep.subr.mxu0 %v988
  %1043 = vmatpush1.msra.mxu0 %v987
  %1044 = vmatprep.subr.mxu0 %v990
  %1045 = vmatpush1.msra.mxu0 %v989
  %1046 = vmatprep.subr.mxu0 %v992
  %1047 = vmatpush1.msra.mxu0 %v991
  %1048 = vmatprep.subr.mxu0 %v994
  %1049 = vmatpush1.msra.mxu0 %v993
  %1050 = vmatprep.subr.mxu0 %v996
  %1051 = vmatpush1.msra.mxu0 %v995
  %1052 = vmatprep.subr.mxu0 %v998
  %1053 = vmatpush1.msra.mxu0 %v997
  %1054 = vmatprep.subr.mxu0 %v1000
  %1055 = vmatpush1.msra.mxu0 %v999
  %1056 = vmatprep.subr.mxu0 %v1002
  %1057 = vmatpush1.msra.mxu0 %v1001
  %1058 = vmatprep.subr.mxu0 %v1004
  %1059 = vmatpush1.msra.mxu0 %v1003
  %1060 = vmatprep.subr.mxu0 %v1006
  %1061 = vmatpush1.msra.mxu0 %v1005
  %1062 = vmatprep.subr.mxu0 0.0
  %1063 = vmatpush1.msra.mxu0 0.0
  %1064 = vmatprep.subr.mxu0 0.0
  %1065 = vmatpush1.msra.mxu0 0.0
  %1066 = vmatprep.subr.mxu0 0.0
  %1067 = vmatpush1.msra.mxu0 0.0
  %1068 = vmatprep.subr.mxu0 0.0
  %1069 = vmatpush1.msra.mxu0 0.0
  %1070 = vmatprep.subr.mxu0 0.0
  %1071 = vmatpush1.msra.mxu0 0.0
  %1072 = vmatprep.subr.mxu0 0.0
  %1073 = vmatpush1.msra.mxu0 0.0
  %1074 = vmatprep.subr.mxu0 0.0
  %1075 = vmatpush1.msra.mxu0 0.0
  %1076 = vmatprep.subr.mxu0 0.0
  %1077 = vmatpush1.msra.mxu0 0.0
  %1078 = vmatprep.mubr.f32.mxu0 %v1009
  %1079 = vmatmul.mubr.f32.gmra.mrb[0].mxu0 %v726
  %v1080 = vpop.f32.mrb[0].mxu0
  %v1081 = vadd.f32 0.0, %v1080
  %v1082 = vpop.f32.mrb[0].mxu0
  %v1083 = vadd.f32 0.0, %v1082
  %1084 = vmatprep.mubr.f32.mxu0 %v1012
  %1085 = vmatmul.mubr.f32.gmra.mrb[0].mxu0 %v730
  %v1086 = vpop.f32.mrb[0].mxu0
  %v1087 = vadd.f32 0.0, %v1086
  %v1088 = vpop.f32.mrb[0].mxu0
  %v1089 = vadd.f32 0.0, %v1088
  %1090 = vdwg.mxu0
  %v1091 = vsub.f32 %v726, %v1081
  %v1092 = vsub.f32 %v767, %v1083
  %v1093 = vsub.f32 %v730, %v1087
  %v1094 = vsub.f32 %v770, %v1089
  %v1095 = vmul.f32 %v1091, %v1091
  %v1096 = vmul.f32 %v1092, %v1092
  %v1097 = vmul.f32 %v1093, %v1093
  %v1098 = vmul.f32 %v1094, %v1094
  %v1100 = vsel %vm1007, %v1096, 0
  %v1103 = vsel %vm1007, %v1098, 0
  %1105 = vmatprep.subr.mxu0 %v960
  %1106 = vmatpush1.msra.mxu0 %v959
  %1107 = vmatprep.subr.mxu0 %v962
  %1108 = vmatpush1.msra.mxu0 %v961
  %1109 = vmatprep.subr.mxu0 %v964
  %1110 = vmatpush1.msra.mxu0 %v963
  %1111 = vmatprep.subr.mxu0 %v966
  %1112 = vmatpush1.msra.mxu0 %v965
  %1113 = vmatprep.subr.mxu0 %v968
  %1114 = vmatpush1.msra.mxu0 %v967
  %1115 = vmatprep.subr.mxu0 %v970
  %1116 = vmatpush1.msra.mxu0 %v969
  %1117 = vmatprep.subr.mxu0 %v972
  %1118 = vmatpush1.msra.mxu0 %v971
  %1119 = vmatprep.subr.mxu0 %v974
  %1120 = vmatpush1.msra.mxu0 %v973
  %1121 = vmatprep.subr.mxu0 %v976
  %1122 = vmatpush1.msra.mxu0 %v975
  %1123 = vmatprep.subr.mxu0 %v978
  %1124 = vmatpush1.msra.mxu0 %v977
  %1125 = vmatprep.subr.mxu0 %v980
  %1126 = vmatpush1.msra.mxu0 %v979
  %1127 = vmatprep.subr.mxu0 %v982
  %1128 = vmatpush1.msra.mxu0 %v981
  %1129 = vmatprep.subr.mxu0 %v984
  %1130 = vmatpush1.msra.mxu0 %v983
  %1131 = vmatprep.subr.mxu0 %v986
  %1132 = vmatpush1.msra.mxu0 %v985
  %1133 = vmatprep.subr.mxu0 %v988
  %1134 = vmatpush1.msra.mxu0 %v987
  %1135 = vmatprep.subr.mxu0 %v990
  %1136 = vmatpush1.msra.mxu0 %v989
  %1137 = vmatprep.subr.mxu0 %v992
  %1138 = vmatpush1.msra.mxu0 %v991
  %1139 = vmatprep.subr.mxu0 %v994
  %1140 = vmatpush1.msra.mxu0 %v993
  %1141 = vmatprep.subr.mxu0 %v996
  %1142 = vmatpush1.msra.mxu0 %v995
  %1143 = vmatprep.subr.mxu0 %v998
  %1144 = vmatpush1.msra.mxu0 %v997
  %1145 = vmatprep.subr.mxu0 %v1000
  %1146 = vmatpush1.msra.mxu0 %v999
  %1147 = vmatprep.subr.mxu0 %v1002
  %1148 = vmatpush1.msra.mxu0 %v1001
  %1149 = vmatprep.subr.mxu0 %v1004
  %1150 = vmatpush1.msra.mxu0 %v1003
  %1151 = vmatprep.subr.mxu0 %v1006
  %1152 = vmatpush1.msra.mxu0 %v1005
  %1153 = vmatprep.subr.mxu0 0.0
  %1154 = vmatpush1.msra.mxu0 0.0
  %1155 = vmatprep.subr.mxu0 0.0
  %1156 = vmatpush1.msra.mxu0 0.0
  %1157 = vmatprep.subr.mxu0 0.0
  %1158 = vmatpush1.msra.mxu0 0.0
  %1159 = vmatprep.subr.mxu0 0.0
  %1160 = vmatpush1.msra.mxu0 0.0
  %1161 = vmatprep.subr.mxu0 0.0
  %1162 = vmatpush1.msra.mxu0 0.0
  %1163 = vmatprep.subr.mxu0 0.0
  %1164 = vmatpush1.msra.mxu0 0.0
  %1165 = vmatprep.subr.mxu0 0.0
  %1166 = vmatpush1.msra.mxu0 0.0
  %1167 = vmatprep.subr.mxu0 0.0
  %1168 = vmatpush1.msra.mxu0 0.0
  %1169 = vmatprep.mubr.f32.mxu0 %v1100
  %1170 = vmatmul.mubr.f32.gmra.mrb[0].mxu0 %v1095
  %v1171 = vpop.f32.mrb[0].mxu0
  %v1172 = vadd.f32 1e-05, %v1171
  %v1173 = vpop.f32.mrb[0].mxu0
  %v1174 = vadd.f32 1e-05, %v1173
  %1175 = vmatprep.mubr.f32.mxu0 %v1103
  %1176 = vmatmul.mubr.f32.gmra.mrb[0].mxu0 %v1097
  %v1177 = vpop.f32.mrb[0].mxu0
  %v1178 = vadd.f32 1e-05, %v1177
  %v1179 = vpop.f32.mrb[0].mxu0
  %v1180 = vadd.f32 1e-05, %v1179
  %1181 = vdwg.mxu0
  %v1182 = vrsqrt.pop %v1172
  %v1183 = vrsqrt.pop %v1174
  %v1184 = vrsqrt.pop %v1178
  %v1185 = vrsqrt.pop %v1180
  %v1186 = vmul.f32 %v1091, %v1182
  %v1187 = vmul.f32 %v1092, %v1183
  %v1188 = vmul.f32 %v1093, %v1184
  %v1189 = vmul.f32 %v1094, %v1185
  %v1191 = vlaneseq
  %v1192 = vshrl.u32 %v1191, 7
  %v1193 = vsub.s32 0, %v1192
  %v1194 = vrot.slane %v956, %v1193
  %v1195 = vlaneseq
  %v1196 = vshrl.u32 %v1195, 7
  %v1197 = vsub.s32 1, %v1196
  %v1198 = vrot.slane %v956, %v1197
  %v1201 = vmul.f32 %v1186, %v1194
  %v1202 = vmul.f32 %v1187, %v1198
  %v1203 = vmul.f32 %v1188, %v1194
  %v1204 = vmul.f32 %v1189, %v1198
  %v1206 = vlaneseq
  %v1207 = vshrl.u32 %v1206, 7
  %v1208 = vsub.s32 0, %v1207
  %v1209 = vrot.slane %v958, %v1208
  %v1210 = vlaneseq
  %v1211 = vshrl.u32 %v1210, 7
  %v1212 = vsub.s32 1, %v1211
  %v1213 = vrot.slane %v958, %v1212
  %v1216 = vadd.f32 %v1201, %v1209
  %v1217 = vadd.f32 %v1202, %v1213
  %v1218 = vadd.f32 %v1203, %v1209
  %v1219 = vadd.f32 %v1204, %v1213
  %v1220 = vmax.f32 %v1216, 0.0
  %v1221 = vmax.f32 %v1217, 0.0
  %v1222 = vmax.f32 %v1218, 0.0
  %v1223 = vmax.f32 %v1219, 0.0
  %v1224 = vpack.c.bf16 %v954, %v953
  %v1225 = vld [vmem:[%s2 + $0x90] sm:$0xf]
  %v1226 = vld [vmem:[%s2 + $0x9c] sm:$0xf]
  %v1227 = vld [vmem:[%s2 + $0xa8] sm:$0xf]
  %v1228 = vld [vmem:[%s2 + $0xb4] sm:$0xf]
  %v1229 = vld [vmem:[%s2 + $0xc0] sm:$0xf]
  %v1230 = vld [vmem:[%s2 + $0xcc] sm:$0xf]
  %v1231 = vld [vmem:[%s2 + $0xd8] sm:$0xf]
  %v1232 = vld [vmem:[%s2 + $0xe4] sm:$0xf]
  %v1233 = vld [vmem:[%s2 + $0xf0] sm:$0xf]
  %v1234 = vld [vmem:[%s2 + $0xfc] sm:$0xf]
  %v1235 = vld [vmem:[%s2 + $0x108] sm:$0xf]
  %v1236 = vld [vmem:[%s2 + $0x114] sm:$0xf]
  %v1237 = vld [vmem:[%s2 + $0x120] sm:$0xf]
  %v1238 = vld [vmem:[%s2 + $0x12c] sm:$0xf]
  %v1239 = vld [vmem:[%s2 + $0x138] sm:$0xf]
  %v1240 = vld [vmem:[%s2 + $0x144] sm:$0xf]
  %v1241 = vld [vmem:[%s3 + $0x1b] ss:$0 sm:$0xff]
  %v1258 = vunpack.c.l.b16 %v1225
  %v1259 = vunpack.c.l.b16 %v1226
  %v1260 = vunpack.c.l.b16 %v1227
  %v1261 = vunpack.c.l.b16 %v1228
  %v1262 = vunpack.c.l.b16 %v1229
  %v1263 = vunpack.c.l.b16 %v1230
  %v1264 = vunpack.c.l.b16 %v1231
  %v1265 = vunpack.c.l.b16 %v1232
  %v1266 = vunpack.c.l.b16 %v1233
  %v1267 = vunpack.c.l.b16 %v1234
  %v1268 = vunpack.c.l.b16 %v1235
  %v1269 = vunpack.c.l.b16 %v1236
  %v1270 = vunpack.c.l.b16 %v1237
  %v1271 = vunpack.c.l.b16 %v1238
  %v1272 = vunpack.c.l.b16 %v1239
  %v1273 = vunpack.c.l.b16 %v1240
  %v1274 = vpack.c.b16 %v1259, %v1258
  %v1275 = vpack.c.b16 %v1261, %v1260
  %v1276 = vpack.c.b16 %v1263, %v1262
  %v1277 = vpack.c.b16 %v1265, %v1264
  %v1278 = vpack.c.b16 %v1267, %v1266
  %v1279 = vpack.c.b16 %v1269, %v1268
  %v1280 = vpack.c.b16 %v1271, %v1270
  %v1281 = vpack.c.b16 %v1273, %v1272
  %1290 = vmatprep.subr.bf16.mxu0 0
  %1291 = vmatpush1.bf16.msra.mxu0 %v1274
  %1292 = vmatprep.subr.bf16.mxu0 0
  %1293 = vmatpush1.bf16.msra.mxu0 %v1275
  %1294 = vmatprep.subr.bf16.mxu0 0
  %1295 = vmatpush1.bf16.msra.mxu0 %v1276
  %1296 = vmatprep.subr.bf16.mxu0 0
  %1297 = vmatpush1.bf16.msra.mxu0 %v1277
  %1298 = vmatprep.subr.bf16.mxu0 0
  %1299 = vmatpush1.bf16.msra.mxu0 %v1278
  %1300 = vmatprep.subr.bf16.mxu0 0
  %1301 = vmatpush1.bf16.msra.mxu0 %v1279
  %1302 = vmatprep.subr.bf16.mxu0 0
  %1303 = vmatpush1.bf16.msra.mxu0 %v1280
  %1304 = vmatprep.subr.bf16.mxu0 0
  %1305 = vmatpush1.bf16.msra.mxu0 %v1281
  %1306 = vmatprep.subr.bf16.mxu0 0
  %1307 = vmatpush1.bf16.msra.mxu0 0
  %1308 = vmatprep.subr.bf16.mxu0 0
  %1309 = vmatpush1.bf16.msra.mxu0 0
  %1310 = vmatprep.subr.bf16.mxu0 0
  %1311 = vmatpush1.bf16.msra.mxu0 0
  %1312 = vmatprep.subr.bf16.mxu0 0
  %1313 = vmatpush1.bf16.msra.mxu0 0
  %1314 = vmatprep.subr.bf16.mxu0 0
  %1315 = vmatpush1.bf16.msra.mxu0 0
  %1316 = vmatprep.subr.bf16.mxu0 0
  %1317 = vmatpush1.bf16.msra.mxu0 0
  %1318 = vmatprep.subr.bf16.mxu0 0
  %1319 = vmatpush1.bf16.msra.mxu0 0
  %1320 = vmatprep.subr.bf16.mxu0 0
  %1321 = vmatpush1.bf16.msra.mxu0 0
  %1322 = vmatprep.mubr.bf16.mxu0 0
  %1323 = vmatmul.mubr.bf16.gmra.mrb[0].mxu0 %v1224
  %v1324 = vpop.f32.mrb[0].mxu0
  %v1325 = vadd.f32 %v1241, %v1324
  %v1326 = vpop.f32.mrb[0].mxu0
  %v1327 = vpop.f32.mrb[0].mxu0
  %v1328 = vadd.f32 %v1241, %v1327
  %v1329 = vpop.f32.mrb[0].mxu0
  %1330 = vdwg.mxu0
  %v1331 = vld [vmem:[%s3 + $0x1c] ss:$0 sm:$0xff]
  %v1332 = vld [vmem:[%s3 + $0x1d] ss:$0 sm:$0xff]
  %1333 = vmatprep.subr.mxu0 0.0
  %1334 = vmatpush1.msra.mxu0 %v775
  %1335 = vmatprep.subr.mxu0 0.0
  %1336 = vmatpush1.msra.mxu0 %v776
  %1337 = vmatprep.subr.mxu0 0.0
  %1338 = vmatpush1.msra.mxu0 %v777
  %1339 = vmatprep.subr.mxu0 0.0
  %1340 = vmatpush1.msra.mxu0 %v778
  %1341 = vmatprep.subr.mxu0 0.0
  %1342 = vmatpush1.msra.mxu0 %v779
  %1343 = vmatprep.subr.mxu0 0.0
  %1344 = vmatpush1.msra.mxu0 %v780
  %1345 = vmatprep.subr.mxu0 0.0
  %1346 = vmatpush1.msra.mxu0 %v781
  %1347 = vmatprep.subr.mxu0 0.0
  %1348 = vmatpush1.msra.mxu0 %v782
  %1349 = vmatprep.subr.mxu0 0.0
  %1350 = vmatpush1.msra.mxu0 %v783
  %1351 = vmatprep.subr.mxu0 0.0
  %1352 = vmatpush1.msra.mxu0 %v784
  %1353 = vmatprep.subr.mxu0 0.0
  %1354 = vmatpush1.msra.mxu0 %v785
  %1355 = vmatprep.subr.mxu0 0.0
  %1356 = vmatpush1.msra.mxu0 %v786
  %1357 = vmatprep.subr.mxu0 0.0
  %1358 = vmatpush1.msra.mxu0 %v787
  %1359 = vmatprep.subr.mxu0 0.0
  %1360 = vmatpush1.msra.mxu0 %v788
  %1361 = vmatprep.subr.mxu0 0.0
  %1362 = vmatpush1.msra.mxu0 %v789
  %1363 = vmatprep.subr.mxu0 0.0
  %1364 = vmatpush1.msra.mxu0 %v790
  %1365 = vmatprep.subr.mxu0 0.0
  %1366 = vmatpush1.msra.mxu0 0.0
  %1367 = vmatprep.subr.mxu0 0.0
  %1368 = vmatpush1.msra.mxu0 0.0
  %1369 = vmatprep.subr.mxu0 0.0
  %1370 = vmatpush1.msra.mxu0 0.0
  %1371 = vmatprep.subr.mxu0 0.0
  %1372 = vmatpush1.msra.mxu0 0.0
  %1373 = vmatprep.subr.mxu0 0.0
  %1374 = vmatpush1.msra.mxu0 0.0
  %1375 = vmatprep.subr.mxu0 0.0
  %1376 = vmatpush1.msra.mxu0 0.0
  %1377 = vmatprep.subr.mxu0 0.0
  %1378 = vmatpush1.msra.mxu0 0.0
  %1379 = vmatprep.subr.mxu0 0.0
  %1380 = vmatpush1.msra.mxu0 0.0
  %1381 = vmatprep.subr.mxu0 0.0
  %1382 = vmatpush1.msra.mxu0 0.0
  %1383 = vmatprep.subr.mxu0 0.0
  %1384 = vmatpush1.msra.mxu0 0.0
  %1385 = vmatprep.subr.mxu0 0.0
  %1386 = vmatpush1.msra.mxu0 0.0
  %1387 = vmatprep.subr.mxu0 0.0
  %1388 = vmatpush1.msra.mxu0 0.0
  %1389 = vmatprep.subr.mxu0 0.0
  %1390 = vmatpush1.msra.mxu0 0.0
  %1391 = vmatprep.subr.mxu0 0.0
  %1392 = vmatpush1.msra.mxu0 0.0
  %1393 = vmatprep.subr.mxu0 0.0
  %1394 = vmatpush1.msra.mxu0 0.0
  %1395 = vmatprep.subr.mxu0 0.0
  %1396 = vmatpush1.msra.mxu0 0.0
  %1397 = vmatprep.mubr.f32.mxu0 0.0
  %1398 = vmatmul.mubr.f32.gmra.mrb[0].mxu0 %v1325
  %v1399 = vpop.f32.mrb[0].mxu0
  %v1400 = vadd.f32 0.0, %v1399
  %v1401 = vpop.f32.mrb[0].mxu0
  %1402 = vmatprep.mubr.f32.mxu0 0.0
  %1403 = vmatmul.mubr.f32.gmra.mrb[0].mxu0 %v1328
  %v1404 = vpop.f32.mrb[0].mxu0
  %v1405 = vadd.f32 0.0, %v1404
  %v1406 = vpop.f32.mrb[0].mxu0
  %1407 = vdwg.mxu0
  %v1408 = vsub.f32 %v1325, %v1400
  %v1409 = vsub.f32 %v1328, %v1405
  %v1410 = vmul.f32 %v1408, %v1408
  %v1411 = vmul.f32 %v1409, %v1409
  %1412 = vmatprep.subr.mxu0 0.0
  %1413 = vmatpush1.msra.mxu0 %v775
  %1414 = vmatprep.subr.mxu0 0.0
  %1415 = vmatpush1.msra.mxu0 %v776
  %1416 = vmatprep.subr.mxu0 0.0
  %1417 = vmatpush1.msra.mxu0 %v777
  %1418 = vmatprep.subr.mxu0 0.0
  %1419 = vmatpush1.msra.mxu0 %v778
  %1420 = vmatprep.subr.mxu0 0.0
  %1421 = vmatpush1.msra.mxu0 %v779
  %1422 = vmatprep.subr.mxu0 0.0
  %1423 = vmatpush1.msra.mxu0 %v780
  %1424 = vmatprep.subr.mxu0 0.0
  %1425 = vmatpush1.msra.mxu0 %v781
  %1426 = vmatprep.subr.mxu0 0.0
  %1427 = vmatpush1.msra.mxu0 %v782
  %1428 = vmatprep.subr.mxu0 0.0
  %1429 = vmatpush1.msra.mxu0 %v783
  %1430 = vmatprep.subr.mxu0 0.0
  %1431 = vmatpush1.msra.mxu0 %v784
  %1432 = vmatprep.subr.mxu0 0.0
  %1433 = vmatpush1.msra.mxu0 %v785
  %1434 = vmatprep.subr.mxu0 0.0
  %1435 = vmatpush1.msra.mxu0 %v786
  %1436 = vmatprep.subr.mxu0 0.0
  %1437 = vmatpush1.msra.mxu0 %v787
  %1438 = vmatprep.subr.mxu0 0.0
  %1439 = vmatpush1.msra.mxu0 %v788
  %1440 = vmatprep.subr.mxu0 0.0
  %1441 = vmatpush1.msra.mxu0 %v789
  %1442 = vmatprep.subr.mxu0 0.0
  %1443 = vmatpush1.msra.mxu0 %v790
  %1444 = vmatprep.subr.mxu0 0.0
  %1445 = vmatpush1.msra.mxu0 0.0
  %1446 = vmatprep.subr.mxu0 0.0
  %1447 = vmatpush1.msra.mxu0 0.0
  %1448 = vmatprep.subr.mxu0 0.0
  %1449 = vmatpush1.msra.mxu0 0.0
  %1450 = vmatprep.subr.mxu0 0.0
  %1451 = vmatpush1.msra.mxu0 0.0
  %1452 = vmatprep.subr.mxu0 0.0
  %1453 = vmatpush1.msra.mxu0 0.0
  %1454 = vmatprep.subr.mxu0 0.0
  %1455 = vmatpush1.msra.mxu0 0.0
  %1456 = vmatprep.subr.mxu0 0.0
  %1457 = vmatpush1.msra.mxu0 0.0
  %1458 = vmatprep.subr.mxu0 0.0
  %1459 = vmatpush1.msra.mxu0 0.0
  %1460 = vmatprep.subr.mxu0 0.0
  %1461 = vmatpush1.msra.mxu0 0.0
  %1462 = vmatprep.subr.mxu0 0.0
  %1463 = vmatpush1.msra.mxu0 0.0
  %1464 = vmatprep.subr.mxu0 0.0
  %1465 = vmatpush1.msra.mxu0 0.0
  %1466 = vmatprep.subr.mxu0 0.0
  %1467 = vmatpush1.msra.mxu0 0.0
  %1468 = vmatprep.subr.mxu0 0.0
  %1469 = vmatpush1.msra.mxu0 0.0
  %1470 = vmatprep.subr.mxu0 0.0
  %1471 = vmatpush1.msra.mxu0 0.0
  %1472 = vmatprep.subr.mxu0 0.0
  %1473 = vmatpush1.msra.mxu0 0.0
  %1474 = vmatprep.subr.mxu0 0.0
  %1475 = vmatpush1.msra.mxu0 0.0
  %1476 = vmatprep.mubr.f32.mxu0 0.0
  %1477 = vmatmul.mubr.f32.gmra.mrb[0].mxu0 %v1410
  %v1478 = vpop.f32.mrb[0].mxu0
  %v1479 = vadd.f32 1e-05, %v1478
  %v1480 = vpop.f32.mrb[0].mxu0
  %1481 = vmatprep.mubr.f32.mxu0 0.0
  %1482 = vmatmul.mubr.f32.gmra.mrb[0].mxu0 %v1411
  %v1483 = vpop.f32.mrb[0].mxu0
  %v1484 = vadd.f32 1e-05, %v1483
  %v1485 = vpop.f32.mrb[0].mxu0
  %1486 = vdwg.mxu0
  %v1487 = vrsqrt.pop %v1479
  %v1488 = vrsqrt.pop %v1484
  %v1489 = vmul.f32 %v1408, %v1487
  %v1490 = vmul.f32 %v1409, %v1488
  %v1491 = vmul.f32 %v1489, %v1331
  %v1492 = vmul.f32 %v1490, %v1331
  %v1493 = vadd.f32 %v1491, %v1332
  %v1494 = vadd.f32 %v1492, %v1332
  %v1495 = vmax.f32 %v1493, 0.0
  %v1496 = vmax.f32 %v1494, 0.0
  %v1497 = vpack.c.bf16 %v1222, %v1220
  %v1498 = vpack.c.bf16 %v1223, %v1221
  %v1499 = vld [vmem:[%s2 + $0x150] sm:$0xff]
  %v1500 = vld [vmem:[%s2 + $0x15c] sm:$0xff]
  %v1501 = vld [vmem:[%s2 + $0x168] sm:$0xff]
  %v1502 = vld [vmem:[%s2 + $0x174] sm:$0xff]
  %v1503 = vld [vmem:[%s2 + $0x180] sm:$0xff]
  %v1504 = vld [vmem:[%s2 + $0x18c] sm:$0xff]
  %v1505 = vld [vmem:[%s2 + $0x198] sm:$0xff]
  %v1506 = vld [vmem:[%s2 + $0x1a4] sm:$0xff]
  %v1507 = vld [vmem:[%s2 + $0x1b0] sm:$0xff]
  %v1508 = vld [vmem:[%s2 + $0x1bc] sm:$0xff]
  %v1509 = vld [vmem:[%s2 + $0x1c8] sm:$0xff]
  %v1510 = vld [vmem:[%s2 + $0x1d4] sm:$0xff]
  %v1511 = vld [vmem:[%s2 + $0x1e0] sm:$0xff]
  %v1512 = vld [vmem:[%s2 + $0x1ec] sm:$0xff]
  %v1513 = vld [vmem:[%s2 + $0x1f8] sm:$0xff]
  %v1514 = vld [vmem:[%s2 + $0x204] sm:$0xff]
  %v1515 = vld [vmem:[%s2 + $0x210] sm:$0xff]
  %v1516 = vld [vmem:[%s2 + $0x21c] sm:$0xff]
  %v1517 = vld [vmem:[%s2 + $0x228] sm:$0xff]
  %v1518 = vld [vmem:[%s2 + $0x234] sm:$0xff]
  %v1519 = vld [vmem:[%s2 + $0x240] sm:$0xff]
  %v1520 = vld [vmem:[%s2 + $0x24c] sm:$0xff]
  %v1521 = vld [vmem:[%s2 + $0x258] sm:$0xff]
  %v1522 = vld [vmem:[%s2 + $0x264] sm:$0xff]
  %s1523 = scalar_lea.vmem %s3, 30
  %v1524 = vld [vmem:[%s1523] ss:$8 sm:$0x3]
  %v1526 = vlaneseq
  %v1527 = vshrl.u32 %v1526, 7
  %v1528 = vsub.s32 0, %v1527
  %v1529 = vrot.slane %v1524, %v1528
  %v1530 = vlaneseq
  %v1531 = vshrl.u32 %v1530, 7
  %v1532 = vsub.s32 1, %v1531
  %v1533 = vrot.slane %v1524, %v1532
  %v1560 = vunpack.c.l.b16 %v1499
  %v1561 = vunpack.c.h.b16 %v1499
  %v1562 = vunpack.c.l.b16 %v1500
  %v1563 = vunpack.c.h.b16 %v1500
  %v1564 = vunpack.c.l.b16 %v1501
  %v1565 = vunpack.c.h.b16 %v1501
  %v1566 = vunpack.c.l.b16 %v1502
  %v1567 = vunpack.c.h.b16 %v1502
  %v1568 = vunpack.c.l.b16 %v1503
  %v1569 = vunpack.c.h.b16 %v1503
  %v1570 = vunpack.c.l.b16 %v1504
  %v1571 = vunpack.c.h.b16 %v1504
  %v1572 = vunpack.c.l.b16 %v1505
  %v1573 = vunpack.c.h.b16 %v1505
  %v1574 = vunpack.c.l.b16 %v1506
  %v1575 = vunpack.c.h.b16 %v1506
  %v1576 = vunpack.c.l.b16 %v1507
  %v1577 = vunpack.c.h.b16 %v1507
  %v1578 = vunpack.c.l.b16 %v1508
  %v1579 = vunpack.c.h.b16 %v1508
  %v1580 = vunpack.c.l.b16 %v1509
  %v1581 = vunpack.c.h.b16 %v1509
  %v1582 = vunpack.c.l.b16 %v1510
  %v1583 = vunpack.c.h.b16 %v1510
  %v1584 = vunpack.c.l.b16 %v1511
  %v1585 = vunpack.c.h.b16 %v1511
  %v1586 = vunpack.c.l.b16 %v1512
  %v1587 = vunpack.c.h.b16 %v1512
  %v1588 = vunpack.c.l.b16 %v1513
  %v1589 = vunpack.c.h.b16 %v1513
  %v1590 = vunpack.c.l.b16 %v1514
  %v1591 = vunpack.c.h.b16 %v1514
  %v1592 = vunpack.c.l.b16 %v1515
  %v1593 = vunpack.c.h.b16 %v1515
  %v1594 = vunpack.c.l.b16 %v1516
  %v1595 = vunpack.c.h.b16 %v1516
  %v1596 = vunpack.c.l.b16 %v1517
  %v1597 = vunpack.c.h.b16 %v1517
  %v1598 = vunpack.c.l.b16 %v1518
  %v1599 = vunpack.c.h.b16 %v1518
  %v1600 = vunpack.c.l.b16 %v1519
  %v1601 = vunpack.c.h.b16 %v1519
  %v1602 = vunpack.c.l.b16 %v1520
  %v1603 = vunpack.c.h.b16 %v1520
  %v1604 = vunpack.c.l.b16 %v1521
  %v1605 = vunpack.c.h.b16 %v1521
  %v1606 = vunpack.c.l.b16 %v1522
  %v1607 = vunpack.c.h.b16 %v1522
  %v1608 = vpack.c.b16 %v1562, %v1560
  %v1609 = vpack.c.b16 %v1563, %v1561
  %v1610 = vpack.c.b16 %v1566, %v1564
  %v1611 = vpack.c.b16 %v1567, %v1565
  %v1612 = vpack.c.b16 %v1570, %v1568
  %v1613 = vpack.c.b16 %v1571, %v1569
  %v1614 = vpack.c.b16 %v1574, %v1572
  %v1615 = vpack.c.b16 %v1575, %v1573
  %v1616 = vpack.c.b16 %v1578, %v1576
  %v1617 = vpack.c.b16 %v1579, %v1577
  %v1618 = vpack.c.b16 %v1582, %v1580
  %v1619 = vpack.c.b16 %v1583, %v1581
  %v1620 = vpack.c.b16 %v1586, %v1584
  %v1621 = vpack.c.b16 %v1587, %v1585
  %v1622 = vpack.c.b16 %v1590, %v1588
  %v1623 = vpack.c.b16 %v1591, %v1589
  %v1624 = vpack.c.b16 %v1594, %v1592
  %v1625 = vpack.c.b16 %v1595, %v1593
  %v1626 = vpack.c.b16 %v1598, %v1596
  %v1627 = vpack.c.b16 %v1599, %v1597
  %v1628 = vpack.c.b16 %v1602, %v1600
  %v1629 = vpack.c.b16 %v1603, %v1601
  %v1630 = vpack.c.b16 %v1606, %v1604
  %v1631 = vpack.c.b16 %v1607, %v1605
  %v1657 = vsel %vm1007, %v1498, 0
  %1659 = vmatprep.subr.bf16.mxu0 %v1609
  %1660 = vmatpush1.bf16.msra.mxu0 %v1608
  %1661 = vmatprep.subr.bf16.mxu0 %v1611
  %1662 = vmatpush1.bf16.msra.mxu0 %v1610
  %1663 = vmatprep.subr.bf16.mxu0 %v1613
  %1664 = vmatpush1.bf16.msra.mxu0 %v1612
  %1665 = vmatprep.subr.bf16.mxu0 %v1615
  %1666 = vmatpush1.bf16.msra.mxu0 %v1614
  %1667 = vmatprep.subr.bf16.mxu0 %v1617
  %1668 = vmatpush1.bf16.msra.mxu0 %v1616
  %1669 = vmatprep.subr.bf16.mxu0 %v1619
  %1670 = vmatpush1.bf16.msra.mxu0 %v1618
  %1671 = vmatprep.subr.bf16.mxu0 %v1621
  %1672 = vmatpush1.bf16.msra.mxu0 %v1620
  %1673 = vmatprep.subr.bf16.mxu0 %v1623
  %1674 = vmatpush1.bf16.msra.mxu0 %v1622
  %1675 = vmatprep.subr.bf16.mxu0 %v1625
  %1676 = vmatpush1.bf16.msra.mxu0 %v1624
  %1677 = vmatprep.subr.bf16.mxu0 %v1627
  %1678 = vmatpush1.bf16.msra.mxu0 %v1626
  %1679 = vmatprep.subr.bf16.mxu0 %v1629
  %1680 = vmatpush1.bf16.msra.mxu0 %v1628
  %1681 = vmatprep.subr.bf16.mxu0 %v1631
  %1682 = vmatpush1.bf16.msra.mxu0 %v1630
  %1683 = vmatprep.subr.bf16.mxu0 0
  %1684 = vmatpush1.bf16.msra.mxu0 0
  %1685 = vmatprep.subr.bf16.mxu0 0
  %1686 = vmatpush1.bf16.msra.mxu0 0
  %1687 = vmatprep.subr.bf16.mxu0 0
  %1688 = vmatpush1.bf16.msra.mxu0 0
  %1689 = vmatprep.subr.bf16.mxu0 0
  %1690 = vmatpush1.bf16.msra.mxu0 0
  %1691 = vmatprep.mubr.bf16.mxu0 %v1657
  %1692 = vmatmul.mubr.bf16.gmra.mrb[0].mxu0 %v1497
  %v1693 = vpop.f32.mrb[0].mxu0
  %v1694 = vadd.f32 %v1529, %v1693
  %v1695 = vpop.f32.mrb[0].mxu0
  %v1696 = vadd.f32 %v1533, %v1695
  %v1697 = vpop.f32.mrb[0].mxu0
  %v1698 = vadd.f32 %v1529, %v1697
  %v1699 = vpop.f32.mrb[0].mxu0
  %v1700 = vadd.f32 %v1533, %v1699
  %1701 = vdwg.mxu0
  %s1702 = scalar_lea.vmem %s3, 31
  %v1703 = vld [vmem:[%s1702] ss:$8 sm:$0x3]
  %s1704 = scalar_lea.vmem %s3, 48
  %v1705 = vld [vmem:[%s1704] ss:$8 sm:$0x3]
  %v1707 = vsel %vm1007, %v1696, 0
  %v1710 = vsel %vm1007, %v1700, 0
  %1712 = vmatprep.subr.mxu0 %v960
  %1713 = vmatpush1.msra.mxu0 %v959
  %1714 = vmatprep.subr.mxu0 %v962
  %1715 = vmatpush1.msra.mxu0 %v961
  %1716 = vmatprep.subr.mxu0 %v964
  %1717 = vmatpush1.msra.mxu0 %v963
  %1718 = vmatprep.subr.mxu0 %v966
  %1719 = vmatpush1.msra.mxu0 %v965
  %1720 = vmatprep.subr.mxu0 %v968
  %1721 = vmatpush1.msra.mxu0 %v967
  %1722 = vmatprep.subr.mxu0 %v970
  %1723 = vmatpush1.msra.mxu0 %v969
  %1724 = vmatprep.subr.mxu0 %v972
  %1725 = vmatpush1.msra.mxu0 %v971
  %1726 = vmatprep.subr.mxu0 %v974
  %1727 = vmatpush1.msra.mxu0 %v973
  %1728 = vmatprep.subr.mxu0 %v976
  %1729 = vmatpush1.msra.mxu0 %v975
  %1730 = vmatprep.subr.mxu0 %v978
  %1731 = vmatpush1.msra.mxu0 %v977
  %1732 = vmatprep.subr.mxu0 %v980
  %1733 = vmatpush1.msra.mxu0 %v979
  %1734 = vmatprep.subr.mxu0 %v982
  %1735 = vmatpush1.msra.mxu0 %v981
  %1736 = vmatprep.subr.mxu0 %v984
  %1737 = vmatpush1.msra.mxu0 %v983
  %1738 = vmatprep.subr.mxu0 %v986
  %1739 = vmatpush1.msra.mxu0 %v985
  %1740 = vmatprep.subr.mxu0 %v988
  %1741 = vmatpush1.msra.mxu0 %v987
  %1742 = vmatprep.subr.mxu0 %v990
  %1743 = vmatpush1.msra.mxu0 %v989
  %1744 = vmatprep.subr.mxu0 %v992
  %1745 = vmatpush1.msra.mxu0 %v991
  %1746 = vmatprep.subr.mxu0 %v994
  %1747 = vmatpush1.msra.mxu0 %v993
  %1748 = vmatprep.subr.mxu0 %v996
  %1749 = vmatpush1.msra.mxu0 %v995
  %1750 = vmatprep.subr.mxu0 %v998
  %1751 = vmatpush1.msra.mxu0 %v997
  %1752 = vmatprep.subr.mxu0 %v1000
  %1753 = vmatpush1.msra.mxu0 %v999
  %1754 = vmatprep.subr.mxu0 %v1002
  %1755 = vmatpush1.msra.mxu0 %v1001
  %1756 = vmatprep.subr.mxu0 %v1004
  %1757 = vmatpush1.msra.mxu0 %v1003
  %1758 = vmatprep.subr.mxu0 %v1006
  %1759 = vmatpush1.msra.mxu0 %v1005
  %1760 = vmatprep.subr.mxu0 0.0
  %1761 = vmatpush1.msra.mxu0 0.0
  %1762 = vmatprep.subr.mxu0 0.0
  %1763 = vmatpush1.msra.mxu0 0.0
  %1764 = vmatprep.subr.mxu0 0.0
  %1765 = vmatpush1.msra.mxu0 0.0
  %1766 = vmatprep.subr.mxu0 0.0
  %1767 = vmatpush1.msra.mxu0 0.0
  %1768 = vmatprep.subr.mxu0 0.0
  %1769 = vmatpush1.msra.mxu0 0.0
  %1770 = vmatprep.subr.mxu0 0.0
  %1771 = vmatpush1.msra.mxu0 0.0
  %1772 = vmatprep.subr.mxu0 0.0
  %1773 = vmatpush1.msra.mxu0 0.0
  %1774 = vmatprep.subr.mxu0 0.0
  %1775 = vmatpush1.msra.mxu0 0.0
  %1776 = vmatprep.mubr.f32.mxu0 %v1707
  %1777 = vmatmul.mubr.f32.gmra.mrb[0].mxu0 %v1694
  %v1778 = vpop.f32.mrb[0].mxu0
  %v1779 = vadd.f32 0.0, %v1778
  %v1780 = vpop.f32.mrb[0].mxu0
  %v1781 = vadd.f32 0.0, %v1780
  %1782 = vmatprep.mubr.f32.mxu0 %v1710
  %1783 = vmatmul.mubr.f32.gmra.mrb[0].mxu0 %v1698
  %v1784 = vpop.f32.mrb[0].mxu0
  %v1785 = vadd.f32 0.0, %v1784
  %v1786 = vpop.f32.mrb[0].mxu0
  %v1787 = vadd.f32 0.0, %v1786
  %1788 = vdwg.mxu0
  %v1789 = vsub.f32 %v1694, %v1779
  %v1790 = vsub.f32 %v1696, %v1781
  %v1791 = vsub.f32 %v1698, %v1785
  %v1792 = vsub.f32 %v1700, %v1787
  %v1793 = vmul.f32 %v1789, %v1789
  %v1794 = vmul.f32 %v1790, %v1790
  %v1795 = vmul.f32 %v1791, %v1791
  %v1796 = vmul.f32 %v1792, %v1792
  %v1798 = vsel %vm1007, %v1794, 0
  %v1801 = vsel %vm1007, %v1796, 0
  %1803 = vmatprep.subr.mxu0 %v960
  %1804 = vmatpush1.msra.mxu0 %v959
  %1805 = vmatprep.subr.mxu0 %v962
  %1806 = vmatpush1.msra.mxu0 %v961
  %1807 = vmatprep.subr.mxu0 %v964
  %1808 = vmatpush1.msra.mxu0 %v963
  %1809 = vmatprep.subr.mxu0 %v966
  %1810 = vmatpush1.msra.mxu0 %v965
  %1811 = vmatprep.subr.mxu0 %v968
  %1812 = vmatpush1.msra.mxu0 %v967
  %1813 = vmatprep.subr.mxu0 %v970
  %1814 = vmatpush1.msra.mxu0 %v969
  %1815 = vmatprep.subr.mxu0 %v972
  %1816 = vmatpush1.msra.mxu0 %v971
  %1817 = vmatprep.subr.mxu0 %v974
  %1818 = vmatpush1.msra.mxu0 %v973
  %1819 = vmatprep.subr.mxu0 %v976
  %1820 = vmatpush1.msra.mxu0 %v975
  %1821 = vmatprep.subr.mxu0 %v978
  %1822 = vmatpush1.msra.mxu0 %v977
  %1823 = vmatprep.subr.mxu0 %v980
  %1824 = vmatpush1.msra.mxu0 %v979
  %1825 = vmatprep.subr.mxu0 %v982
  %1826 = vmatpush1.msra.mxu0 %v981
  %1827 = vmatprep.subr.mxu0 %v984
  %1828 = vmatpush1.msra.mxu0 %v983
  %1829 = vmatprep.subr.mxu0 %v986
  %1830 = vmatpush1.msra.mxu0 %v985
  %1831 = vmatprep.subr.mxu0 %v988
  %1832 = vmatpush1.msra.mxu0 %v987
  %1833 = vmatprep.subr.mxu0 %v990
  %1834 = vmatpush1.msra.mxu0 %v989
  %1835 = vmatprep.subr.mxu0 %v992
  %1836 = vmatpush1.msra.mxu0 %v991
  %1837 = vmatprep.subr.mxu0 %v994
  %1838 = vmatpush1.msra.mxu0 %v993
  %1839 = vmatprep.subr.mxu0 %v996
  %1840 = vmatpush1.msra.mxu0 %v995
  %1841 = vmatprep.subr.mxu0 %v998
  %1842 = vmatpush1.msra.mxu0 %v997
  %1843 = vmatprep.subr.mxu0 %v1000
  %1844 = vmatpush1.msra.mxu0 %v999
  %1845 = vmatprep.subr.mxu0 %v1002
  %1846 = vmatpush1.msra.mxu0 %v1001
  %1847 = vmatprep.subr.mxu0 %v1004
  %1848 = vmatpush1.msra.mxu0 %v1003
  %1849 = vmatprep.subr.mxu0 %v1006
  %1850 = vmatpush1.msra.mxu0 %v1005
  %1851 = vmatprep.subr.mxu0 0.0
  %1852 = vmatpush1.msra.mxu0 0.0
  %1853 = vmatprep.subr.mxu0 0.0
  %1854 = vmatpush1.msra.mxu0 0.0
  %1855 = vmatprep.subr.mxu0 0.0
  %1856 = vmatpush1.msra.mxu0 0.0
  %1857 = vmatprep.subr.mxu0 0.0
  %1858 = vmatpush1.msra.mxu0 0.0
  %1859 = vmatprep.subr.mxu0 0.0
  %1860 = vmatpush1.msra.mxu0 0.0
  %1861 = vmatprep.subr.mxu0 0.0
  %1862 = vmatpush1.msra.mxu0 0.0
  %1863 = vmatprep.subr.mxu0 0.0
  %1864 = vmatpush1.msra.mxu0 0.0
  %1865 = vmatprep.subr.mxu0 0.0
  %1866 = vmatpush1.msra.mxu0 0.0
  %1867 = vmatprep.mubr.f32.mxu0 %v1798
  %1868 = vmatmul.mubr.f32.gmra.mrb[0].mxu0 %v1793
  %v1869 = vpop.f32.mrb[0].mxu0
  %v1870 = vadd.f32 1e-05, %v1869
  %v1871 = vpop.f32.mrb[0].mxu0
  %v1872 = vadd.f32 1e-05, %v1871
  %1873 = vmatprep.mubr.f32.mxu0 %v1801
  %1874 = vmatmul.mubr.f32.gmra.mrb[0].mxu0 %v1795
  %v1875 = vpop.f32.mrb[0].mxu0
  %v1876 = vadd.f32 1e-05, %v1875
  %v1877 = vpop.f32.mrb[0].mxu0
  %v1878 = vadd.f32 1e-05, %v1877
  %1879 = vdwg.mxu0
  %v1880 = vrsqrt.pop %v1870
  %v1881 = vrsqrt.pop %v1872
  %v1882 = vrsqrt.pop %v1876
  %v1883 = vrsqrt.pop %v1878
  %v1884 = vmul.f32 %v1789, %v1880
  %v1885 = vmul.f32 %v1790, %v1881
  %v1886 = vmul.f32 %v1791, %v1882
  %v1887 = vmul.f32 %v1792, %v1883
  %v1889 = vlaneseq
  %v1890 = vshrl.u32 %v1889, 7
  %v1891 = vsub.s32 0, %v1890
  %v1892 = vrot.slane %v1703, %v1891
  %v1893 = vlaneseq
  %v1894 = vshrl.u32 %v1893, 7
  %v1895 = vsub.s32 1, %v1894
  %v1896 = vrot.slane %v1703, %v1895
  %v1899 = vmul.f32 %v1884, %v1892
  %v1900 = vmul.f32 %v1885, %v1896
  %v1901 = vmul.f32 %v1886, %v1892
  %v1902 = vmul.f32 %v1887, %v1896
  %v1904 = vlaneseq
  %v1905 = vshrl.u32 %v1904, 7
  %v1906 = vsub.s32 0, %v1905
  %v1907 = vrot.slane %v1705, %v1906
  %v1908 = vlaneseq
  %v1909 = vshrl.u32 %v1908, 7
  %v1910 = vsub.s32 1, %v1909
  %v1911 = vrot.slane %v1705, %v1910
  %v1914 = vadd.f32 %v1899, %v1907
  %v1915 = vadd.f32 %v1900, %v1911
  %v1916 = vadd.f32 %v1901, %v1907
  %v1917 = vadd.f32 %v1902, %v1911
  %v1918 = vmax.f32 %v1914, 0.0
  %v1919 = vmax.f32 %v1915, 0.0
  %v1920 = vmax.f32 %v1916, 0.0
  %v1921 = vmax.f32 %v1917, 0.0
  %v1922 = vmul.f32 %v767, 1.442695
  %v1923 = vpow.pop %v1922
  %v1924 = vmul.f32 %v770, 1.442695
  %v1925 = vpow.pop %v1924
  %v1926 = vld [vmem:[%s4 + $0x380] sm:$0xff]
  %v1927 = vld [vmem:[%s4 + $0x390] sm:$0xff]
  %v1928 = vld [vmem:[%s4 + $0x3a0] sm:$0xff]
  %1931 = vrot.lane.b32.xlu0 %v1923, 64
  %v1932 = vpop.permute.xlu0 %1931
  %1933 = vrot.lane.b32.xlu0 %v1925, 64
  %v1934 = vpop.permute.xlu0 %1933
  %vm1935 = vcmask 195584
  %v1936 = vsel %vm1935, %v1932, 0
  %v1938 = vsel %vm1935, %v1934, 0
  %1940 = vmatprep.subr.mxu0 0.0
  %1941 = vmatpush1.msra.mxu0 %v1926
  %1942 = vmatprep.subr.mxu0 0.0
  %1943 = vmatpush1.msra.mxu0 %v1927
  %1944 = vmatprep.subr.mxu0 0.0
  %1945 = vmatpush1.msra.mxu0 %v1928
  %1946 = vmatprep.subr.mxu0 0.0
  %1947 = vmatpush1.msra.mxu0 0.0
  %1948 = vmatprep.subr.mxu0 0.0
  %1949 = vmatpush1.msra.mxu0 0.0
  %1950 = vmatprep.subr.mxu0 0.0
  %1951 = vmatpush1.msra.mxu0 0.0
  %1952 = vmatprep.subr.mxu0 0.0
  %1953 = vmatpush1.msra.mxu0 0.0
  %1954 = vmatprep.subr.mxu0 0.0
  %1955 = vmatpush1.msra.mxu0 0.0
  %1956 = vmatprep.subr.mxu0 0.0
  %1957 = vmatpush1.msra.mxu0 0.0
  %1958 = vmatprep.subr.mxu0 0.0
  %1959 = vmatpush1.msra.mxu0 0.0
  %1960 = vmatprep.subr.mxu0 0.0
  %1961 = vmatpush1.msra.mxu0 0.0
  %1962 = vmatprep.subr.mxu0 0.0
  %1963 = vmatpush1.msra.mxu0 0.0
  %1964 = vmatprep.subr.mxu0 0.0
  %1965 = vmatpush1.msra.mxu0 0.0
  %1966 = vmatprep.subr.mxu0 0.0
  %1967 = vmatpush1.msra.mxu0 0.0
  %1968 = vmatprep.subr.mxu0 0.0
  %1969 = vmatpush1.msra.mxu0 0.0
  %1970 = vmatprep.subr.mxu0 0.0
  %1971 = vmatpush1.msra.mxu0 0.0
  %1972 = vmatprep.subr.mxu0 0.0
  %1973 = vmatpush1.msra.mxu0 0.0
  %1974 = vmatprep.subr.mxu0 0.0
  %1975 = vmatpush1.msra.mxu0 0.0
  %1976 = vmatprep.subr.mxu0 0.0
  %1977 = vmatpush1.msra.mxu0 0.0
  %1978 = vmatprep.subr.mxu0 0.0
  %1979 = vmatpush1.msra.mxu0 0.0
  %1980 = vmatprep.subr.mxu0 0.0
  %1981 = vmatpush1.msra.mxu0 0.0
  %1982 = vmatprep.subr.mxu0 0.0
  %1983 = vmatpush1.msra.mxu0 0.0
  %1984 = vmatprep.subr.mxu0 0.0
  %1985 = vmatpush1.msra.mxu0 0.0
  %1986 = vmatprep.subr.mxu0 0.0
  %1987 = vmatpush1.msra.mxu0 0.0
  %1988 = vmatprep.subr.mxu0 0.0
  %1989 = vmatpush1.msra.mxu0 0.0
  %1990 = vmatprep.subr.mxu0 0.0
  %1991 = vmatpush1.msra.mxu0 0.0
  %1992 = vmatprep.subr.mxu0 0.0
  %1993 = vmatpush1.msra.mxu0 0.0
  %1994 = vmatprep.subr.mxu0 0.0
  %1995 = vmatpush1.msra.mxu0 0.0
  %1996 = vmatprep.subr.mxu0 0.0
  %1997 = vmatpush1.msra.mxu0 0.0
  %1998 = vmatprep.subr.mxu0 0.0
  %1999 = vmatpush1.msra.mxu0 0.0
  %2000 = vmatprep.subr.mxu0 0.0
  %2001 = vmatpush1.msra.mxu0 0.0
  %2002 = vmatprep.subr.mxu0 0.0
  %2003 = vmatpush1.msra.mxu0 0.0
  %2004 = vmatprep.mubr.f32.mxu0 0.0
  %2005 = vmatmul.mubr.f32.gmra.mrb[0].mxu0 %v1936
  %v2006 = vpop.f32.mrb[0].mxu0
  %v2007 = vadd.f32 0.0, %v2006
  %v2008 = vpop.f32.mrb[0].mxu0
  %2009 = vmatprep.mubr.f32.mxu0 0.0
  %2010 = vmatmul.mubr.f32.gmra.mrb[0].mxu0 %v1938
  %v2011 = vpop.f32.mrb[0].mxu0
  %v2012 = vadd.f32 0.0, %v2011
  %v2013 = vpop.f32.mrb[0].mxu0
  %2014 = vdwg.mxu0
  %v2015 = vrcp.pop %v2007
  %v2016 = vrcp.pop %v2012
  %2019 = vrot.lane.b32.xlu0 %v2015, 64
  %v2020 = vpop.permute.xlu0 %2019
  %2021 = vrot.lane.b32.xlu0 %v2016, 64
  %v2022 = vpop.permute.xlu0 %2021
  %v2025 = vmul.f32 %v1923, %v2020
  %v2026 = vmul.f32 %v1925, %v2022
  %v2027 = vld [vmem:[%s4 + $0x3b0] sm:$0xff]
  %v2028 = vld [vmem:[%s4 + $0x3b8] sm:$0xff]
  %v2029 = vld [vmem:[%s4 + $0x3c0] sm:$0xff]
  %v2030 = vld [vmem:[%s4 + $0x3c8] sm:$0xff]
  %v2031 = vld [vmem:[%s4 + $0x3d0] sm:$0xff]
  %v2032 = vld [vmem:[%s4 + $0x3d8] sm:$0xff]
  %2035 = vrot.lane.b32.xlu0 %v2025, 64
  %v2036 = vpop.permute.xlu0 %2035
  %2037 = vrot.lane.b32.xlu0 %v2026, 64
  %v2038 = vpop.permute.xlu0 %2037
  %v2039 = vsel %vm1935, %v2036, 0
  %v2041 = vsel %vm1935, %v2038, 0
  %2043 = vmatprep.subr.mxu0 %v2028
  %2044 = vmatpush1.msra.mxu0 %v2027
  %2045 = vmatprep.subr.mxu0 %v2030
  %2046 = vmatpush1.msra.mxu0 %v2029
  %2047 = vmatprep.subr.mxu0 %v2032
  %2048 = vmatpush1.msra.mxu0 %v2031
  %2049 = vmatprep.subr.mxu0 0.0
  %2050 = vmatpush1.msra.mxu0 0.0
  %2051 = vmatprep.subr.mxu0 0.0
  %2052 = vmatpush1.msra.mxu0 0.0
  %2053 = vmatprep.subr.mxu0 0.0
  %2054 = vmatpush1.msra.mxu0 0.0
  %2055 = vmatprep.subr.mxu0 0.0
  %2056 = vmatpush1.msra.mxu0 0.0
  %2057 = vmatprep.subr.mxu0 0.0
  %2058 = vmatpush1.msra.mxu0 0.0
  %2059 = vmatprep.subr.mxu0 0.0
  %2060 = vmatpush1.msra.mxu0 0.0
  %2061 = vmatprep.subr.mxu0 0.0
  %2062 = vmatpush1.msra.mxu0 0.0
  %2063 = vmatprep.subr.mxu0 0.0
  %2064 = vmatpush1.msra.mxu0 0.0
  %2065 = vmatprep.subr.mxu0 0.0
  %2066 = vmatpush1.msra.mxu0 0.0
  %2067 = vmatprep.subr.mxu0 0.0
  %2068 = vmatpush1.msra.mxu0 0.0
  %2069 = vmatprep.subr.mxu0 0.0
  %2070 = vmatpush1.msra.mxu0 0.0
  %2071 = vmatprep.subr.mxu0 0.0
  %2072 = vmatpush1.msra.mxu0 0.0
  %2073 = vmatprep.subr.mxu0 0.0
  %2074 = vmatpush1.msra.mxu0 0.0
  %2075 = vmatprep.subr.mxu0 0.0
  %2076 = vmatpush1.msra.mxu0 0.0
  %2077 = vmatprep.subr.mxu0 0.0
  %2078 = vmatpush1.msra.mxu0 0.0
  %2079 = vmatprep.subr.mxu0 0.0
  %2080 = vmatpush1.msra.mxu0 0.0
  %2081 = vmatprep.subr.mxu0 0.0
  %2082 = vmatpush1.msra.mxu0 0.0
  %2083 = vmatprep.subr.mxu0 0.0
  %2084 = vmatpush1.msra.mxu0 0.0
  %2085 = vmatprep.subr.mxu0 0.0
  %2086 = vmatpush1.msra.mxu0 0.0
  %2087 = vmatprep.subr.mxu0 0.0
  %2088 = vmatpush1.msra.mxu0 0.0
  %2089 = vmatprep.subr.mxu0 0.0
  %2090 = vmatpush1.msra.mxu0 0.0
  %2091 = vmatprep.subr.mxu0 0.0
  %2092 = vmatpush1.msra.mxu0 0.0
  %2093 = vmatprep.subr.mxu0 0.0
  %2094 = vmatpush1.msra.mxu0 0.0
  %2095 = vmatprep.subr.mxu0 0.0
  %2096 = vmatpush1.msra.mxu0 0.0
  %2097 = vmatprep.subr.mxu0 0.0
  %2098 = vmatpush1.msra.mxu0 0.0
  %2099 = vmatprep.subr.mxu0 0.0
  %2100 = vmatpush1.msra.mxu0 0.0
  %2101 = vmatprep.subr.mxu0 0.0
  %2102 = vmatpush1.msra.mxu0 0.0
  %2103 = vmatprep.subr.mxu0 0.0
  %2104 = vmatpush1.msra.mxu0 0.0
  %2105 = vmatprep.subr.mxu0 0.0
  %2106 = vmatpush1.msra.mxu0 0.0
  %2107 = vmatprep.mubr.f32.mxu0 0.0
  %2108 = vmatmul.mubr.f32.gmra.mrb[0].mxu0 %v2039
  %v2109 = vpop.f32.mrb[0].mxu0
  %v2110 = vadd.f32 0.0, %v2109
  %v2111 = vpop.f32.mrb[0].mxu0
  %v2112 = vadd.f32 0.0, %v2111
  %2113 = vmatprep.mubr.f32.mxu0 0.0
  %2114 = vmatmul.mubr.f32.gmra.mrb[0].mxu0 %v2041
  %v2115 = vpop.f32.mrb[0].mxu0
  %v2116 = vadd.f32 0.0, %v2115
  %v2117 = vpop.f32.mrb[0].mxu0
  %v2118 = vadd.f32 0.0, %v2117
  %2119 = vdwg.mxu0
  %v2120 = vld [vmem:[%s4 + $0x3e0] sm:$0xff]
  %v2121 = vld [vmem:[%s4 + $0x3e8] sm:$0xff]
  %v2122 = vld [vmem:[%s4 + $0x3f0] sm:$0xff]
  %v2123 = vld [vmem:[%s4 + $0x3f8] sm:$0xff]
  %v2124 = vld [vmem:[%s4 + $0x400] sm:$0xff]
  %v2125 = vld [vmem:[%s4 + $0x408] sm:$0xff]
  %v2126 = vld [vmem:[%s4 + $0x410] sm:$0xff]
  %v2127 = vld [vmem:[%s4 + $0x418] sm:$0xff]
  %v2128 = vld [vmem:[%s4 + $0x420] sm:$0xff]
  %v2129 = vld [vmem:[%s4 + $0x428] sm:$0xff]
  %v2130 = vld [vmem:[%s4 + $0x430] sm:$0xff]
  %v2131 = vld [vmem:[%s4 + $0x438] sm:$0xff]
  %v2132 = vld [vmem:[%s4 + $0x440] sm:$0xff]
  %v2133 = vld [vmem:[%s4 + $0x448] sm:$0xff]
  %v2134 = vld [vmem:[%s4 + $0x450] sm:$0xff]
  %v2135 = vld [vmem:[%s4 + $0x458] sm:$0xff]
  %v2136 = vld [vmem:[%s4 + $0x460] sm:$0xff]
  %v2137 = vld [vmem:[%s4 + $0x468] sm:$0xff]
  %v2138 = vld [vmem:[%s4 + $0x470] sm:$0xff]
  %v2139 = vld [vmem:[%s4 + $0x478] sm:$0xff]
  %v2140 = vld [vmem:[%s4 + $0x480] sm:$0xff]
  %v2141 = vld [vmem:[%s4 + $0x488] sm:$0xff]
  %v2142 = vld [vmem:[%s4 + $0x490] sm:$0xff]
  %v2143 = vld [vmem:[%s4 + $0x498] sm:$0xff]
  %v2144 = vld [vmem:[%s4 + $0x4a0] sm:$0xff]
  %v2145 = vld [vmem:[%s4 + $0x4a8] sm:$0xff]
  %v2146 = vld [vmem:[%s4 + $0x4b0] sm:$0xff]
  %v2147 = vld [vmem:[%s4 + $0x4b8] sm:$0xff]
  %v2148 = vld [vmem:[%s4 + $0x4c0] sm:$0xff]
  %v2149 = vld [vmem:[%s4 + $0x4c8] sm:$0xff]
  %v2150 = vld [vmem:[%s4 + $0x4d0] sm:$0xff]
  %v2151 = vld [vmem:[%s4 + $0x4d8] sm:$0xff]
  %2152 = vmatprep.subr.mxu0 %v2121
  %2153 = vmatpush1.msra.mxu0 %v2120
  %2154 = vmatprep.subr.mxu0 %v2123
  %2155 = vmatpush1.msra.mxu0 %v2122
  %2156 = vmatprep.subr.mxu0 %v2125
  %2157 = vmatpush1.msra.mxu0 %v2124
  %2158 = vmatprep.subr.mxu0 %v2127
  %2159 = vmatpush1.msra.mxu0 %v2126
  %2160 = vmatprep.subr.mxu0 %v2129
  %2161 = vmatpush1.msra.mxu0 %v2128
  %2162 = vmatprep.subr.mxu0 %v2131
  %2163 = vmatpush1.msra.mxu0 %v2130
  %2164 = vmatprep.subr.mxu0 %v2133
  %2165 = vmatpush1.msra.mxu0 %v2132
  %2166 = vmatprep.subr.mxu0 %v2135
  %2167 = vmatpush1.msra.mxu0 %v2134
  %2168 = vmatprep.subr.mxu0 %v2137
  %2169 = vmatpush1.msra.mxu0 %v2136
  %2170 = vmatprep.subr.mxu0 %v2139
  %2171 = vmatpush1.msra.mxu0 %v2138
  %2172 = vmatprep.subr.mxu0 %v2141
  %2173 = vmatpush1.msra.mxu0 %v2140
  %2174 = vmatprep.subr.mxu0 %v2143
  %2175 = vmatpush1.msra.mxu0 %v2142
  %2176 = vmatprep.subr.mxu0 %v2145
  %2177 = vmatpush1.msra.mxu0 %v2144
  %2178 = vmatprep.subr.mxu0 %v2147
  %2179 = vmatpush1.msra.mxu0 %v2146
  %2180 = vmatprep.subr.mxu0 %v2149
  %2181 = vmatpush1.msra.mxu0 %v2148
  %2182 = vmatprep.subr.mxu0 %v2151
  %2183 = vmatpush1.msra.mxu0 %v2150
  %2184 = vmatprep.subr.mxu0 0.0
  %2185 = vmatpush1.msra.mxu0 0.0
  %2186 = vmatprep.subr.mxu0 0.0
  %2187 = vmatpush1.msra.mxu0 0.0
  %2188 = vmatprep.subr.mxu0 0.0
  %2189 = vmatpush1.msra.mxu0 0.0
  %2190 = vmatprep.subr.mxu0 0.0
  %2191 = vmatpush1.msra.mxu0 0.0
  %2192 = vmatprep.subr.mxu0 0.0
  %2193 = vmatpush1.msra.mxu0 0.0
  %2194 = vmatprep.subr.mxu0 0.0
  %2195 = vmatpush1.msra.mxu0 0.0
  %2196 = vmatprep.subr.mxu0 0.0
  %2197 = vmatpush1.msra.mxu0 0.0
  %2198 = vmatprep.subr.mxu0 0.0
  %2199 = vmatpush1.msra.mxu0 0.0
  %2200 = vmatprep.subr.mxu0 0.0
  %2201 = vmatpush1.msra.mxu0 0.0
  %2202 = vmatprep.subr.mxu0 0.0
  %2203 = vmatpush1.msra.mxu0 0.0
  %2204 = vmatprep.subr.mxu0 0.0
  %2205 = vmatpush1.msra.mxu0 0.0
  %2206 = vmatprep.subr.mxu0 0.0
  %2207 = vmatpush1.msra.mxu0 0.0
  %2208 = vmatprep.subr.mxu0 0.0
  %2209 = vmatpush1.msra.mxu0 0.0
  %2210 = vmatprep.subr.mxu0 0.0
  %2211 = vmatpush1.msra.mxu0 0.0
  %2212 = vmatprep.subr.mxu0 0.0
  %2213 = vmatpush1.msra.mxu0 0.0
  %2214 = vmatprep.subr.mxu0 0.0
  %2215 = vmatpush1.msra.mxu0 0.0
  %2216 = vmatprep.mubr.f32.mxu0 0.0
  %2217 = vmatmul.mubr.f32.gmra.mrb[0].mxu0 %v1495
  %v2218 = vpop.f32.mrb[0].mxu0
  %v2219 = vadd.f32 0.0, %v2218
  %v2220 = vpop.f32.mrb[0].mxu0
  %v2221 = vadd.f32 0.0, %v2220
  %2222 = vmatprep.mubr.f32.mxu0 0.0
  %2223 = vmatmul.mubr.f32.gmra.mrb[0].mxu0 %v1496
  %v2224 = vpop.f32.mrb[0].mxu0
  %v2225 = vadd.f32 0.0, %v2224
  %v2226 = vpop.f32.mrb[0].mxu0
  %v2227 = vadd.f32 0.0, %v2226
  %2228 = vdwg.mxu0
  %v2229 = vmul.f32 %v2110, %v2219
  %v2230 = vmul.f32 %v2112, %v2221
  %v2231 = vmul.f32 %v2116, %v2225
  %v2232 = vmul.f32 %v2118, %v2227
  %v2233 = vadd.f32 %v1918, %v2229
  %v2234 = vadd.f32 %v1919, %v2230
  %v2235 = vadd.f32 %v1920, %v2231
  %v2236 = vadd.f32 %v1921, %v2232
  %v2237 = vld [vmem:[%s4 + $0x4e0] sm:$0xff]
  %v2238 = vld [vmem:[%s4 + $0x4e8] sm:$0xff]
  %v2239 = vld [vmem:[%s4 + $0x4f0] sm:$0xff]
  %v2240 = vld [vmem:[%s4 + $0x4f8] sm:$0xff]
  %v2241 = vld [vmem:[%s4 + $0x500] sm:$0xff]
  %v2242 = vld [vmem:[%s4 + $0x508] sm:$0xff]
  %2243 = vmatprep.subr.mxu0 %v2238
  %2244 = vmatpush1.msra.mxu0 %v2237
  %2245 = vmatprep.subr.mxu0 %v2240
  %2246 = vmatpush1.msra.mxu0 %v2239
  %2247 = vmatprep.subr.mxu0 %v2242
  %2248 = vmatpush1.msra.mxu0 %v2241
  %2249 = vmatprep.subr.mxu0 0.0
  %2250 = vmatpush1.msra.mxu0 0.0
  %2251 = vmatprep.subr.mxu0 0.0
  %2252 = vmatpush1.msra.mxu0 0.0
  %2253 = vmatprep.subr.mxu0 0.0
  %2254 = vmatpush1.msra.mxu0 0.0
  %2255 = vmatprep.subr.mxu0 0.0
  %2256 = vmatpush1.msra.mxu0 0.0
  %2257 = vmatprep.subr.mxu0 0.0
  %2258 = vmatpush1.msra.mxu0 0.0
  %2259 = vmatprep.subr.mxu0 0.0
  %2260 = vmatpush1.msra.mxu0 0.0
  %2261 = vmatprep.subr.mxu0 0.0
  %2262 = vmatpush1.msra.mxu0 0.0
  %2263 = vmatprep.subr.mxu0 0.0
  %2264 = vmatpush1.msra.mxu0 0.0
  %2265 = vmatprep.subr.mxu0 0.0
  %2266 = vmatpush1.msra.mxu0 0.0
  %2267 = vmatprep.subr.mxu0 0.0
  %2268 = vmatpush1.msra.mxu0 0.0
  %2269 = vmatprep.subr.mxu0 0.0
  %2270 = vmatpush1.msra.mxu0 0.0
  %2271 = vmatprep.subr.mxu0 0.0
  %2272 = vmatpush1.msra.mxu0 0.0
  %2273 = vmatprep.subr.mxu0 0.0
  %2274 = vmatpush1.msra.mxu0 0.0
  %2275 = vmatprep.subr.mxu0 0.0
  %2276 = vmatpush1.msra.mxu0 0.0
  %2277 = vmatprep.subr.mxu0 0.0
  %2278 = vmatpush1.msra.mxu0 0.0
  %2279 = vmatprep.subr.mxu0 0.0
  %2280 = vmatpush1.msra.mxu0 0.0
  %2281 = vmatprep.subr.mxu0 0.0
  %2282 = vmatpush1.msra.mxu0 0.0
  %2283 = vmatprep.subr.mxu0 0.0
  %2284 = vmatpush1.msra.mxu0 0.0
  %2285 = vmatprep.subr.mxu0 0.0
  %2286 = vmatpush1.msra.mxu0 0.0
  %2287 = vmatprep.subr.mxu0 0.0
  %2288 = vmatpush1.msra.mxu0 0.0
  %2289 = vmatprep.subr.mxu0 0.0
  %2290 = vmatpush1.msra.mxu0 0.0
  %2291 = vmatprep.subr.mxu0 0.0
  %2292 = vmatpush1.msra.mxu0 0.0
  %2293 = vmatprep.subr.mxu0 0.0
  %2294 = vmatpush1.msra.mxu0 0.0
  %2295 = vmatprep.subr.mxu0 0.0
  %2296 = vmatpush1.msra.mxu0 0.0
  %2297 = vmatprep.subr.mxu0 0.0
  %2298 = vmatpush1.msra.mxu0 0.0
  %2299 = vmatprep.subr.mxu0 0.0
  %2300 = vmatpush1.msra.mxu0 0.0
  %2301 = vmatprep.subr.mxu0 0.0
  %2302 = vmatpush1.msra.mxu0 0.0
  %2303 = vmatprep.subr.mxu0 0.0
  %2304 = vmatpush1.msra.mxu0 0.0
  %2305 = vmatprep.subr.mxu0 0.0
  %2306 = vmatpush1.msra.mxu0 0.0
  %2307 = vmatprep.mubr.f32.mxu0 0.0
  %2308 = vmatmul.mubr.f32.gmra.mrb[0].mxu0 %v2039
  %v2309 = vpop.f32.mrb[0].mxu0
  %v2310 = vadd.f32 0.0, %v2309
  %v2311 = vpop.f32.mrb[0].mxu0
  %v2312 = vadd.f32 0.0, %v2311
  %2313 = vmatprep.mubr.f32.mxu0 0.0
  %2314 = vmatmul.mubr.f32.gmra.mrb[0].mxu0 %v2041
  %v2315 = vpop.f32.mrb[0].mxu0
  %v2316 = vadd.f32 0.0, %v2315
  %v2317 = vpop.f32.mrb[0].mxu0
  %v2318 = vadd.f32 0.0, %v2317
  %2319 = vdwg.mxu0
  %v2320 = vld [vmem:[%s4 + $0x510] sm:$0xff]
  %v2321 = vld [vmem:[%s4 + $0x518] sm:$0xff]
  %v2322 = vld [vmem:[%s4 + $0x520] sm:$0xff]
  %v2323 = vld [vmem:[%s4 + $0x528] sm:$0xff]
  %v2324 = vld [vmem:[%s4 + $0x530] sm:$0xff]
  %v2325 = vld [vmem:[%s4 + $0x538] sm:$0xff]
  %v2326 = vld [vmem:[%s4 + $0x540] sm:$0xff]
  %v2327 = vld [vmem:[%s4 + $0x548] sm:$0xff]
  %v2328 = vld [vmem:[%s4 + $0x550] sm:$0xff]
  %v2329 = vld [vmem:[%s4 + $0x558] sm:$0xff]
  %v2330 = vld [vmem:[%s4 + $0x560] sm:$0xff]
  %v2331 = vld [vmem:[%s4 + $0x568] sm:$0xff]
  %v2332 = vld [vmem:[%s4 + $0x570] sm:$0xff]
  %v2333 = vld [vmem:[%s4 + $0x578] sm:$0xff]
  %v2334 = vld [vmem:[%s4 + $0x580] sm:$0xff]
  %v2335 = vld [vmem:[%s4 + $0x588] sm:$0xff]
  %v2336 = vld [vmem:[%s4 + $0x590] sm:$0xff]
  %v2337 = vld [vmem:[%s4 + $0x598] sm:$0xff]
  %v2338 = vld [vmem:[%s4 + $0x5a0] sm:$0xff]
  %v2339 = vld [vmem:[%s4 + $0x5a8] sm:$0xff]
  %v2340 = vld [vmem:[%s4 + $0x5b0] sm:$0xff]
  %v2341 = vld [vmem:[%s4 + $0x5b8] sm:$0xff]
  %v2342 = vld [vmem:[%s4 + $0x5c0] sm:$0xff]
  %v2343 = vld [vmem:[%s4 + $0x5c8] sm:$0xff]
  %v2344 = vld [vmem:[%s4 + $0x5d0] sm:$0xff]
  %v2345 = vld [vmem:[%s4 + $0x5d8] sm:$0xff]
  %v2346 = vld [vmem:[%s4 + $0x5e0] sm:$0xff]
  %v2347 = vld [vmem:[%s4 + $0x5e8] sm:$0xff]
  %v2348 = vld [vmem:[%s4 + $0x5f0] sm:$0xff]
  %v2349 = vld [vmem:[%s4 + $0x5f8] sm:$0xff]
  %v2350 = vld [vmem:[%s4 + $0x600] sm:$0xff]
  %v2351 = vld [vmem:[%s4 + $0x608] sm:$0xff]
  %2352 = vmatprep.subr.mxu0 %v2321
  %2353 = vmatpush1.msra.mxu0 %v2320
  %2354 = vmatprep.subr.mxu0 %v2323
  %2355 = vmatpush1.msra.mxu0 %v2322
  %2356 = vmatprep.subr.mxu0 %v2325
  %2357 = vmatpush1.msra.mxu0 %v2324
  %2358 = vmatprep.subr.mxu0 %v2327
  %2359 = vmatpush1.msra.mxu0 %v2326
  %2360 = vmatprep.subr.mxu0 %v2329
  %2361 = vmatpush1.msra.mxu0 %v2328
  %2362 = vmatprep.subr.mxu0 %v2331
  %2363 = vmatpush1.msra.mxu0 %v2330
  %2364 = vmatprep.subr.mxu0 %v2333
  %2365 = vmatpush1.msra.mxu0 %v2332
  %2366 = vmatprep.subr.mxu0 %v2335
  %2367 = vmatpush1.msra.mxu0 %v2334
  %2368 = vmatprep.subr.mxu0 %v2337
  %2369 = vmatpush1.msra.mxu0 %v2336
  %2370 = vmatprep.subr.mxu0 %v2339
  %2371 = vmatpush1.msra.mxu0 %v2338
  %2372 = vmatprep.subr.mxu0 %v2341
  %2373 = vmatpush1.msra.mxu0 %v2340
  %2374 = vmatprep.subr.mxu0 %v2343
  %2375 = vmatpush1.msra.mxu0 %v2342
  %2376 = vmatprep.subr.mxu0 %v2345
  %2377 = vmatpush1.msra.mxu0 %v2344
  %2378 = vmatprep.subr.mxu0 %v2347
  %2379 = vmatpush1.msra.mxu0 %v2346
  %2380 = vmatprep.subr.mxu0 %v2349
  %2381 = vmatpush1.msra.mxu0 %v2348
  %2382 = vmatprep.subr.mxu0 %v2351
  %2383 = vmatpush1.msra.mxu0 %v2350
  %2384 = vmatprep.subr.mxu0 0.0
  %2385 = vmatpush1.msra.mxu0 0.0
  %2386 = vmatprep.subr.mxu0 0.0
  %2387 = vmatpush1.msra.mxu0 0.0
  %2388 = vmatprep.subr.mxu0 0.0
  %2389 = vmatpush1.msra.mxu0 0.0
  %2390 = vmatprep.subr.mxu0 0.0
  %2391 = vmatpush1.msra.mxu0 0.0
  %2392 = vmatprep.subr.mxu0 0.0
  %2393 = vmatpush1.msra.mxu0 0.0
  %2394 = vmatprep.subr.mxu0 0.0
  %2395 = vmatpush1.msra.mxu0 0.0
  %2396 = vmatprep.subr.mxu0 0.0
  %2397 = vmatpush1.msra.mxu0 0.0
  %2398 = vmatprep.subr.mxu0 0.0
  %2399 = vmatpush1.msra.mxu0 0.0
  %2400 = vmatprep.subr.mxu0 0.0
  %2401 = vmatpush1.msra.mxu0 0.0
  %2402 = vmatprep.subr.mxu0 0.0
  %2403 = vmatpush1.msra.mxu0 0.0
  %2404 = vmatprep.subr.mxu0 0.0
  %2405 = vmatpush1.msra.mxu0 0.0
  %2406 = vmatprep.subr.mxu0 0.0
  %2407 = vmatpush1.msra.mxu0 0.0
  %2408 = vmatprep.subr.mxu0 0.0
  %2409 = vmatpush1.msra.mxu0 0.0
  %2410 = vmatprep.subr.mxu0 0.0
  %2411 = vmatpush1.msra.mxu0 0.0
  %2412 = vmatprep.subr.mxu0 0.0
  %2413 = vmatpush1.msra.mxu0 0.0
  %2414 = vmatprep.subr.mxu0 0.0
  %2415 = vmatpush1.msra.mxu0 0.0
  %2416 = vmatprep.mubr.f32.mxu0 0.0
  %2417 = vmatmul.mubr.f32.gmra.mrb[0].mxu0 %v1495
  %v2418 = vpop.f32.mrb[0].mxu0
  %v2419 = vadd.f32 0.0, %v2418
  %v2420 = vpop.f32.mrb[0].mxu0
  %v2421 = vadd.f32 0.0, %v2420
  %2422 = vmatprep.mubr.f32.mxu0 0.0
  %2423 = vmatmul.mubr.f32.gmra.mrb[0].mxu0 %v1496
  %v2424 = vpop.f32.mrb[0].mxu0
  %v2425 = vadd.f32 0.0, %v2424
  %v2426 = vpop.f32.mrb[0].mxu0
  %v2427 = vadd.f32 0.0, %v2426
  %2428 = vdwg.mxu0
  %v2429 = vmul.f32 %v2310, %v2419
  %v2430 = vmul.f32 %v2312, %v2421
  %v2431 = vmul.f32 %v2316, %v2425
  %v2432 = vmul.f32 %v2318, %v2427
  %v2433 = vadd.f32 %v2233, %v2429
  %v2434 = vadd.f32 %v2234, %v2430
  %v2435 = vadd.f32 %v2235, %v2431
  %v2436 = vadd.f32 %v2236, %v2432
  %v2437 = vld [vmem:[%s4 + $0x610] sm:$0xff]
  %v2438 = vld [vmem:[%s4 + $0x618] sm:$0xff]
  %v2439 = vld [vmem:[%s4 + $0x620] sm:$0xff]
  %v2440 = vld [vmem:[%s4 + $0x628] sm:$0xff]
  %v2441 = vld [vmem:[%s4 + $0x630] sm:$0xff]
  %v2442 = vld [vmem:[%s4 + $0x638] sm:$0xff]
  %2443 = vmatprep.subr.mxu0 %v2438
  %2444 = vmatpush1.msra.mxu0 %v2437
  %2445 = vmatprep.subr.mxu0 %v2440
  %2446 = vmatpush1.msra.mxu0 %v2439
  %2447 = vmatprep.subr.mxu0 %v2442
  %2448 = vmatpush1.msra.mxu0 %v2441
  %2449 = vmatprep.subr.mxu0 0.0
  %2450 = vmatpush1.msra.mxu0 0.0
  %2451 = vmatprep.subr.mxu0 0.0
  %2452 = vmatpush1.msra.mxu0 0.0
  %2453 = vmatprep.subr.mxu0 0.0
  %2454 = vmatpush1.msra.mxu0 0.0
  %2455 = vmatprep.subr.mxu0 0.0
  %2456 = vmatpush1.msra.mxu0 0.0
  %2457 = vmatprep.subr.mxu0 0.0
  %2458 = vmatpush1.msra.mxu0 0.0
  %2459 = vmatprep.subr.mxu0 0.0
  %2460 = vmatpush1.msra.mxu0 0.0
  %2461 = vmatprep.subr.mxu0 0.0
  %2462 = vmatpush1.msra.mxu0 0.0
  %2463 = vmatprep.subr.mxu0 0.0
  %2464 = vmatpush1.msra.mxu0 0.0
  %2465 = vmatprep.subr.mxu0 0.0
  %2466 = vmatpush1.msra.mxu0 0.0
  %2467 = vmatprep.subr.mxu0 0.0
  %2468 = vmatpush1.msra.mxu0 0.0
  %2469 = vmatprep.subr.mxu0 0.0
  %2470 = vmatpush1.msra.mxu0 0.0
  %2471 = vmatprep.subr.mxu0 0.0
  %2472 = vmatpush1.msra.mxu0 0.0
  %2473 = vmatprep.subr.mxu0 0.0
  %2474 = vmatpush1.msra.mxu0 0.0
  %2475 = vmatprep.subr.mxu0 0.0
  %2476 = vmatpush1.msra.mxu0 0.0
  %2477 = vmatprep.subr.mxu0 0.0
  %2478 = vmatpush1.msra.mxu0 0.0
  %2479 = vmatprep.subr.mxu0 0.0
  %2480 = vmatpush1.msra.mxu0 0.0
  %2481 = vmatprep.subr.mxu0 0.0
  %2482 = vmatpush1.msra.mxu0 0.0
  %2483 = vmatprep.subr.mxu0 0.0
  %2484 = vmatpush1.msra.mxu0 0.0
  %2485 = vmatprep.subr.mxu0 0.0
  %2486 = vmatpush1.msra.mxu0 0.0
  %2487 = vmatprep.subr.mxu0 0.0
  %2488 = vmatpush1.msra.mxu0 0.0
  %2489 = vmatprep.subr.mxu0 0.0
  %2490 = vmatpush1.msra.mxu0 0.0
  %2491 = vmatprep.subr.mxu0 0.0
  %2492 = vmatpush1.msra.mxu0 0.0
  %2493 = vmatprep.subr.mxu0 0.0
  %2494 = vmatpush1.msra.mxu0 0.0
  %2495 = vmatprep.subr.mxu0 0.0
  %2496 = vmatpush1.msra.mxu0 0.0
  %2497 = vmatprep.subr.mxu0 0.0
  %2498 = vmatpush1.msra.mxu0 0.0
  %2499 = vmatprep.subr.mxu0 0.0
  %2500 = vmatpush1.msra.mxu0 0.0
  %2501 = vmatprep.subr.mxu0 0.0
  %2502 = vmatpush1.msra.mxu0 0.0
  %2503 = vmatprep.subr.mxu0 0.0
  %2504 = vmatpush1.msra.mxu0 0.0
  %2505 = vmatprep.subr.mxu0 0.0
  %2506 = vmatpush1.msra.mxu0 0.0
  %2507 = vmatprep.mubr.f32.mxu0 0.0
  %2508 = vmatmul.mubr.f32.gmra.mrb[0].mxu0 %v2039
  %v2509 = vpop.f32.mrb[0].mxu0
  %v2510 = vadd.f32 0.0, %v2509
  %v2511 = vpop.f32.mrb[0].mxu0
  %v2512 = vadd.f32 0.0, %v2511
  %2513 = vmatprep.mubr.f32.mxu0 0.0
  %2514 = vmatmul.mubr.f32.gmra.mrb[0].mxu0 %v2041
  %v2515 = vpop.f32.mrb[0].mxu0
  %v2516 = vadd.f32 0.0, %v2515
  %v2517 = vpop.f32.mrb[0].mxu0
  %v2518 = vadd.f32 0.0, %v2517
  %2519 = vdwg.mxu0
  %v2520 = vld [vmem:[%s4 + $0x640] sm:$0xff]
  %v2521 = vld [vmem:[%s4 + $0x648] sm:$0xff]
  %v2522 = vld [vmem:[%s4 + $0x650] sm:$0xff]
  %v2523 = vld [vmem:[%s4 + $0x658] sm:$0xff]
  %v2524 = vld [vmem:[%s4 + $0x660] sm:$0xff]
  %v2525 = vld [vmem:[%s4 + $0x668] sm:$0xff]
  %v2526 = vld [vmem:[%s4 + $0x670] sm:$0xff]
  %v2527 = vld [vmem:[%s4 + $0x678] sm:$0xff]
  %v2528 = vld [vmem:[%s4 + $0x680] sm:$0xff]
  %v2529 = vld [vmem:[%s4 + $0x688] sm:$0xff]
  %v2530 = vld [vmem:[%s4 + $0x690] sm:$0xff]
  %v2531 = vld [vmem:[%s4 + $0x698] sm:$0xff]
  %v2532 = vld [vmem:[%s4 + $0x6a0] sm:$0xff]
  %v2533 = vld [vmem:[%s4 + $0x6a8] sm:$0xff]
  %v2534 = vld [vmem:[%s4 + $0x6b0] sm:$0xff]
  %v2535 = vld [vmem:[%s4 + $0x6b8] sm:$0xff]
  %v2536 = vld [vmem:[%s4 + $0x6c0] sm:$0xff]
  %v2537 = vld [vmem:[%s4 + $0x6c8] sm:$0xff]
  %v2538 = vld [vmem:[%s4 + $0x6d0] sm:$0xff]
  %v2539 = vld [vmem:[%s4 + $0x6d8] sm:$0xff]
  %v2540 = vld [vmem:[%s4 + $0x6e0] sm:$0xff]
  %v2541 = vld [vmem:[%s4 + $0x6e8] sm:$0xff]
  %v2542 = vld [vmem:[%s4 + $0x6f0] sm:$0xff]
  %v2543 = vld [vmem:[%s4 + $0x6f8] sm:$0xff]
  %v2544 = vld [vmem:[%s4 + $0x700] sm:$0xff]
  %v2545 = vld [vmem:[%s4 + $0x708] sm:$0xff]
  %v2546 = vld [vmem:[%s4 + $0x710] sm:$0xff]
  %v2547 = vld [vmem:[%s4 + $0x718] sm:$0xff]
  %v2548 = vld [vmem:[%s4 + $0x720] sm:$0xff]
  %v2549 = vld [vmem:[%s4 + $0x728] sm:$0xff]
  %v2550 = vld [vmem:[%s4 + $0x730] sm:$0xff]
  %v2551 = vld [vmem:[%s4 + $0x738] sm:$0xff]
  %2552 = vmatprep.subr.mxu0 %v2521
  %2553 = vmatpush1.msra.mxu0 %v2520
  %2554 = vmatprep.subr.mxu0 %v2523
  %2555 = vmatpush1.msra.mxu0 %v2522
  %2556 = vmatprep.subr.mxu0 %v2525
  %2557 = vmatpush1.msra.mxu0 %v2524
  %2558 = vmatprep.subr.mxu0 %v2527
  %2559 = vmatpush1.msra.mxu0 %v2526
  %2560 = vmatprep.subr.mxu0 %v2529
  %2561 = vmatpush1.msra.mxu0 %v2528
  %2562 = vmatprep.subr.mxu0 %v2531
  %2563 = vmatpush1.msra.mxu0 %v2530
  %2564 = vmatprep.subr.mxu0 %v2533
  %2565 = vmatpush1.msra.mxu0 %v2532
  %2566 = vmatprep.subr.mxu0 %v2535
  %2567 = vmatpush1.msra.mxu0 %v2534
  %2568 = vmatprep.subr.mxu0 %v2537
  %2569 = vmatpush1.msra.mxu0 %v2536
  %2570 = vmatprep.subr.mxu0 %v2539
  %2571 = vmatpush1.msra.mxu0 %v2538
  %2572 = vmatprep.subr.mxu0 %v2541
  %2573 = vmatpush1.msra.mxu0 %v2540
  %2574 = vmatprep.subr.mxu0 %v2543
  %2575 = vmatpush1.msra.mxu0 %v2542
  %2576 = vmatprep.subr.mxu0 %v2545
  %2577 = vmatpush1.msra.mxu0 %v2544
  %2578 = vmatprep.subr.mxu0 %v2547
  %2579 = vmatpush1.msra.mxu0 %v2546
  %2580 = vmatprep.subr.mxu0 %v2549
  %2581 = vmatpush1.msra.mxu0 %v2548
  %2582 = vmatprep.subr.mxu0 %v2551
  %2583 = vmatpush1.msra.mxu0 %v2550
  %2584 = vmatprep.subr.mxu0 0.0
  %2585 = vmatpush1.msra.mxu0 0.0
  %2586 = vmatprep.subr.mxu0 0.0
  %2587 = vmatpush1.msra.mxu0 0.0
  %2588 = vmatprep.subr.mxu0 0.0
  %2589 = vmatpush1.msra.mxu0 0.0
  %2590 = vmatprep.subr.mxu0 0.0
  %2591 = vmatpush1.msra.mxu0 0.0
  %2592 = vmatprep.subr.mxu0 0.0
  %2593 = vmatpush1.msra.mxu0 0.0
  %2594 = vmatprep.subr.mxu0 0.0
  %2595 = vmatpush1.msra.mxu0 0.0
  %2596 = vmatprep.subr.mxu0 0.0
  %2597 = vmatpush1.msra.mxu0 0.0
  %2598 = vmatprep.subr.mxu0 0.0
  %2599 = vmatpush1.msra.mxu0 0.0
  %2600 = vmatprep.subr.mxu0 0.0
  %2601 = vmatpush1.msra.mxu0 0.0
  %2602 = vmatprep.subr.mxu0 0.0
  %2603 = vmatpush1.msra.mxu0 0.0
  %2604 = vmatprep.subr.mxu0 0.0
  %2605 = vmatpush1.msra.mxu0 0.0
  %2606 = vmatprep.subr.mxu0 0.0
  %2607 = vmatpush1.msra.mxu0 0.0
  %2608 = vmatprep.subr.mxu0 0.0
  %2609 = vmatpush1.msra.mxu0 0.0
  %2610 = vmatprep.subr.mxu0 0.0
  %2611 = vmatpush1.msra.mxu0 0.0
  %2612 = vmatprep.subr.mxu0 0.0
  %2613 = vmatpush1.msra.mxu0 0.0
  %2614 = vmatprep.subr.mxu0 0.0
  %2615 = vmatpush1.msra.mxu0 0.0
  %2616 = vmatprep.mubr.f32.mxu0 0.0
  %2617 = vmatmul.mubr.f32.gmra.mrb[0].mxu0 %v1495
  %v2618 = vpop.f32.mrb[0].mxu0
  %v2619 = vadd.f32 0.0, %v2618
  %v2620 = vpop.f32.mrb[0].mxu0
  %v2621 = vadd.f32 0.0, %v2620
  %2622 = vmatprep.mubr.f32.mxu0 0.0
  %2623 = vmatmul.mubr.f32.gmra.mrb[0].mxu0 %v1496
  %v2624 = vpop.f32.mrb[0].mxu0
  %v2625 = vadd.f32 0.0, %v2624
  %v2626 = vpop.f32.mrb[0].mxu0
  %v2627 = vadd.f32 0.0, %v2626
  %2628 = vdwg.mxu0
  %v2629 = vmul.f32 %v2510, %v2619
  %v2630 = vmul.f32 %v2512, %v2621
  %v2631 = vmul.f32 %v2516, %v2625
  %v2632 = vmul.f32 %v2518, %v2627
  %v2633 = vadd.f32 %v2433, %v2629
  %v2634 = vadd.f32 %v2434, %v2630
  %v2635 = vadd.f32 %v2435, %v2631
  %v2636 = vadd.f32 %v2436, %v2632
  %v2637 = vld [vmem:[%s4 + $0x740] sm:$0xff]
  %v2638 = vld [vmem:[%s4 + $0x748] sm:$0xff]
  %v2639 = vld [vmem:[%s4 + $0x750] sm:$0xff]
  %v2640 = vld [vmem:[%s4 + $0x758] sm:$0xff]
  %v2641 = vld [vmem:[%s4 + $0x760] sm:$0xff]
  %v2642 = vld [vmem:[%s4 + $0x768] sm:$0xff]
  %2643 = vmatprep.subr.mxu0 %v2638
  %2644 = vmatpush1.msra.mxu0 %v2637
  %2645 = vmatprep.subr.mxu0 %v2640
  %2646 = vmatpush1.msra.mxu0 %v2639
  %2647 = vmatprep.subr.mxu0 %v2642
  %2648 = vmatpush1.msra.mxu0 %v2641
  %2649 = vmatprep.subr.mxu0 0.0
  %2650 = vmatpush1.msra.mxu0 0.0
  %2651 = vmatprep.subr.mxu0 0.0
  %2652 = vmatpush1.msra.mxu0 0.0
  %2653 = vmatprep.subr.mxu0 0.0
  %2654 = vmatpush1.msra.mxu0 0.0
  %2655 = vmatprep.subr.mxu0 0.0
  %2656 = vmatpush1.msra.mxu0 0.0
  %2657 = vmatprep.subr.mxu0 0.0
  %2658 = vmatpush1.msra.mxu0 0.0
  %2659 = vmatprep.subr.mxu0 0.0
  %2660 = vmatpush1.msra.mxu0 0.0
  %2661 = vmatprep.subr.mxu0 0.0
  %2662 = vmatpush1.msra.mxu0 0.0
  %2663 = vmatprep.subr.mxu0 0.0
  %2664 = vmatpush1.msra.mxu0 0.0
  %2665 = vmatprep.subr.mxu0 0.0
  %2666 = vmatpush1.msra.mxu0 0.0
  %2667 = vmatprep.subr.mxu0 0.0
  %2668 = vmatpush1.msra.mxu0 0.0
  %2669 = vmatprep.subr.mxu0 0.0
  %2670 = vmatpush1.msra.mxu0 0.0
  %2671 = vmatprep.subr.mxu0 0.0
  %2672 = vmatpush1.msra.mxu0 0.0
  %2673 = vmatprep.subr.mxu0 0.0
  %2674 = vmatpush1.msra.mxu0 0.0
  %2675 = vmatprep.subr.mxu0 0.0
  %2676 = vmatpush1.msra.mxu0 0.0
  %2677 = vmatprep.subr.mxu0 0.0
  %2678 = vmatpush1.msra.mxu0 0.0
  %2679 = vmatprep.subr.mxu0 0.0
  %2680 = vmatpush1.msra.mxu0 0.0
  %2681 = vmatprep.subr.mxu0 0.0
  %2682 = vmatpush1.msra.mxu0 0.0
  %2683 = vmatprep.subr.mxu0 0.0
  %2684 = vmatpush1.msra.mxu0 0.0
  %2685 = vmatprep.subr.mxu0 0.0
  %2686 = vmatpush1.msra.mxu0 0.0
  %2687 = vmatprep.subr.mxu0 0.0
  %2688 = vmatpush1.msra.mxu0 0.0
  %2689 = vmatprep.subr.mxu0 0.0
  %2690 = vmatpush1.msra.mxu0 0.0
  %2691 = vmatprep.subr.mxu0 0.0
  %2692 = vmatpush1.msra.mxu0 0.0
  %2693 = vmatprep.subr.mxu0 0.0
  %2694 = vmatpush1.msra.mxu0 0.0
  %2695 = vmatprep.subr.mxu0 0.0
  %2696 = vmatpush1.msra.mxu0 0.0
  %2697 = vmatprep.subr.mxu0 0.0
  %2698 = vmatpush1.msra.mxu0 0.0
  %2699 = vmatprep.subr.mxu0 0.0
  %2700 = vmatpush1.msra.mxu0 0.0
  %2701 = vmatprep.subr.mxu0 0.0
  %2702 = vmatpush1.msra.mxu0 0.0
  %2703 = vmatprep.subr.mxu0 0.0
  %2704 = vmatpush1.msra.mxu0 0.0
  %2705 = vmatprep.subr.mxu0 0.0
  %2706 = vmatpush1.msra.mxu0 0.0
  %2707 = vmatprep.mubr.f32.mxu0 0.0
  %2708 = vmatmul.mubr.f32.gmra.mrb[0].mxu0 %v2039
  %v2709 = vpop.f32.mrb[0].mxu0
  %v2710 = vadd.f32 0.0, %v2709
  %v2711 = vpop.f32.mrb[0].mxu0
  %v2712 = vadd.f32 0.0, %v2711
  %2713 = vmatprep.mubr.f32.mxu0 0.0
  %2714 = vmatmul.mubr.f32.gmra.mrb[0].mxu0 %v2041
  %v2715 = vpop.f32.mrb[0].mxu0
  %v2716 = vadd.f32 0.0, %v2715
  %v2717 = vpop.f32.mrb[0].mxu0
  %v2718 = vadd.f32 0.0, %v2717
  %2719 = vdwg.mxu0
  %v2720 = vld [vmem:[%s4 + $0x770] sm:$0xff]
  %v2721 = vld [vmem:[%s4 + $0x778] sm:$0xff]
  %v2722 = vld [vmem:[%s4 + $0x780] sm:$0xff]
  %v2723 = vld [vmem:[%s4 + $0x788] sm:$0xff]
  %v2724 = vld [vmem:[%s4 + $0x790] sm:$0xff]
  %v2725 = vld [vmem:[%s4 + $0x798] sm:$0xff]
  %v2726 = vld [vmem:[%s4 + $0x7a0] sm:$0xff]
  %v2727 = vld [vmem:[%s4 + $0x7a8] sm:$0xff]
  %v2728 = vld [vmem:[%s4 + $0x7b0] sm:$0xff]
  %v2729 = vld [vmem:[%s4 + $0x7b8] sm:$0xff]
  %v2730 = vld [vmem:[%s4 + $0x7c0] sm:$0xff]
  %v2731 = vld [vmem:[%s4 + $0x7c8] sm:$0xff]
  %v2732 = vld [vmem:[%s4 + $0x7d0] sm:$0xff]
  %v2733 = vld [vmem:[%s4 + $0x7d8] sm:$0xff]
  %v2734 = vld [vmem:[%s4 + $0x7e0] sm:$0xff]
  %v2735 = vld [vmem:[%s4 + $0x7e8] sm:$0xff]
  %v2736 = vld [vmem:[%s4 + $0x7f0] sm:$0xff]
  %v2737 = vld [vmem:[%s4 + $0x7f8] sm:$0xff]
  %v2738 = vld [vmem:[%s4 + $0x800] sm:$0xff]
  %v2739 = vld [vmem:[%s4 + $0x808] sm:$0xff]
  %v2740 = vld [vmem:[%s4 + $0x810] sm:$0xff]
  %v2741 = vld [vmem:[%s4 + $0x818] sm:$0xff]
  %v2742 = vld [vmem:[%s4 + $0x820] sm:$0xff]
  %v2743 = vld [vmem:[%s4 + $0x828] sm:$0xff]
  %v2744 = vld [vmem:[%s4 + $0x830] sm:$0xff]
  %v2745 = vld [vmem:[%s4 + $0x838] sm:$0xff]
  %v2746 = vld [vmem:[%s4 + $0x840] sm:$0xff]
  %v2747 = vld [vmem:[%s4 + $0x848] sm:$0xff]
  %v2748 = vld [vmem:[%s4 + $0x850] sm:$0xff]
  %v2749 = vld [vmem:[%s4 + $0x858] sm:$0xff]
  %v2750 = vld [vmem:[%s4 + $0x860] sm:$0xff]
  %v2751 = vld [vmem:[%s4 + $0x868] sm:$0xff]
  %2752 = vmatprep.subr.mxu0 %v2721
  %2753 = vmatpush1.msra.mxu0 %v2720
  %2754 = vmatprep.subr.mxu0 %v2723
  %2755 = vmatpush1.msra.mxu0 %v2722
  %2756 = vmatprep.subr.mxu0 %v2725
  %2757 = vmatpush1.msra.mxu0 %v2724
  %2758 = vmatprep.subr.mxu0 %v2727
  %2759 = vmatpush1.msra.mxu0 %v2726
  %2760 = vmatprep.subr.mxu0 %v2729
  %2761 = vmatpush1.msra.mxu0 %v2728
  %2762 = vmatprep.subr.mxu0 %v2731
  %2763 = vmatpush1.msra.mxu0 %v2730
  %2764 = vmatprep.subr.mxu0 %v2733
  %2765 = vmatpush1.msra.mxu0 %v2732
  %2766 = vmatprep.subr.mxu0 %v2735
  %2767 = vmatpush1.msra.mxu0 %v2734
  %2768 = vmatprep.subr.mxu0 %v2737
  %2769 = vmatpush1.msra.mxu0 %v2736
  %2770 = vmatprep.subr.mxu0 %v2739
  %2771 = vmatpush1.msra.mxu0 %v2738
  %2772 = vmatprep.subr.mxu0 %v2741
  %2773 = vmatpush1.msra.mxu0 %v2740
  %2774 = vmatprep.subr.mxu0 %v2743
  %2775 = vmatpush1.msra.mxu0 %v2742
  %2776 = vmatprep.subr.mxu0 %v2745
  %2777 = vmatpush1.msra.mxu0 %v2744
  %2778 = vmatprep.subr.mxu0 %v2747
  %2779 = vmatpush1.msra.mxu0 %v2746
  %2780 = vmatprep.subr.mxu0 %v2749
  %2781 = vmatpush1.msra.mxu0 %v2748
  %2782 = vmatprep.subr.mxu0 %v2751
  %2783 = vmatpush1.msra.mxu0 %v2750
  %2784 = vmatprep.subr.mxu0 0.0
  %2785 = vmatpush1.msra.mxu0 0.0
  %2786 = vmatprep.subr.mxu0 0.0
  %2787 = vmatpush1.msra.mxu0 0.0
  %2788 = vmatprep.subr.mxu0 0.0
  %2789 = vmatpush1.msra.mxu0 0.0
  %2790 = vmatprep.subr.mxu0 0.0
  %2791 = vmatpush1.msra.mxu0 0.0
  %2792 = vmatprep.subr.mxu0 0.0
  %2793 = vmatpush1.msra.mxu0 0.0
  %2794 = vmatprep.subr.mxu0 0.0
  %2795 = vmatpush1.msra.mxu0 0.0
  %2796 = vmatprep.subr.mxu0 0.0
  %2797 = vmatpush1.msra.mxu0 0.0
  %2798 = vmatprep.subr.mxu0 0.0
  %2799 = vmatpush1.msra.mxu0 0.0
  %2800 = vmatprep.subr.mxu0 0.0
  %2801 = vmatpush1.msra.mxu0 0.0
  %2802 = vmatprep.subr.mxu0 0.0
  %2803 = vmatpush1.msra.mxu0 0.0
  %2804 = vmatprep.subr.mxu0 0.0
  %2805 = vmatpush1.msra.mxu0 0.0
  %2806 = vmatprep.subr.mxu0 0.0
  %2807 = vmatpush1.msra.mxu0 0.0
  %2808 = vmatprep.subr.mxu0 0.0
  %2809 = vmatpush1.msra.mxu0 0.0
  %2810 = vmatprep.subr.mxu0 0.0
  %2811 = vmatpush1.msra.mxu0 0.0
  %2812 = vmatprep.subr.mxu0 0.0
  %2813 = vmatpush1.msra.mxu0 0.0
  %2814 = vmatprep.subr.mxu0 0.0
  %2815 = vmatpush1.msra.mxu0 0.0
  %2816 = vmatprep.mubr.f32.mxu0 0.0
  %2817 = vmatmul.mubr.f32.gmra.mrb[0].mxu0 %v1495
  %v2818 = vpop.f32.mrb[0].mxu0
  %v2819 = vadd.f32 0.0, %v2818
  %v2820 = vpop.f32.mrb[0].mxu0
  %v2821 = vadd.f32 0.0, %v2820
  %2822 = vmatprep.mubr.f32.mxu0 0.0
  %2823 = vmatmul.mubr.f32.gmra.mrb[0].mxu0 %v1496
  %v2824 = vpop.f32.mrb[0].mxu0
  %v2825 = vadd.f32 0.0, %v2824
  %v2826 = vpop.f32.mrb[0].mxu0
  %v2827 = vadd.f32 0.0, %v2826
  %2828 = vdwg.mxu0
  %v2829 = vmul.f32 %v2710, %v2819
  %v2830 = vmul.f32 %v2712, %v2821
  %v2831 = vmul.f32 %v2716, %v2825
  %v2832 = vmul.f32 %v2718, %v2827
  %v2833 = vadd.f32 %v2633, %v2829
  %v2834 = vadd.f32 %v2634, %v2830
  %v2835 = vadd.f32 %v2635, %v2831
  %v2836 = vadd.f32 %v2636, %v2832
  %v2837 = vpack.c.bf16 %v2835, %v2833
  %v2838 = vpack.c.bf16 %v2836, %v2834
  %v2839 = vld [vmem:[%s2 + $0x270] sm:$0xff]
  %v2840 = vld [vmem:[%s2 + $0x27c] sm:$0xff]
  %v2841 = vld [vmem:[%s2 + $0x288] sm:$0xff]
  %v2842 = vld [vmem:[%s2 + $0x294] sm:$0xff]
  %v2843 = vld [vmem:[%s2 + $0x2a0] sm:$0xff]
  %v2844 = vld [vmem:[%s2 + $0x2ac] sm:$0xff]
  %v2845 = vld [vmem:[%s2 + $0x2b8] sm:$0xff]
  %v2846 = vld [vmem:[%s2 + $0x2c4] sm:$0xff]
  %v2847 = vld [vmem:[%s2 + $0x2d0] sm:$0xff]
  %v2848 = vld [vmem:[%s2 + $0x2dc] sm:$0xff]
  %v2849 = vld [vmem:[%s2 + $0x2e8] sm:$0xff]
  %v2850 = vld [vmem:[%s2 + $0x2f4] sm:$0xff]
  %v2851 = vld [vmem:[%s2 + $0x300] sm:$0xff]
  %v2852 = vld [vmem:[%s2 + $0x30c] sm:$0xff]
  %v2853 = vld [vmem:[%s2 + $0x318] sm:$0xff]
  %v2854 = vld [vmem:[%s2 + $0x324] sm:$0xff]
  %v2855 = vld [vmem:[%s2 + $0x330] sm:$0xff]
  %v2856 = vld [vmem:[%s2 + $0x33c] sm:$0xff]
  %v2857 = vld [vmem:[%s2 + $0x348] sm:$0xff]
  %v2858 = vld [vmem:[%s2 + $0x354] sm:$0xff]
  %v2859 = vld [vmem:[%s2 + $0x360] sm:$0xff]
  %v2860 = vld [vmem:[%s2 + $0x36c] sm:$0xff]
  %v2861 = vld [vmem:[%s2 + $0x378] sm:$0xff]
  %v2862 = vld [vmem:[%s2 + $0x384] sm:$0xff]
  %s2863 = scalar_lea.vmem %s3, 49
  %v2864 = vld [vmem:[%s2863] ss:$8 sm:$0x3]
  %v2866 = vlaneseq
  %v2867 = vshrl.u32 %v2866, 7
  %v2868 = vsub.s32 0, %v2867
  %v2869 = vrot.slane %v2864, %v2868
  %v2870 = vlaneseq
  %v2871 = vshrl.u32 %v2870, 7
  %v2872 = vsub.s32 1, %v2871
  %v2873 = vrot.slane %v2864, %v2872
  %v2900 = vunpack.c.l.b16 %v2839
  %v2901 = vunpack.c.h.b16 %v2839
  %v2902 = vunpack.c.l.b16 %v2840
  %v2903 = vunpack.c.h.b16 %v2840
  %v2904 = vunpack.c.l.b16 %v2841
  %v2905 = vunpack.c.h.b16 %v2841
  %v2906 = vunpack.c.l.b16 %v2842
  %v2907 = vunpack.c.h.b16 %v2842
  %v2908 = vunpack.c.l.b16 %v2843
  %v2909 = vunpack.c.h.b16 %v2843
  %v2910 = vunpack.c.l.b16 %v2844
  %v2911 = vunpack.c.h.b16 %v2844
  %v2912 = vunpack.c.l.b16 %v2845
  %v2913 = vunpack.c.h.b16 %v2845
  %v2914 = vunpack.c.l.b16 %v2846
  %v2915 = vunpack.c.h.b16 %v2846
  %v2916 = vunpack.c.l.b16 %v2847
  %v2917 = vunpack.c.h.b16 %v2847
  %v2918 = vunpack.c.l.b16 %v2848
  %v2919 = vunpack.c.h.b16 %v2848
  %v2920 = vunpack.c.l.b16 %v2849
  %v2921 = vunpack.c.h.b16 %v2849
  %v2922 = vunpack.c.l.b16 %v2850
  %v2923 = vunpack.c.h.b16 %v2850
  %v2924 = vunpack.c.l.b16 %v2851
  %v2925 = vunpack.c.h.b16 %v2851
  %v2926 = vunpack.c.l.b16 %v2852
  %v2927 = vunpack.c.h.b16 %v2852
  %v2928 = vunpack.c.l.b16 %v2853
  %v2929 = vunpack.c.h.b16 %v2853
  %v2930 = vunpack.c.l.b16 %v2854
  %v2931 = vunpack.c.h.b16 %v2854
  %v2932 = vunpack.c.l.b16 %v2855
  %v2933 = vunpack.c.h.b16 %v2855
  %v2934 = vunpack.c.l.b16 %v2856
  %v2935 = vunpack.c.h.b16 %v2856
  %v2936 = vunpack.c.l.b16 %v2857
  %v2937 = vunpack.c.h.b16 %v2857
  %v2938 = vunpack.c.l.b16 %v2858
  %v2939 = vunpack.c.h.b16 %v2858
  %v2940 = vunpack.c.l.b16 %v2859
  %v2941 = vunpack.c.h.b16 %v2859
  %v2942 = vunpack.c.l.b16 %v2860
  %v2943 = vunpack.c.h.b16 %v2860
  %v2944 = vunpack.c.l.b16 %v2861
  %v2945 = vunpack.c.h.b16 %v2861
  %v2946 = vunpack.c.l.b16 %v2862
  %v2947 = vunpack.c.h.b16 %v2862
  %v2948 = vpack.c.b16 %v2902, %v2900
  %v2949 = vpack.c.b16 %v2903, %v2901
  %v2950 = vpack.c.b16 %v2906, %v2904
  %v2951 = vpack.c.b16 %v2907, %v2905
  %v2952 = vpack.c.b16 %v2910, %v2908
  %v2953 = vpack.c.b16 %v2911, %v2909
  %v2954 = vpack.c.b16 %v2914, %v2912
  %v2955 = vpack.c.b16 %v2915, %v2913
  %v2956 = vpack.c.b16 %v2918, %v2916
  %v2957 = vpack.c.b16 %v2919, %v2917
  %v2958 = vpack.c.b16 %v2922, %v2920
  %v2959 = vpack.c.b16 %v2923, %v2921
  %v2960 = vpack.c.b16 %v2926, %v2924
  %v2961 = vpack.c.b16 %v2927, %v2925
  %v2962 = vpack.c.b16 %v2930, %v2928
  %v2963 = vpack.c.b16 %v2931, %v2929
  %v2964 = vpack.c.b16 %v2934, %v2932
  %v2965 = vpack.c.b16 %v2935, %v2933
  %v2966 = vpack.c.b16 %v2938, %v2936
  %v2967 = vpack.c.b16 %v2939, %v2937
  %v2968 = vpack.c.b16 %v2942, %v2940
  %v2969 = vpack.c.b16 %v2943, %v2941
  %v2970 = vpack.c.b16 %v2946, %v2944
  %v2971 = vpack.c.b16 %v2947, %v2945
  %v2997 = vsel %vm1007, %v2838, 0
  %2999 = vmatprep.subr.bf16.mxu0 %v2949
  %3000 = vmatpush1.bf16.msra.mxu0 %v2948
  %3001 = vmatprep.subr.bf16.mxu0 %v2951
  %3002 = vmatpush1.bf16.msra.mxu0 %v2950
  %3003 = vmatprep.subr.bf16.mxu0 %v2953
  %3004 = vmatpush1.bf16.msra.mxu0 %v2952
  %3005 = vmatprep.subr.bf16.mxu0 %v2955
  %3006 = vmatpush1.bf16.msra.mxu0 %v2954
  %3007 = vmatprep.subr.bf16.mxu0 %v2957
  %3008 = vmatpush1.bf16.msra.mxu0 %v2956
  %3009 = vmatprep.subr.bf16.mxu0 %v2959
  %3010 = vmatpush1.bf16.msra.mxu0 %v2958
  %3011 = vmatprep.subr.bf16.mxu0 %v2961
  %3012 = vmatpush1.bf16.msra.mxu0 %v2960
  %3013 = vmatprep.subr.bf16.mxu0 %v2963
  %3014 = vmatpush1.bf16.msra.mxu0 %v2962
  %3015 = vmatprep.subr.bf16.mxu0 %v2965
  %3016 = vmatpush1.bf16.msra.mxu0 %v2964
  %3017 = vmatprep.subr.bf16.mxu0 %v2967
  %3018 = vmatpush1.bf16.msra.mxu0 %v2966
  %3019 = vmatprep.subr.bf16.mxu0 %v2969
  %3020 = vmatpush1.bf16.msra.mxu0 %v2968
  %3021 = vmatprep.subr.bf16.mxu0 %v2971
  %3022 = vmatpush1.bf16.msra.mxu0 %v2970
  %3023 = vmatprep.subr.bf16.mxu0 0
  %3024 = vmatpush1.bf16.msra.mxu0 0
  %3025 = vmatprep.subr.bf16.mxu0 0
  %3026 = vmatpush1.bf16.msra.mxu0 0
  %3027 = vmatprep.subr.bf16.mxu0 0
  %3028 = vmatpush1.bf16.msra.mxu0 0
  %3029 = vmatprep.subr.bf16.mxu0 0
  %3030 = vmatpush1.bf16.msra.mxu0 0
  %3031 = vmatprep.mubr.bf16.mxu0 %v2997
  %3032 = vmatmul.mubr.bf16.gmra.mrb[0].mxu0 %v2837
  %v3033 = vpop.f32.mrb[0].mxu0
  %v3034 = vadd.f32 %v2869, %v3033
  %v3035 = vpop.f32.mrb[0].mxu0
  %v3036 = vadd.f32 %v2873, %v3035
  %v3037 = vpop.f32.mrb[0].mxu0
  %v3038 = vadd.f32 %v2869, %v3037
  %v3039 = vpop.f32.mrb[0].mxu0
  %v3040 = vadd.f32 %v2873, %v3039
  %3041 = vdwg.mxu0
  %s3042 = scalar_lea.vmem %s3, 50
  %v3043 = vld [vmem:[%s3042] ss:$8 sm:$0x3]
  %v3045 = vlaneseq
  %v3046 = vshrl.u32 %v3045, 7
  %v3047 = vsub.s32 0, %v3046
  %v3048 = vrot.slane %v3043, %v3047
  %v3049 = vlaneseq
  %v3050 = vshrl.u32 %v3049, 7
  %v3051 = vsub.s32 1, %v3050
  %v3052 = vrot.slane %v3043, %v3051
  %v3055 = vmul.f32 %v3034, %v3048
  %v3056 = vmul.f32 %v3036, %v3052
  %v3057 = vmul.f32 %v3038, %v3048
  %v3058 = vmul.f32 %v3040, %v3052
  %s3059 = scalar_lea.vmem %s3, 51
  %v3060 = vld [vmem:[%s3059] ss:$8 sm:$0x3]
  %v3062 = vlaneseq
  %v3063 = vshrl.u32 %v3062, 7
  %v3064 = vsub.s32 0, %v3063
  %v3065 = vrot.slane %v3060, %v3064
  %v3066 = vlaneseq
  %v3067 = vshrl.u32 %v3066, 7
  %v3068 = vsub.s32 1, %v3067
  %v3069 = vrot.slane %v3060, %v3068
  %v3072 = vadd.f32 %v3055, %v3065
  %v3073 = vadd.f32 %v3056, %v3069
  %v3074 = vadd.f32 %v3057, %v3065
  %v3075 = vadd.f32 %v3058, %v3069
  %v3076 = vmax.f32 %v3072, 0.0
  %v3077 = vmax.f32 %v3073, 0.0
  %v3078 = vmax.f32 %v3074, 0.0
  %v3079 = vmax.f32 %v3075, 0.0
  %v3080 = vld [vmem:[%s4 + $0x870] sm:$0xff]
  %v3081 = vld [vmem:[%s4 + $0x880] sm:$0xff]
  %v3082 = vld [vmem:[%s4 + $0x890] sm:$0xff]
  %v3083 = vld [vmem:[%s4 + $0x8a0] sm:$0xff]
  %v3084 = vld [vmem:[%s4 + $0x8b0] sm:$0xff]
  %v3085 = vld [vmem:[%s4 + $0x8c0] sm:$0xff]
  %v3086 = vld [vmem:[%s4 + $0x8d0] sm:$0xff]
  %v3087 = vld [vmem:[%s4 + $0x8e0] sm:$0xff]
  %v3088 = vld [vmem:[%s4 + $0x8f0] sm:$0xff]
  %v3089 = vld [vmem:[%s4 + $0x900] sm:$0xff]
  %v3090 = vld [vmem:[%s4 + $0x910] sm:$0xff]
  %v3091 = vld [vmem:[%s4 + $0x920] sm:$0xff]
  %v3092 = vld [vmem:[%s4 + $0x930] sm:$0xff]
  %v3093 = vld [vmem:[%s4 + $0x940] sm:$0xff]
  %v3094 = vld [vmem:[%s4 + $0x950] sm:$0xff]
  %v3095 = vld [vmem:[%s4 + $0x960] sm:$0xff]
  %v3096 = vld [vmem:[%s4 + $0x970] sm:$0xff]
  %v3097 = vld [vmem:[%s4 + $0x980] sm:$0xff]
  %v3098 = vld [vmem:[%s4 + $0x990] sm:$0xff]
  %v3099 = vld [vmem:[%s4 + $0x9a0] sm:$0xff]
  %v3100 = vld [vmem:[%s4 + $0x9b0] sm:$0xff]
  %v3101 = vld [vmem:[%s4 + $0x9c0] sm:$0xff]
  %v3102 = vld [vmem:[%s4 + $0x9d0] sm:$0xff]
  %v3103 = vld [vmem:[%s4 + $0x9e0] sm:$0xff]
  %v3104 = vld [vmem:[%s3 + $0x34] ss:$0 sm:$0xff]
  %v3106 = vsel %vm1007, %v3077, 0
  %v3109 = vsel %vm1007, %v3079, 0
  %3111 = vmatprep.subr.mxu0 0.0
  %3112 = vmatpush1.msra.mxu0 %v3080
  %3113 = vmatprep.subr.mxu0 0.0
  %3114 = vmatpush1.msra.mxu0 %v3081
  %3115 = vmatprep.subr.mxu0 0.0
  %3116 = vmatpush1.msra.mxu0 %v3082
  %3117 = vmatprep.subr.mxu0 0.0
  %3118 = vmatpush1.msra.mxu0 %v3083
  %3119 = vmatprep.subr.mxu0 0.0
  %3120 = vmatpush1.msra.mxu0 %v3084
  %3121 = vmatprep.subr.mxu0 0.0
  %3122 = vmatpush1.msra.mxu0 %v3085
  %3123 = vmatprep.subr.mxu0 0.0
  %3124 = vmatpush1.msra.mxu0 %v3086
  %3125 = vmatprep.subr.mxu0 0.0
  %3126 = vmatpush1.msra.mxu0 %v3087
  %3127 = vmatprep.subr.mxu0 0.0
  %3128 = vmatpush1.msra.mxu0 %v3088
  %3129 = vmatprep.subr.mxu0 0.0
  %3130 = vmatpush1.msra.mxu0 %v3089
  %3131 = vmatprep.subr.mxu0 0.0
  %3132 = vmatpush1.msra.mxu0 %v3090
  %3133 = vmatprep.subr.mxu0 0.0
  %3134 = vmatpush1.msra.mxu0 %v3091
  %3135 = vmatprep.subr.mxu0 0.0
  %3136 = vmatpush1.msra.mxu0 %v3092
  %3137 = vmatprep.subr.mxu0 0.0
  %3138 = vmatpush1.msra.mxu0 %v3093
  %3139 = vmatprep.subr.mxu0 0.0
  %3140 = vmatpush1.msra.mxu0 %v3094
  %3141 = vmatprep.subr.mxu0 0.0
  %3142 = vmatpush1.msra.mxu0 %v3095
  %3143 = vmatprep.subr.mxu0 0.0
  %3144 = vmatpush1.msra.mxu0 %v3096
  %3145 = vmatprep.subr.mxu0 0.0
  %3146 = vmatpush1.msra.mxu0 %v3097
  %3147 = vmatprep.subr.mxu0 0.0
  %3148 = vmatpush1.msra.mxu0 %v3098
  %3149 = vmatprep.subr.mxu0 0.0
  %3150 = vmatpush1.msra.mxu0 %v3099
  %3151 = vmatprep.subr.mxu0 0.0
  %3152 = vmatpush1.msra.mxu0 %v3100
  %3153 = vmatprep.subr.mxu0 0.0
  %3154 = vmatpush1.msra.mxu0 %v3101
  %3155 = vmatprep.subr.mxu0 0.0
  %3156 = vmatpush1.msra.mxu0 %v3102
  %3157 = vmatprep.subr.mxu0 0.0
  %3158 = vmatpush1.msra.mxu0 %v3103
  %3159 = vmatprep.subr.mxu0 0.0
  %3160 = vmatpush1.msra.mxu0 0.0
  %3161 = vmatprep.subr.mxu0 0.0
  %3162 = vmatpush1.msra.mxu0 0.0
  %3163 = vmatprep.subr.mxu0 0.0
  %3164 = vmatpush1.msra.mxu0 0.0
  %3165 = vmatprep.subr.mxu0 0.0
  %3166 = vmatpush1.msra.mxu0 0.0
  %3167 = vmatprep.subr.mxu0 0.0
  %3168 = vmatpush1.msra.mxu0 0.0
  %3169 = vmatprep.subr.mxu0 0.0
  %3170 = vmatpush1.msra.mxu0 0.0
  %3171 = vmatprep.subr.mxu0 0.0
  %3172 = vmatpush1.msra.mxu0 0.0
  %3173 = vmatprep.subr.mxu0 0.0
  %3174 = vmatpush1.msra.mxu0 0.0
  %3175 = vmatprep.mubr.f32.mxu0 %v3106
  %3176 = vmatmul.mubr.f32.gmra.mrb[0].mxu0 %v3076
  %v3177 = vpop.f32.mrb[0].mxu0
  %v3178 = vadd.f32 %v3104, %v3177
  %v3179 = vpop.f32.mrb[0].mxu0
  %3180 = vmatprep.mubr.f32.mxu0 %v3109
  %3181 = vmatmul.mubr.f32.gmra.mrb[0].mxu0 %v3078
  %v3182 = vpop.f32.mrb[0].mxu0
  %v3183 = vadd.f32 %v3104, %v3182
  %v3184 = vpop.f32.mrb[0].mxu0
  %3185 = vdwg.mxu0
  %v3186 = vxor.u32 %v3178, 2147483648
  %v3187 = vxor.u32 %v3183, 2147483648
  %v3188 = vmul.f32 %v3186, 1.442695
  %v3189 = vpow.pop %v3188
  %v3190 = vmul.f32 %v3187, 1.442695
  %v3191 = vpow.pop %v3190
  %v3192 = vadd.f32 %v3189, 1.0
  %v3193 = vadd.f32 %v3191, 1.0
  %v3194 = vrcp.pop %v3192
  %v3195 = vmul.f32 1.0, %v3194
  %v3196 = vrcp.pop %v3193
  %v3197 = vmul.f32 1.0, %v3196
  %v3198 = vld [vmem:[%s3 + $0x36] ss:$0 sm:$0xff]
  %vm3199 = vcmp.eq.f32.partialorder %v3198, %v274
  %vm3200 = vcmp.eq.f32.partialorder %v3198, %v279
  %v3201 = vsel %vm3199, %v3195, 0.0
  %v3202 = vsel %vm3200, %v3197, 0.0
  %v3203 = vld [vmem:[%s4 + $0x9f0] sm:$0x3f]
  %vm3204 = vcmask 48128
  %v3206 = vsel %vm3204, %v3201, 0
  %v3209 = vsel %vm3204, %v3202, 0
  %vm3211 = vcmask 1045504
  %v3213 = vsel %vm3211, %v3203, 0
  %3215 = vmatprep.subr.mxu0 0.0
  %3216 = vmatpush1.msra.mxu0 %v3213
  %3217 = vmatprep.subr.mxu0 0.0
  %3218 = vmatpush1.msra.mxu0 0.0
  %3219 = vmatprep.subr.mxu0 0.0
  %3220 = vmatpush1.msra.mxu0 0.0
  %3221 = vmatprep.subr.mxu0 0.0
  %3222 = vmatpush1.msra.mxu0 0.0
  %3223 = vmatprep.subr.mxu0 0.0
  %3224 = vmatpush1.msra.mxu0 0.0
  %3225 = vmatprep.subr.mxu0 0.0
  %3226 = vmatpush1.msra.mxu0 0.0
  %3227 = vmatprep.subr.mxu0 0.0
  %3228 = vmatpush1.msra.mxu0 0.0
  %3229 = vmatprep.subr.mxu0 0.0
  %3230 = vmatpush1.msra.mxu0 0.0
  %3231 = vmatprep.subr.mxu0 0.0
  %3232 = vmatpush1.msra.mxu0 0.0
  %3233 = vmatprep.subr.mxu0 0.0
  %3234 = vmatpush1.msra.mxu0 0.0
  %3235 = vmatprep.subr.mxu0 0.0
  %3236 = vmatpush1.msra.mxu0 0.0
  %3237 = vmatprep.subr.mxu0 0.0
  %3238 = vmatpush1.msra.mxu0 0.0
  %3239 = vmatprep.subr.mxu0 0.0
  %3240 = vmatpush1.msra.mxu0 0.0
  %3241 = vmatprep.subr.mxu0 0.0
  %3242 = vmatpush1.msra.mxu0 0.0
  %3243 = vmatprep.subr.mxu0 0.0
  %3244 = vmatpush1.msra.mxu0 0.0
  %3245 = vmatprep.subr.mxu0 0.0
  %3246 = vmatpush1.msra.mxu0 0.0
  %3247 = vmatprep.subr.mxu0 0.0
  %3248 = vmatpush1.msra.mxu0 0.0
  %3249 = vmatprep.subr.mxu0 0.0
  %3250 = vmatpush1.msra.mxu0 0.0
  %3251 = vmatprep.subr.mxu0 0.0
  %3252 = vmatpush1.msra.mxu0 0.0
  %3253 = vmatprep.subr.mxu0 0.0
  %3254 = vmatpush1.msra.mxu0 0.0
  %3255 = vmatprep.subr.mxu0 0.0
  %3256 = vmatpush1.msra.mxu0 0.0
  %3257 = vmatprep.subr.mxu0 0.0
  %3258 = vmatpush1.msra.mxu0 0.0
  %3259 = vmatprep.subr.mxu0 0.0
  %3260 = vmatpush1.msra.mxu0 0.0
  %3261 = vmatprep.subr.mxu0 0.0
  %3262 = vmatpush1.msra.mxu0 0.0
  %3263 = vmatprep.subr.mxu0 0.0
  %3264 = vmatpush1.msra.mxu0 0.0
  %3265 = vmatprep.subr.mxu0 0.0
  %3266 = vmatpush1.msra.mxu0 0.0
  %3267 = vmatprep.subr.mxu0 0.0
  %3268 = vmatpush1.msra.mxu0 0.0
  %3269 = vmatprep.subr.mxu0 0.0
  %3270 = vmatpush1.msra.mxu0 0.0
  %3271 = vmatprep.subr.mxu0 0.0
  %3272 = vmatpush1.msra.mxu0 0.0
  %3273 = vmatprep.subr.mxu0 0.0
  %3274 = vmatpush1.msra.mxu0 0.0
  %3275 = vmatprep.subr.mxu0 0.0
  %3276 = vmatpush1.msra.mxu0 0.0
  %3277 = vmatprep.subr.mxu0 0.0
  %3278 = vmatpush1.msra.mxu0 0.0
  %3279 = vmatprep.mubr.f32.mxu0 0.0
  %3280 = vmatmul.mubr.f32.gmra.mrb[0].mxu0 %v3206
  %v3281 = vpop.f32.mrb[0].mxu0
  %v3282 = vadd.f32 0.0, %v3281
  %v3283 = vpop.f32.mrb[0].mxu0
  %3284 = vmatprep.mubr.f32.mxu0 0.0
  %3285 = vmatmul.mubr.f32.gmra.mrb[0].mxu0 %v3209
  %v3286 = vpop.f32.mrb[0].mxu0
  %v3287 = vadd.f32 0.0, %v3286
  %v3288 = vpop.f32.mrb[0].mxu0
  %3289 = vdwg.mxu0
  %vm3290 = vcmask 15360
  %3291 = vst.msk [vmem:[%s5] sm:$0xff] %vm3290, %v3282
  %3292 = vst.msk [vmem:[%s5 + $0x8] sm:$0xff] %vm3290, %v3287
  // Predicated region
  $region22: #{mtmd_forward.1} parent=0 // pred_check
    _
  $region23: #{mtmd_forward.1} parent=0 // pred_check_branch
    %3294 = sbr.rel (0) target = $region25
  $region24: #{mtmd_forward.1} parent=0 // pred_region
    _
  $region25: #{mtmd_forward.1} parent=0 // pred_fallthru
    _
  // Predicated region
  $region26: #{mtmd_forward.1} parent=0 // pred_check
    _
  $region27: #{mtmd_forward.1} parent=0 // pred_check_branch
    %3296 = sbr.rel (0) target = $region29
  $region28: #{mtmd_forward.1} parent=0 // pred_region
    _
  $region29: #{mtmd_forward.1} parent=0 // pred_fallthru
    _

</llo_original>
